<compile_context>
chip_gen: v7x
topology: tpu7x:2x2x1
jax: 0.10.0
libtpu: 0.0.40
codegen_flags: <defaults>
</compile_context>

<pallas_src>
import functools

import jax
import jax.numpy as jnp
from jax.experimental import pallas as pl
from jax.experimental.pallas import tpu as pltpu

NEG_INF = -1e30          # finite "minus infinity" (avoids inf-inf NaN in online softmax)
VMEM_LIMIT = 32 * 1024 * 1024


def _round_up(v, m):
    return ((v + m - 1) // m) * m


def _pad2(a, rows, cols):
    return jnp.pad(a, ((0, rows - a.shape[0]), (0, cols - a.shape[1])))


# ---------------------------------------------------------------------------
# Kernel 1: theta Linear + attention scalars, fused.
#   Xt        = X @ Wt + b           (bf16 out, f32 accumulate)
#   att_src   = sum(Xt * a_src, -1)  (f32)
#   att_dst   = sum(Xt * a_dst, -1)  (f32)
# Grid: rows only; Wt / b / a_src / a_dst stay resident in VMEM.
# ---------------------------------------------------------------------------
def _theta_att_kernel(x_ref, wt_ref, b_ref, asrc_ref, adst_ref,
                      xt_ref, att_src_ref, att_dst_ref):
    xt = jnp.dot(x_ref[...], wt_ref[...], preferred_element_type=jnp.float32)
    xt = xt + b_ref[...]
    xt_ref[...] = xt.astype(xt_ref.dtype)
    att_src_ref[...] = jnp.sum(xt * asrc_ref[...], axis=1, keepdims=True)
    att_dst_ref[...] = jnp.sum(xt * adst_ref[...], axis=1, keepdims=True)


def theta_att(x, wt, b_row, a_src_row, a_dst_row, *, tm):
    np_, cin = x.shape
    cout = wt.shape[1]
    return pl.pallas_call(
        _theta_att_kernel,
        out_shape=(jax.ShapeDtypeStruct((np_, cout), jnp.bfloat16),
                   jax.ShapeDtypeStruct((np_, 1), jnp.float32),
                   jax.ShapeDtypeStruct((np_, 1), jnp.float32)),
        grid_spec=pltpu.PrefetchScalarGridSpec(
            num_scalar_prefetch=0,
            grid=(np_ // tm,),
            in_specs=[
                pl.BlockSpec((tm, cin), lambda i: (i, 0)),
                pl.BlockSpec((cin, cout), lambda i: (0, 0)),   # resident weight
                pl.BlockSpec((1, cout), lambda i: (0, 0)),     # resident bias
                pl.BlockSpec((1, cout), lambda i: (0, 0)),     # resident a_src
                pl.BlockSpec((1, cout), lambda i: (0, 0)),     # resident a_dst
            ],
            out_specs=(
                pl.BlockSpec((tm, cout), lambda i: (i, 0)),
                pl.BlockSpec((tm, 1), lambda i: (i, 0)),
                pl.BlockSpec((tm, 1), lambda i: (i, 0)),
            ),
        ),
        compiler_params=pltpu.CompilerParams(
            dimension_semantics=("parallel",),
            vmem_limit_bytes=VMEM_LIMIT,
        ),
        cost_estimate=pl.CostEstimate(
            flops=2 * np_ * cin * cout + 4 * np_ * cout,
            transcendentals=0,
            bytes_accessed=2 * (np_ * cin + cin * cout + np_ * cout)
            + 4 * (3 * cout + 2 * np_),
        ),
    )(x, wt, b_row, a_src_row, a_dst_row)


# ---------------------------------------------------------------------------
# Kernel 2: GAT neighbor aggregation, g.v2v(Xt, 'softmax_then_sum').
# Flash-style online masked softmax over the source (contraction) axis:
#   score[d,s] = LeakyReLU(att_src[s] + att_dst[d])  where adj[d,s] > 0
#   X_g[d]     = sum_s softmax_s(score[d,s]) * Xt[s]
# The NxN attention matrix never touches HBM.  Rows with no neighbors -> 0
# (matches torch.sparse.softmax + sparse.mm on an empty row).
# ---------------------------------------------------------------------------
def _gat_softmax_aggr_kernel(adj_ref, adst_ref, asrc_ref, xt_ref, out_ref,
                             m_sc, l_sc, acc_sc, *, neg_slope):
    k = pl.program_id(1)

    @pl.when(k == 0)
    def _():
        m_sc[...] = jnp.full_like(m_sc, NEG_INF)
        l_sc[...] = jnp.zeros_like(l_sc)
        acc_sc[...] = jnp.zeros_like(acc_sc)

    mask = adj_ref[...] > 0                              # (tm, tk)
    s = asrc_ref[...] + adst_ref[...]                    # (1,tk)+(tm,1) -> (tm,tk)
    s = jnp.where(s >= 0, s, neg_slope * s)              # LeakyReLU(0.2)
    # TODO(synk): training-mode attention dropout would use pltpu.prng_* here (eval = id).
    s = jnp.where(mask, s, NEG_INF)

    m_prev = m_sc[...]
    m_new = jnp.maximum(m_prev, s.max(axis=-1, keepdims=True))
    alpha = jnp.exp(m_prev - m_new)
    p = jnp.where(mask, jnp.exp(s - m_new), 0.0)
    l_sc[...] = alpha * l_sc[...] + p.sum(axis=-1, keepdims=True)
    acc_sc[...] = alpha * acc_sc[...] + jnp.dot(
        p.astype(xt_ref.dtype), xt_ref[...], preferred_element_type=jnp.float32)
    m_sc[...] = m_new

    @pl.when(k == pl.num_programs(1) - 1)
    def _():
        l = l_sc[...]
        inv_l = jnp.where(l > 0, pl.reciprocal(l, approx=True), 0.0)
        out_ref[...] = (acc_sc[...] * inv_l).astype(out_ref.dtype)


def gat_softmax_aggr(adj, att_dst_col, att_src_row, xt, *, tm, tk, neg_slope=0.2):
    np_ = adj.shape[0]
    c = xt.shape[1]
    kernel = functools.partial(_gat_softmax_aggr_kernel, neg_slope=neg_slope)
    return pl.pallas_call(
        kernel,
        out_shape=jax.ShapeDtypeStruct((np_, c), jnp.float32),
        grid_spec=pltpu.PrefetchScalarGridSpec(
            num_scalar_prefetch=0,
            grid=(np_ // tm, np_ // tk),
            in_specs=[
                pl.BlockSpec((tm, tk), lambda i, k: (i, k)),   # adjacency tile (bf16)
                pl.BlockSpec((tm, 1), lambda i, k: (i, 0)),    # att_dst for row tile
                pl.BlockSpec((1, tk), lambda i, k: (0, k)),    # att_src for col tile
                pl.BlockSpec((tk, c), lambda i, k: (k, 0)),    # Xt source tile
            ],
            out_specs=pl.BlockSpec((tm, c), lambda i, k: (i, 0)),
            scratch_shapes=[
                pltpu.VMEM((tm, 1), jnp.float32),   # running max
                pltpu.VMEM((tm, 1), jnp.float32),   # running sum
                pltpu.VMEM((tm, c), jnp.float32),   # f32 accumulator
            ],
        ),
        compiler_params=pltpu.CompilerParams(
            dimension_semantics=("parallel", "arbitrary"),
            vmem_limit_bytes=VMEM_LIMIT,
        ),
        cost_estimate=pl.CostEstimate(
            flops=2 * np_ * np_ * c + 8 * np_ * np_,
            transcendentals=np_ * np_,
            bytes_accessed=2 * np_ * np_ + 2 * np_ * c + 4 * np_ * c + 8 * np_,
        ),
    )(adj, att_dst_col, att_src_row, xt)


# ---------------------------------------------------------------------------
# Kernel 3: row-scaled matmul, used for hg.v2e 'mean':  Y = D_e^{-1} (H^T @ Xt).
# The D_e^{-1} normalization is fused as a row scale (never materialized in HBM).
# ---------------------------------------------------------------------------
def _scaled_matmul_kernel(a_ref, b_ref, scale_ref, out_ref, acc_sc):
    k = pl.program_id(1)

    @pl.when(k == 0)
    def _():
        acc_sc[...] = jnp.zeros_like(acc_sc)

    acc_sc[...] += jnp.dot(a_ref[...], b_ref[...], preferred_element_type=jnp.float32)

    @pl.when(k == pl.num_programs(1) - 1)
    def _():
        out_ref[...] = (acc_sc[...] * scale_ref[...]).astype(out_ref.dtype)


def scaled_matmul(a, b, row_scale, *, tm, tk, out_dtype=jnp.bfloat16):
    m, kdim = a.shape
    c = b.shape[1]
    return pl.pallas_call(
        _scaled_matmul_kernel,
        out_shape=jax.ShapeDtypeStruct((m, c), out_dtype),
        grid_spec=pltpu.PrefetchScalarGridSpec(
            num_scalar_prefetch=0,
            grid=(m // tm, kdim // tk),
            in_specs=[
                pl.BlockSpec((tm, tk), lambda i, k: (i, k)),
                pl.BlockSpec((tk, c), lambda i, k: (k, 0)),
                pl.BlockSpec((tm, 1), lambda i, k: (i, 0)),
            ],
            out_specs=pl.BlockSpec((tm, c), lambda i, k: (i, 0)),
            scratch_shapes=[pltpu.VMEM((tm, c), jnp.float32)],
        ),
        compiler_params=pltpu.CompilerParams(
            dimension_semantics=("parallel", "arbitrary"),
            vmem_limit_bytes=VMEM_LIMIT,
        ),
        cost_estimate=pl.CostEstimate(
            flops=2 * m * kdim * c,
            transcendentals=0,
            bytes_accessed=2 * (m * kdim + kdim * c + m * c) + 4 * m,
        ),
    )(a, b, row_scale)


# ---------------------------------------------------------------------------
# Kernel 4: hg.e2v 'mean' + combine + activation, fused epilogue:
#   X_hg = D_v^{-1} (H @ Y)
#   out  = ELU((X_g + X_hg) / 2)          ( + ReLU for the conv1(..).relu() path )
# ---------------------------------------------------------------------------
def _e2v_combine_act_kernel(h_ref, y_ref, dv_ref, xg_ref, out_ref, acc_sc, *, post_relu):
    k = pl.program_id(1)

    @pl.when(k == 0)
    def _():
        acc_sc[...] = jnp.zeros_like(acc_sc)

    acc_sc[...] += jnp.dot(h_ref[...], y_ref[...], preferred_element_type=jnp.float32)

    @pl.when(k == pl.num_programs(1) - 1)
    def _():
        x1 = 0.5 * (acc_sc[...] * dv_ref[...] + xg_ref[...])
        act = jnp.where(x1 > 0, x1, jnp.exp(x1) - 1.0)        # ELU(alpha=1)
        if post_relu:
            act = jnp.maximum(act, 0.0)
        out_ref[...] = act.astype(out_ref.dtype)


def e2v_combine_act(h, y, inv_dv, x_g, *, tm, tk, post_relu, out_dtype=jnp.bfloat16):
    np_, ep = h.shape
    c = y.shape[1]
    kernel = functools.partial(_e2v_combine_act_kernel, post_relu=post_relu)
    return pl.pallas_call(
        kernel,
        out_shape=jax.ShapeDtypeStruct((np_, c), out_dtype),
        grid_spec=pltpu.PrefetchScalarGridSpec(
            num_scalar_prefetch=0,
            grid=(np_ // tm, ep // tk),
            in_specs=[
                pl.BlockSpec((tm, tk), lambda i, k: (i, k)),
                pl.BlockSpec((tk, c), lambda i, k: (k, 0)),
                pl.BlockSpec((tm, 1), lambda i, k: (i, 0)),
                pl.BlockSpec((tm, c), lambda i, k: (i, 0)),
            ],
            out_specs=pl.BlockSpec((tm, c), lambda i, k: (i, 0)),
            scratch_shapes=[pltpu.VMEM((tm, c), jnp.float32)],
        ),
        compiler_params=pltpu.CompilerParams(
            dimension_semantics=("parallel", "arbitrary"),
            vmem_limit_bytes=VMEM_LIMIT,
        ),
        cost_estimate=pl.CostEstimate(
            flops=2 * np_ * ep * c + 4 * np_ * c,
            transcendentals=np_ * c,
            bytes_accessed=2 * (np_ * ep + ep * c + 2 * np_ * c) + 4 * np_ * (c + 1),
        ),
    )(h, y, inv_dv, x_g)


# ---------------------------------------------------------------------------
# One GAT_HGNNPLUSConv layer (eval mode) on padded/blocked inputs.
# ---------------------------------------------------------------------------
def gat_hgnnplus_conv(x_p, conv_p, graph, *, post_relu):
    adj_p, h_bf, ht_bf, inv_de, inv_dv = graph
    wt, b_row, asrc_row, adst_row = conv_p

    tm, tk = 64, 128
    xt, att_src, att_dst = theta_att(x_p, wt, b_row, asrc_row, adst_row, tm=tm)

    att_src_row = att_src.T          # (1, Np): source scores along the lane axis
    att_dst_col = att_dst            # (Np, 1): dest scores along the row axis

    x_g = gat_softmax_aggr(adj_p, att_dst_col, att_src_row, xt, tm=tm, tk=tk)
    y = scaled_matmul(ht_bf, xt, inv_de, tm=tm, tk=tk)                 # hg.v2e 'mean'
    return e2v_combine_act(h_bf, y, inv_dv, x_g, tm=tm, tk=tk,         # hg.e2v + combine
                           post_relu=post_relu)


# ---------------------------------------------------------------------------
# Full GAT_HGNNPLUS forward:
#   x (N, C_in), adj (N, N) symmetric 0/1, hyper_inc (E, N) dense incidence of hg.
#   Hyperedges [0:E-1] form hg1; hyperedge E-1 is the readout edge.
# ---------------------------------------------------------------------------
@jax.jit
def gat_hgnnplus_forward(x, adj, hyper_inc, params):
    n, _ = x.shape
    e_all = hyper_inc.shape[0]
    c_out = params["w_fc"].shape[0]
    cp = params["conv1"][0].shape[1]                      # padded feature width (128)

    np_ = max(_round_up(n, 128), 256)                     # padded node count
    ep = max(_round_up(e_all - 1, 128), 128)              # padded hyperedge count (hg1)

    # ---- pad + cast graph structures (glue) ----------------------------------
    x_p = _pad2(x, np_, cp).astype(jnp.bfloat16)
    adj_p = _pad2(adj, np_, np_).astype(jnp.bfloat16)

    h1 = hyper_inc[: e_all - 1].T                         # (N, E-1) incidence of hg1
    h_p = _pad2(h1, np_, ep)
    deg_e = h_p.sum(axis=0)[:, None]
    deg_v = h_p.sum(axis=1)[:, None]
    inv_de = jnp.where(deg_e > 0, 1.0 / deg_e, 0.0).astype(jnp.float32)   # (Ep, 1)
    inv_dv = jnp.where(deg_v > 0, 1.0 / deg_v, 0.0).astype(jnp.float32)   # (Np, 1)
    graph = (adj_p, h_p.astype(jnp.bfloat16), h_p.T.astype(jnp.bfloat16),
             inv_de, inv_dv)

    # ---- encode: conv1(...).relu() then conv2 --------------------------------
    x1 = gat_hgnnplus_conv(x_p, params["conv1"], graph, post_relu=True)
    x2 = gat_hgnnplus_conv(x1, params["conv2"], graph, post_relu=False)

    # ---- readout head: max over vertices of the LAST hyperedge, fc + sigmoid --
    x2_real = x2[:n, :c_out].astype(jnp.float32)
    last_mask = hyper_inc[e_all - 1] > 0                                  # (N,)
    edge_x = jnp.max(jnp.where(last_mask[:, None], x2_real, NEG_INF),
                     axis=0, keepdims=True)                               # (1, C_out)
    logits = edge_x @ params["w_fc"] + params["b_fc"][None, :]            # (1, 1)
    return jax.nn.sigmoid(logits)


# ---------------------------------------------------------------------------
# Demo with small deterministic inputs.
# ---------------------------------------------------------------------------
if __name__ == "__main__":
    N, C_IN, H_CH, C_OUT, E = 16, 4, 32, 32, 6
    CP = 128                                              # padded feature width

    key = jax.random.PRNGKey(0)
    ks = jax.random.split(key, 12)

    # node features
    x = jax.random.normal(ks[0], (N, C_IN), jnp.float32)

    # graph g: symmetric random 0/1 adjacency, no self loops
    a_up = (jax.random.uniform(ks[1], (N, N)) < 0.3).astype(jnp.float32)
    adj = jnp.triu(a_up, k=1)
    adj = adj + adj.T

    # hypergraph hg: dense incidence (E, N), force >= 2 vertices per hyperedge
    inc = (jax.random.uniform(ks[2], (E, N)) < 0.3).astype(jnp.float32)
    eidx = jnp.arange(E)
    inc = inc.at[eidx, (2 * eidx) % N].set(1.0)
    inc = inc.at[eidx, (2 * eidx + 1) % N].set(1.0)

    def lin_init(k, fan_in, shape):
        bound = 1.0 / jnp.sqrt(float(fan_in))
        return jax.random.uniform(k, shape, jnp.float32, -bound, bound)

    # conv weights are stored pre-transposed (rhs layout, i.e. W^T of nn.Linear)
    w1t = lin_init(ks[3], C_IN, (C_IN, H_CH))
    b1 = lin_init(ks[4], C_IN, (H_CH,))
    a1_src = lin_init(ks[5], H_CH, (H_CH,))
    a1_dst = lin_init(ks[6], H_CH, (H_CH,))

    w2t = lin_init(ks[7], H_CH, (H_CH, C_OUT))
    b2 = lin_init(ks[8], H_CH, (C_OUT,))
    a2_src = lin_init(ks[9], C_OUT, (C_OUT,))
    a2_dst = lin_init(ks[10], C_OUT, (C_OUT,))

    w_fc = lin_init(ks[11], C_OUT, (C_OUT, 1))
    b_fc = jnp.zeros((1,), jnp.float32)

    def pad_conv(wt, b, a_src, a_dst):
        cout = wt.shape[1]
        wt_p = _pad2(wt, CP, CP).astype(jnp.bfloat16)
        b_p = jnp.pad(b, (0, CP - cout))[None, :].astype(jnp.float32)
        asrc_p = jnp.pad(a_src, (0, CP - cout))[None, :].astype(jnp.float32)
        adst_p = jnp.pad(a_dst, (0, CP - cout))[None, :].astype(jnp.float32)
        return (wt_p, b_p, asrc_p, adst_p)

    params = {
        "conv1": pad_conv(w1t, b1, a1_src, a1_dst),
        "conv2": pad_conv(w2t, b2, a2_src, a2_dst),
        "w_fc": w_fc,
        "b_fc": b_fc,
    }

    out = gat_hgnnplus_forward(x, adj, inc, params)
    out = jax.block_until_ready(out)

    assert out.shape == (1, 1) and out.dtype == jnp.float32
    assert bool(jnp.isfinite(out).all())
    assert bool(((out > 0.0) & (out < 1.0)).all())        # sigmoid output
    print("KERNEL_OK")
</pallas_src>

<mosaic_0001>
module attributes {stable_mosaic.version = 11 : i64} {
  func.func @_theta_att_kernel(%arg0: i32, %arg1: memref<64x128xbf16, #tpu.memory_space<vmem>>, %arg2: memref<128x128xbf16, #tpu.memory_space<vmem>>, %arg3: memref<1x128xf32, #tpu.memory_space<vmem>>, %arg4: memref<1x128xf32, #tpu.memory_space<vmem>>, %arg5: memref<1x128xf32, #tpu.memory_space<vmem>>, %arg6: memref<64x128xbf16, #tpu.memory_space<vmem>>, %arg7: memref<64x1xf32, #tpu.memory_space<vmem>>, %arg8: memref<64x1xf32, #tpu.memory_space<vmem>>) attributes {dimension_semantics = [#tpu.dimension_semantics<parallel>], iteration_bounds = array<i64: 4>, scalar_prefetch = 0 : i64, scratch_operands = 0 : i64, tpu.core_type = #tpu.core_type<tc>, window_params = [{transform_indices = @transform_0, window_bounds = array<i64: 64, 128>}, {pipeline_mode = #tpu.pipeline_mode<synchronous>, transform_indices = @transform_1, window_bounds = array<i64: 128, 128>}, {pipeline_mode = #tpu.pipeline_mode<synchronous>, transform_indices = @transform_2, window_bounds = array<i64: 1, 128>}, {pipeline_mode = #tpu.pipeline_mode<synchronous>, transform_indices = @transform_3, window_bounds = array<i64: 1, 128>}, {pipeline_mode = #tpu.pipeline_mode<synchronous>, transform_indices = @transform_4, window_bounds = array<i64: 1, 128>}, {transform_indices = @transform_5, window_bounds = array<i64: 64, 128>}, {transform_indices = @transform_6, window_bounds = array<i64: 64, 1>}, {transform_indices = @transform_7, window_bounds = array<i64: 64, 1>}]} {
    %c0 = arith.constant 0 : index
    %c0_0 = arith.constant 0 : index
    %0 = vector.load %arg1[%c0, %c0_0] : memref<64x128xbf16, #tpu.memory_space<vmem>>, vector<64x128xbf16>
    %c0_1 = arith.constant 0 : index
    %c0_2 = arith.constant 0 : index
    %1 = vector.load %arg2[%c0_1, %c0_2] : memref<128x128xbf16, #tpu.memory_space<vmem>>, vector<128x128xbf16>
    %cst = arith.constant dense<0.000000e+00> : vector<64x128xf32>
    %2 = tpu.matmul %0, %1, %cst {dimension_numbers = #tpu.dot_dimension_numbers<[1], [0], [0], [1], [0, 0, 1, 1], [], []>} : vector<64x128xbf16>, vector<128x128xbf16>, vector<64x128xf32> -> vector<64x128xf32>
    %c0_3 = arith.constant 0 : index
    %c0_4 = arith.constant 0 : index
    %3 = vector.load %arg3[%c0_3, %c0_4] : memref<1x128xf32, #tpu.memory_space<vmem>>, vector<1x128xf32>
    %4 = vector.broadcast %3 : vector<1x128xf32> to vector<64x128xf32>
    %5 = arith.addf %2, %4 : vector<64x128xf32>
    %6 = arith.truncf %5 : vector<64x128xf32> to vector<64x128xbf16>
    %c0_5 = arith.constant 0 : index
    %c0_6 = arith.constant 0 : index
    %7 = vector.load %arg6[%c0_5, %c0_6] : memref<64x128xbf16, #tpu.memory_space<vmem>>, vector<64x128xbf16>
    tpu.vector_store %arg6[%c0_5, %c0_6], %6 {strides = array<i32>} : memref<64x128xbf16, #tpu.memory_space<vmem>>, vector<64x128xbf16>,
    %c0_7 = arith.constant 0 : index
    %c0_8 = arith.constant 0 : index
    %8 = vector.load %arg4[%c0_7, %c0_8] : memref<1x128xf32, #tpu.memory_space<vmem>>, vector<1x128xf32>
    %9 = vector.broadcast %8 : vector<1x128xf32> to vector<64x128xf32>
    %10 = arith.mulf %5, %9 : vector<64x128xf32>
    %cst_9 = arith.constant dense<0.000000e+00> : vector<64xf32>
    %11 = vector.multi_reduction <add>, %10, %cst_9 [1] : vector<64x128xf32> to vector<64xf32>
    %12 = vector.shape_cast %11 : vector<64xf32> to vector<64x1xf32>
    %c0_10 = arith.constant 0 : index
    %c0_11 = arith.constant 0 : index
    %13 = vector.load %arg7[%c0_10, %c0_11] : memref<64x1xf32, #tpu.memory_space<vmem>>, vector<64x1xf32>
    tpu.vector_store %arg7[%c0_10, %c0_11], %12 {strides = array<i32>} : memref<64x1xf32, #tpu.memory_space<vmem>>, vector<64x1xf32>,
    %c0_12 = arith.constant 0 : index
    %c0_13 = arith.constant 0 : index
    %14 = vector.load %arg5[%c0_12, %c0_13] : memref<1x128xf32, #tpu.memory_space<vmem>>, vector<1x128xf32>
    %15 = vector.broadcast %14 : vector<1x128xf32> to vector<64x128xf32>
    %16 = arith.mulf %5, %15 : vector<64x128xf32>
    %cst_14 = arith.constant dense<0.000000e+00> : vector<64xf32>
    %17 = vector.multi_reduction <add>, %16, %cst_14 [1] : vector<64x128xf32> to vector<64xf32>
    %18 = vector.shape_cast %17 : vector<64xf32> to vector<64x1xf32>
    %c0_15 = arith.constant 0 : index
    %c0_16 = arith.constant 0 : index
    %19 = vector.load %arg8[%c0_15, %c0_16] : memref<64x1xf32, #tpu.memory_space<vmem>>, vector<64x1xf32>
    tpu.vector_store %arg8[%c0_15, %c0_16], %18 {strides = array<i32>} : memref<64x1xf32, #tpu.memory_space<vmem>>, vector<64x1xf32>,
    return
  }
  func.func @transform_0(%arg0: i32) -> (i32, i32) {
    %c0_i32 = arith.constant 0 : i32
    %c0_i32_0 = arith.constant 0 : i32
    return %arg0, %c0_i32 : i32, i32
  }
  func.func @transform_1(%arg0: i32) -> (i32, i32) {
    %c0_i32 = arith.constant 0 : i32
    %c0_i32_0 = arith.constant 0 : i32
    %c0_i32_1 = arith.constant 0 : i32
    return %c0_i32, %c0_i32_0 : i32, i32
  }
  func.func @transform_2(%arg0: i32) -> (i32, i32) {
    %c0_i32 = arith.constant 0 : i32
    %c0_i32_0 = arith.constant 0 : i32
    %c0_i32_1 = arith.constant 0 : i32
    return %c0_i32, %c0_i32_0 : i32, i32
  }
  func.func @transform_3(%arg0: i32) -> (i32, i32) {
    %c0_i32 = arith.constant 0 : i32
    %c0_i32_0 = arith.constant 0 : i32
    %c0_i32_1 = arith.constant 0 : i32
    return %c0_i32, %c0_i32_0 : i32, i32
  }
  func.func @transform_4(%arg0: i32) -> (i32, i32) {
    %c0_i32 = arith.constant 0 : i32
    %c0_i32_0 = arith.constant 0 : i32
    %c0_i32_1 = arith.constant 0 : i32
    return %c0_i32, %c0_i32_0 : i32, i32
  }
  func.func @transform_5(%arg0: i32) -> (i32, i32) {
    %c0_i32 = arith.constant 0 : i32
    %c0_i32_0 = arith.constant 0 : i32
    return %arg0, %c0_i32 : i32, i32
  }
  func.func @transform_6(%arg0: i32) -> (i32, i32) {
    %c0_i32 = arith.constant 0 : i32
    %c0_i32_0 = arith.constant 0 : i32
    return %arg0, %c0_i32 : i32, i32
  }
  func.func @transform_7(%arg0: i32) -> (i32, i32) {
    %c0_i32 = arith.constant 0 : i32
    %c0_i32_0 = arith.constant 0 : i32
    return %arg0, %c0_i32 : i32, i32
  }
}

module attributes {stable_mosaic.version = 11 : i64} {
  func.func @_scaled_matmul_kernel(%arg0: i32, %arg1: i32, %arg2: memref<64x128xbf16, #tpu.memory_space<vmem>>, %arg3: memref<128x128xbf16, #tpu.memory_space<vmem>>, %arg4: memref<64x1xf32, #tpu.memory_space<vmem>>, %arg5: memref<64x128xbf16, #tpu.memory_space<vmem>>, %arg6: memref<64x128xf32, #tpu.memory_space<vmem>>) attributes {dimension_semantics = [#tpu.dimension_semantics<parallel>, #tpu.dimension_semantics<arbitrary>], iteration_bounds = array<i64: 2, 2>, scalar_prefetch = 0 : i64, scratch_operands = 1 : i64, tpu.core_type = #tpu.core_type<tc>, window_params = [{transform_indices = @transform_0, window_bounds = array<i64: 64, 128>}, {transform_indices = @transform_1, window_bounds = array<i64: 128, 128>}, {transform_indices = @transform_2, window_bounds = array<i64: 64, 1>}, {transform_indices = @transform_3, window_bounds = array<i64: 64, 128>}]} {
    %c0_i32 = arith.constant 0 : i32
    %0 = arith.cmpi eq, %arg1, %c0_i32 : i32
    %1 = arith.extui %0 : i1 to i32
    %c0_i32_0 = arith.constant 0 : i32
    %2 = arith.cmpi ne, %1, %c0_i32_0 : i32
    scf.if %2 {
      %cst_9 = arith.constant 0.000000e+00 : f32
      %12 = vector.broadcast %cst_9 : f32 to vector<64x128xf32>
      %c0_10 = arith.constant 0 : index
      %c0_11 = arith.constant 0 : index
      %13 = vector.load %arg6[%c0_10, %c0_11] : memref<64x128xf32, #tpu.memory_space<vmem>>, vector<64x128xf32>
      tpu.vector_store %arg6[%c0_10, %c0_11], %12 {strides = array<i32>} : memref<64x128xf32, #tpu.memory_space<vmem>>, vector<64x128xf32>,
    } else {
    }
    %c0 = arith.constant 0 : index
    %c0_1 = arith.constant 0 : index
    %3 = vector.load %arg6[%c0, %c0_1] : memref<64x128xf32, #tpu.memory_space<vmem>>, vector<64x128xf32>
    %c0_2 = arith.constant 0 : index
    %c0_3 = arith.constant 0 : index
    %4 = vector.load %arg2[%c0_2, %c0_3] : memref<64x128xbf16, #tpu.memory_space<vmem>>, vector<64x128xbf16>
    %c0_4 = arith.constant 0 : index
    %c0_5 = arith.constant 0 : index
    %5 = vector.load %arg3[%c0_4, %c0_5] : memref<128x128xbf16, #tpu.memory_space<vmem>>, vector<128x128xbf16>
    %cst = arith.constant dense<0.000000e+00> : vector<64x128xf32>
    %6 = tpu.matmul %4, %5, %cst {dimension_numbers = #tpu.dot_dimension_numbers<[1], [0], [0], [1], [0, 0, 1, 1], [], []>} : vector<64x128xbf16>, vector<128x128xbf16>, vector<64x128xf32> -> vector<64x128xf32>
    %7 = arith.addf %3, %6 : vector<64x128xf32>
    %c0_6 = arith.constant 0 : index
    %c0_7 = arith.constant 0 : index
    %8 = vector.load %arg6[%c0_6, %c0_7] : memref<64x128xf32, #tpu.memory_space<vmem>>, vector<64x128xf32>
    tpu.vector_store %arg6[%c0_6, %c0_7], %7 {strides = array<i32>} : memref<64x128xf32, #tpu.memory_space<vmem>>, vector<64x128xf32>,
    %c1_i32 = arith.constant 1 : i32
    %9 = arith.cmpi eq, %arg1, %c1_i32 : i32
    %10 = arith.extui %9 : i1 to i32
    %c0_i32_8 = arith.constant 0 : i32
    %11 = arith.cmpi ne, %10, %c0_i32_8 : i32
    scf.if %11 {
      %c0_9 = arith.constant 0 : index
      %c0_10 = arith.constant 0 : index
      %12 = vector.load %arg6[%c0_9, %c0_10] : memref<64x128xf32, #tpu.memory_space<vmem>>, vector<64x128xf32>
      %c0_11 = arith.constant 0 : index
      %c0_12 = arith.constant 0 : index
      %13 = vector.load %arg4[%c0_11, %c0_12] : memref<64x1xf32, #tpu.memory_space<vmem>>, vector<64x1xf32>
      %14 = vector.broadcast %13 : vector<64x1xf32> to vector<64x128xf32>
      %15 = arith.mulf %12, %14 : vector<64x128xf32>
      %16 = arith.truncf %15 : vector<64x128xf32> to vector<64x128xbf16>
      %c0_13 = arith.constant 0 : index
      %c0_14 = arith.constant 0 : index
      %17 = vector.load %arg5[%c0_13, %c0_14] : memref<64x128xbf16, #tpu.memory_space<vmem>>, vector<64x128xbf16>
      tpu.vector_store %arg5[%c0_13, %c0_14], %16 {strides = array<i32>} : memref<64x128xbf16, #tpu.memory_space<vmem>>, vector<64x128xbf16>,
    } else {
    }
    return
  }
  func.func @transform_0(%arg0: i32, %arg1: i32) -> (i32, i32) {
    %c0_i32 = arith.constant 0 : i32
    return %arg0, %arg1 : i32, i32
  }
  func.func @transform_1(%arg0: i32, %arg1: i32) -> (i32, i32) {
    %c0_i32 = arith.constant 0 : i32
    %c0_i32_0 = arith.constant 0 : i32
    return %arg1, %c0_i32 : i32, i32
  }
  func.func @transform_2(%arg0: i32, %arg1: i32) -> (i32, i32) {
    %c0_i32 = arith.constant 0 : i32
    %c0_i32_0 = arith.constant 0 : i32
    return %arg0, %c0_i32 : i32, i32
  }
  func.func @transform_3(%arg0: i32, %arg1: i32) -> (i32, i32) {
    %c0_i32 = arith.constant 0 : i32
    %c0_i32_0 = arith.constant 0 : i32
    return %arg0, %c0_i32 : i32, i32
  }
}

module attributes {stable_mosaic.version = 11 : i64} {
  func.func @_gat_softmax_aggr_kernel(%arg0: i32, %arg1: i32, %arg2: memref<64x128xbf16, #tpu.memory_space<vmem>>, %arg3: memref<64x1xf32, #tpu.memory_space<vmem>>, %arg4: memref<1x128xf32, #tpu.memory_space<vmem>>, %arg5: memref<128x128xbf16, #tpu.memory_space<vmem>>, %arg6: memref<64x128xf32, #tpu.memory_space<vmem>>, %arg7: memref<64x1xf32, #tpu.memory_space<vmem>>, %arg8: memref<64x1xf32, #tpu.memory_space<vmem>>, %arg9: memref<64x128xf32, #tpu.memory_space<vmem>>) attributes {dimension_semantics = [#tpu.dimension_semantics<parallel>, #tpu.dimension_semantics<arbitrary>], iteration_bounds = array<i64: 4, 2>, scalar_prefetch = 0 : i64, scratch_operands = 3 : i64, tpu.core_type = #tpu.core_type<tc>, window_params = [{transform_indices = @transform_0, window_bounds = array<i64: 64, 128>}, {transform_indices = @transform_1, window_bounds = array<i64: 64, 1>}, {transform_indices = @transform_2, window_bounds = array<i64: 1, 128>}, {transform_indices = @transform_3, window_bounds = array<i64: 128, 128>}, {transform_indices = @transform_4, window_bounds = array<i64: 64, 128>}]} {
    %c0_i32 = arith.constant 0 : i32
    %0 = arith.cmpi eq, %arg1, %c0_i32 : i32
    %1 = arith.extui %0 : i1 to i32
    %c0_i32_0 = arith.constant 0 : i32
    %2 = arith.cmpi ne, %1, %c0_i32_0 : i32
    scf.if %2 {
      %cst_28 = arith.constant -1.000000e+30 : f32
      %47 = vector.broadcast %cst_28 : f32 to vector<64x1xf32>
      %c0_29 = arith.constant 0 : index
      %c0_30 = arith.constant 0 : index
      %48 = vector.load %arg7[%c0_29, %c0_30] : memref<64x1xf32, #tpu.memory_space<vmem>>, vector<64x1xf32>
      tpu.vector_store %arg7[%c0_29, %c0_30], %47 {strides = array<i32>} : memref<64x1xf32, #tpu.memory_space<vmem>>, vector<64x1xf32>,
      %cst_31 = arith.constant 0.000000e+00 : f32
      %49 = vector.broadcast %cst_31 : f32 to vector<64x1xf32>
      %c0_32 = arith.constant 0 : index
      %c0_33 = arith.constant 0 : index
      %50 = vector.load %arg8[%c0_32, %c0_33] : memref<64x1xf32, #tpu.memory_space<vmem>>, vector<64x1xf32>
      tpu.vector_store %arg8[%c0_32, %c0_33], %49 {strides = array<i32>} : memref<64x1xf32, #tpu.memory_space<vmem>>, vector<64x1xf32>,
      %cst_34 = arith.constant 0.000000e+00 : f32
      %51 = vector.broadcast %cst_34 : f32 to vector<64x128xf32>
      %c0_35 = arith.constant 0 : index
      %c0_36 = arith.constant 0 : index
      %52 = vector.load %arg9[%c0_35, %c0_36] : memref<64x128xf32, #tpu.memory_space<vmem>>, vector<64x128xf32>
      tpu.vector_store %arg9[%c0_35, %c0_36], %51 {strides = array<i32>} : memref<64x128xf32, #tpu.memory_space<vmem>>, vector<64x128xf32>,
    } else {
    }
    %c0 = arith.constant 0 : index
    %c0_1 = arith.constant 0 : index
    %3 = vector.load %arg2[%c0, %c0_1] : memref<64x128xbf16, #tpu.memory_space<vmem>>, vector<64x128xbf16>
    %cst = arith.constant 0.000000e+00 : bf16
    %4 = vector.broadcast %cst : bf16 to vector<64x128xbf16>
    %5 = arith.cmpf ogt, %3, %4 : vector<64x128xbf16>
    %c0_2 = arith.constant 0 : index
    %c0_3 = arith.constant 0 : index
    %6 = vector.load %arg4[%c0_2, %c0_3] : memref<1x128xf32, #tpu.memory_space<vmem>>, vector<1x128xf32>
    %c0_4 = arith.constant 0 : index
    %c0_5 = arith.constant 0 : index
    %7 = vector.load %arg3[%c0_4, %c0_5] : memref<64x1xf32, #tpu.memory_space<vmem>>, vector<64x1xf32>
    %8 = vector.broadcast %6 : vector<1x128xf32> to vector<64x128xf32>
    %9 = vector.broadcast %7 : vector<64x1xf32> to vector<64x128xf32>
    %10 = arith.addf %8, %9 : vector<64x128xf32>
    %cst_6 = arith.constant 0.000000e+00 : f32
    %11 = vector.broadcast %cst_6 : f32 to vector<64x128xf32>
    %12 = arith.cmpf oge, %10, %11 : vector<64x128xf32>
    %cst_7 = arith.constant 2.000000e-01 : f32
    %13 = vector.broadcast %cst_7 : f32 to vector<64x128xf32>
    %14 = arith.mulf %13, %10 : vector<64x128xf32>
    %15 = arith.select %12, %10, %14 : vector<64x128xi1>, vector<64x128xf32>
    %cst_8 = arith.constant -1.000000e+30 : f32
    %16 = vector.broadcast %cst_8 : f32 to vector<64x128xf32>
    %17 = arith.select %5, %15, %16 : vector<64x128xi1>, vector<64x128xf32>
    %c0_9 = arith.constant 0 : index
    %c0_10 = arith.constant 0 : index
    %18 = vector.load %arg7[%c0_9, %c0_10] : memref<64x1xf32, #tpu.memory_space<vmem>>, vector<64x1xf32>
    %cst_11 = arith.constant dense<0xFF800000> : vector<64xf32>
    %19 = vector.multi_reduction <maximumf>, %17, %cst_11 [1] : vector<64x128xf32> to vector<64xf32>
    %20 = vector.shape_cast %19 : vector<64xf32> to vector<64x1xf32>
    %21 = arith.maximumf %18, %20 : vector<64x1xf32>
    %22 = arith.subf %18, %21 : vector<64x1xf32>
    %23 = math.exp %22 : vector<64x1xf32>
    %24 = vector.broadcast %21 : vector<64x1xf32> to vector<64x128xf32>
    %25 = arith.subf %17, %24 : vector<64x128xf32>
    %26 = math.exp %25 : vector<64x128xf32>
    %cst_12 = arith.constant 0.000000e+00 : f32
    %27 = vector.broadcast %cst_12 : f32 to vector<64x128xf32>
    %28 = arith.select %5, %26, %27 : vector<64x128xi1>, vector<64x128xf32>
    %c0_13 = arith.constant 0 : index
    %c0_14 = arith.constant 0 : index
    %29 = vector.load %arg8[%c0_13, %c0_14] : memref<64x1xf32, #tpu.memory_space<vmem>>, vector<64x1xf32>
    %30 = arith.mulf %23, %29 : vector<64x1xf32>
    %cst_15 = arith.constant dense<0.000000e+00> : vector<64xf32>
    %31 = vector.multi_reduction <add>, %28, %cst_15 [1] : vector<64x128xf32> to vector<64xf32>
    %32 = vector.shape_cast %31 : vector<64xf32> to vector<64x1xf32>
    %33 = arith.addf %30, %32 : vector<64x1xf32>
    %c0_16 = arith.constant 0 : index
    %c0_17 = arith.constant 0 : index
    %34 = vector.load %arg8[%c0_16, %c0_17] : memref<64x1xf32, #tpu.memory_space<vmem>>, vector<64x1xf32>
    tpu.vector_store %arg8[%c0_16, %c0_17], %33 {strides = array<i32>} : memref<64x1xf32, #tpu.memory_space<vmem>>, vector<64x1xf32>,
    %c0_18 = arith.constant 0 : index
    %c0_19 = arith.constant 0 : index
    %35 = vector.load %arg9[%c0_18, %c0_19] : memref<64x128xf32, #tpu.memory_space<vmem>>, vector<64x128xf32>
    %36 = vector.broadcast %23 : vector<64x1xf32> to vector<64x128xf32>
    %37 = arith.mulf %36, %35 : vector<64x128xf32>
    %38 = arith.truncf %28 : vector<64x128xf32> to vector<64x128xbf16>
    %c0_20 = arith.constant 0 : index
    %c0_21 = arith.constant 0 : index
    %39 = vector.load %arg5[%c0_20, %c0_21] : memref<128x128xbf16, #tpu.memory_space<vmem>>, vector<128x128xbf16>
    %cst_22 = arith.constant dense<0.000000e+00> : vector<64x128xf32>
    %40 = tpu.matmul %38, %39, %cst_22 {dimension_numbers = #tpu.dot_dimension_numbers<[1], [0], [0], [1], [0, 0, 1, 1], [], []>} : vector<64x128xbf16>, vector<128x128xbf16>, vector<64x128xf32> -> vector<64x128xf32>
    %41 = arith.addf %37, %40 : vector<64x128xf32>
    %c0_23 = arith.constant 0 : index
    %c0_24 = arith.constant 0 : index
    %42 = vector.load %arg9[%c0_23, %c0_24] : memref<64x128xf32, #tpu.memory_space<vmem>>, vector<64x128xf32>
    tpu.vector_store %arg9[%c0_23, %c0_24], %41 {strides = array<i32>} : memref<64x128xf32, #tpu.memory_space<vmem>>, vector<64x128xf32>,
    %c0_25 = arith.constant 0 : index
    %c0_26 = arith.constant 0 : index
    %43 = vector.load %arg7[%c0_25, %c0_26] : memref<64x1xf32, #tpu.memory_space<vmem>>, vector<64x1xf32>
    tpu.vector_store %arg7[%c0_25, %c0_26], %21 {strides = array<i32>} : memref<64x1xf32, #tpu.memory_space<vmem>>, vector<64x1xf32>,
    %c1_i32 = arith.constant 1 : i32
    %44 = arith.cmpi eq, %arg1, %c1_i32 : i32
    %45 = arith.extui %44 : i1 to i32
    %c0_i32_27 = arith.constant 0 : i32
    %46 = arith.cmpi ne, %45, %c0_i32_27 : i32
    scf.if %46 {
      %c0_28 = arith.constant 0 : index
      %c0_29 = arith.constant 0 : index
      %47 = vector.load %arg8[%c0_28, %c0_29] : memref<64x1xf32, #tpu.memory_space<vmem>>, vector<64x1xf32>
      %cst_30 = arith.constant 0.000000e+00 : f32
      %48 = vector.broadcast %cst_30 : f32 to vector<64x1xf32>
      %49 = arith.cmpf ogt, %47, %48 : vector<64x1xf32>
      %50 = tpu.reciprocal %47 {approx = true} : vector<64x1xf32> -> vector<64x1xf32>
      %cst_31 = arith.constant 0.000000e+00 : f32
      %51 = vector.broadcast %cst_31 : f32 to vector<64x1xf32>
      %52 = arith.select %49, %50, %51 : vector<64x1xi1>, vector<64x1xf32>
      %c0_32 = arith.constant 0 : index
      %c0_33 = arith.constant 0 : index
      %53 = vector.load %arg9[%c0_32, %c0_33] : memref<64x128xf32, #tpu.memory_space<vmem>>, vector<64x128xf32>
      %54 = vector.broadcast %52 : vector<64x1xf32> to vector<64x128xf32>
      %55 = arith.mulf %53, %54 : vector<64x128xf32>
      %c0_34 = arith.constant 0 : index
      %c0_35 = arith.constant 0 : index
      %56 = vector.load %arg6[%c0_34, %c0_35] : memref<64x128xf32, #tpu.memory_space<vmem>>, vector<64x128xf32>
      tpu.vector_store %arg6[%c0_34, %c0_35], %55 {strides = array<i32>} : memref<64x128xf32, #tpu.memory_space<vmem>>, vector<64x128xf32>,
    } else {
    }
    return
  }
  func.func @transform_0(%arg0: i32, %arg1: i32) -> (i32, i32) {
    %c0_i32 = arith.constant 0 : i32
    return %arg0, %arg1 : i32, i32
  }
  func.func @transform_1(%arg0: i32, %arg1: i32) -> (i32, i32) {
    %c0_i32 = arith.constant 0 : i32
    %c0_i32_0 = arith.constant 0 : i32
    return %arg0, %c0_i32 : i32, i32
  }
  func.func @transform_2(%arg0: i32, %arg1: i32) -> (i32, i32) {
    %c0_i32 = arith.constant 0 : i32
    %c0_i32_0 = arith.constant 0 : i32
    return %c0_i32, %arg1 : i32, i32
  }
  func.func @transform_3(%arg0: i32, %arg1: i32) -> (i32, i32) {
    %c0_i32 = arith.constant 0 : i32
    %c0_i32_0 = arith.constant 0 : i32
    return %arg1, %c0_i32 : i32, i32
  }
  func.func @transform_4(%arg0: i32, %arg1: i32) -> (i32, i32) {
    %c0_i32 = arith.constant 0 : i32
    %c0_i32_0 = arith.constant 0 : i32
    return %arg0, %c0_i32 : i32, i32
  }
}

module attributes {stable_mosaic.version = 11 : i64} {
  func.func @_e2v_combine_act_kernel(%arg0: i32, %arg1: i32, %arg2: memref<64x128xbf16, #tpu.memory_space<vmem>>, %arg3: memref<128x128xbf16, #tpu.memory_space<vmem>>, %arg4: memref<64x1xf32, #tpu.memory_space<vmem>>, %arg5: memref<64x128xf32, #tpu.memory_space<vmem>>, %arg6: memref<64x128xbf16, #tpu.memory_space<vmem>>, %arg7: memref<64x128xf32, #tpu.memory_space<vmem>>) attributes {dimension_semantics = [#tpu.dimension_semantics<parallel>, #tpu.dimension_semantics<arbitrary>], iteration_bounds = array<i64: 4, 1>, scalar_prefetch = 0 : i64, scratch_operands = 1 : i64, tpu.core_type = #tpu.core_type<tc>, window_params = [{transform_indices = @transform_0, window_bounds = array<i64: 64, 128>}, {transform_indices = @transform_1, window_bounds = array<i64: 128, 128>}, {transform_indices = @transform_2, window_bounds = array<i64: 64, 1>}, {transform_indices = @transform_3, window_bounds = array<i64: 64, 128>}, {transform_indices = @transform_4, window_bounds = array<i64: 64, 128>}]} {
    %c0_i32 = arith.constant 0 : i32
    %0 = arith.cmpi eq, %arg1, %c0_i32 : i32
    %1 = arith.extui %0 : i1 to i32
    %c0_i32_0 = arith.constant 0 : i32
    %2 = arith.cmpi ne, %1, %c0_i32_0 : i32
    scf.if %2 {
      %cst_10 = arith.constant 0.000000e+00 : f32
      %12 = vector.broadcast %cst_10 : f32 to vector<64x128xf32>
      %c0_11 = arith.constant 0 : index
      %c0_12 = arith.constant 0 : index
      %13 = vector.load %arg7[%c0_11, %c0_12] : memref<64x128xf32, #tpu.memory_space<vmem>>, vector<64x128xf32>
      tpu.vector_store %arg7[%c0_11, %c0_12], %12 {strides = array<i32>} : memref<64x128xf32, #tpu.memory_space<vmem>>, vector<64x128xf32>,
    } else {
    }
    %c0 = arith.constant 0 : index
    %c0_1 = arith.constant 0 : index
    %3 = vector.load %arg7[%c0, %c0_1] : memref<64x128xf32, #tpu.memory_space<vmem>>, vector<64x128xf32>
    %c0_2 = arith.constant 0 : index
    %c0_3 = arith.constant 0 : index
    %4 = vector.load %arg2[%c0_2, %c0_3] : memref<64x128xbf16, #tpu.memory_space<vmem>>, vector<64x128xbf16>
    %c0_4 = arith.constant 0 : index
    %c0_5 = arith.constant 0 : index
    %5 = vector.load %arg3[%c0_4, %c0_5] : memref<128x128xbf16, #tpu.memory_space<vmem>>, vector<128x128xbf16>
    %cst = arith.constant dense<0.000000e+00> : vector<64x128xf32>
    %6 = tpu.matmul %4, %5, %cst {dimension_numbers = #tpu.dot_dimension_numbers<[1], [0], [0], [1], [0, 0, 1, 1], [], []>} : vector<64x128xbf16>, vector<128x128xbf16>, vector<64x128xf32> -> vector<64x128xf32>
    %7 = arith.addf %3, %6 : vector<64x128xf32>
    %c0_6 = arith.constant 0 : index
    %c0_7 = arith.constant 0 : index
    %8 = vector.load %arg7[%c0_6, %c0_7] : memref<64x128xf32, #tpu.memory_space<vmem>>, vector<64x128xf32>
    tpu.vector_store %arg7[%c0_6, %c0_7], %7 {strides = array<i32>} : memref<64x128xf32, #tpu.memory_space<vmem>>, vector<64x128xf32>,
    %c0_i32_8 = arith.constant 0 : i32
    %9 = arith.cmpi eq, %arg1, %c0_i32_8 : i32
    %10 = arith.extui %9 : i1 to i32
    %c0_i32_9 = arith.constant 0 : i32
    %11 = arith.cmpi ne, %10, %c0_i32_9 : i32
    scf.if %11 {
      %c0_10 = arith.constant 0 : index
      %c0_11 = arith.constant 0 : index
      %12 = vector.load %arg7[%c0_10, %c0_11] : memref<64x128xf32, #tpu.memory_space<vmem>>, vector<64x128xf32>
      %c0_12 = arith.constant 0 : index
      %c0_13 = arith.constant 0 : index
      %13 = vector.load %arg4[%c0_12, %c0_13] : memref<64x1xf32, #tpu.memory_space<vmem>>, vector<64x1xf32>
      %14 = vector.broadcast %13 : vector<64x1xf32> to vector<64x128xf32>
      %15 = arith.mulf %12, %14 : vector<64x128xf32>
      %c0_14 = arith.constant 0 : index
      %c0_15 = arith.constant 0 : index
      %16 = vector.load %arg5[%c0_14, %c0_15] : memref<64x128xf32, #tpu.memory_space<vmem>>, vector<64x128xf32>
      %17 = arith.addf %15, %16 : vector<64x128xf32>
      %cst_16 = arith.constant 5.000000e-01 : f32
      %18 = vector.broadcast %cst_16 : f32 to vector<64x128xf32>
      %19 = arith.mulf %18, %17 : vector<64x128xf32>
      %cst_17 = arith.constant 0.000000e+00 : f32
      %20 = vector.broadcast %cst_17 : f32 to vector<64x128xf32>
      %21 = arith.cmpf ogt, %19, %20 : vector<64x128xf32>
      %22 = math.exp %19 : vector<64x128xf32>
      %cst_18 = arith.constant 1.000000e+00 : f32
      %23 = vector.broadcast %cst_18 : f32 to vector<64x128xf32>
      %24 = arith.subf %22, %23 : vector<64x128xf32>
      %25 = arith.select %21, %19, %24 : vector<64x128xi1>, vector<64x128xf32>
      %cst_19 = arith.constant 0.000000e+00 : f32
      %26 = vector.broadcast %cst_19 : f32 to vector<64x128xf32>
      %27 = arith.maximumf %25, %26 : vector<64x128xf32>
      %28 = arith.truncf %27 : vector<64x128xf32> to vector<64x128xbf16>
      %c0_20 = arith.constant 0 : index
      %c0_21 = arith.constant 0 : index
      %29 = vector.load %arg6[%c0_20, %c0_21] : memref<64x128xbf16, #tpu.memory_space<vmem>>, vector<64x128xbf16>
      tpu.vector_store %arg6[%c0_20, %c0_21], %28 {strides = array<i32>} : memref<64x128xbf16, #tpu.memory_space<vmem>>, vector<64x128xbf16>,
    } else {
    }
    return
  }
  func.func @transform_0(%arg0: i32, %arg1: i32) -> (i32, i32) {
    %c0_i32 = arith.constant 0 : i32
    return %arg0, %arg1 : i32, i32
  }
  func.func @transform_1(%arg0: i32, %arg1: i32) -> (i32, i32) {
    %c0_i32 = arith.constant 0 : i32
    %c0_i32_0 = arith.constant 0 : i32
    return %arg1, %c0_i32 : i32, i32
  }
  func.func @transform_2(%arg0: i32, %arg1: i32) -> (i32, i32) {
    %c0_i32 = arith.constant 0 : i32
    %c0_i32_0 = arith.constant 0 : i32
    return %arg0, %c0_i32 : i32, i32
  }
  func.func @transform_3(%arg0: i32, %arg1: i32) -> (i32, i32) {
    %c0_i32 = arith.constant 0 : i32
    %c0_i32_0 = arith.constant 0 : i32
    return %arg0, %c0_i32 : i32, i32
  }
  func.func @transform_4(%arg0: i32, %arg1: i32) -> (i32, i32) {
    %c0_i32 = arith.constant 0 : i32
    %c0_i32_0 = arith.constant 0 : i32
    return %arg0, %c0_i32 : i32, i32
  }
}

module attributes {stable_mosaic.version = 11 : i64} {
  func.func @_e2v_combine_act_kernel(%arg0: i32, %arg1: i32, %arg2: memref<64x128xbf16, #tpu.memory_space<vmem>>, %arg3: memref<128x128xbf16, #tpu.memory_space<vmem>>, %arg4: memref<64x1xf32, #tpu.memory_space<vmem>>, %arg5: memref<64x128xf32, #tpu.memory_space<vmem>>, %arg6: memref<64x128xbf16, #tpu.memory_space<vmem>>, %arg7: memref<64x128xf32, #tpu.memory_space<vmem>>) attributes {dimension_semantics = [#tpu.dimension_semantics<parallel>, #tpu.dimension_semantics<arbitrary>], iteration_bounds = array<i64: 4, 1>, scalar_prefetch = 0 : i64, scratch_operands = 1 : i64, tpu.core_type = #tpu.core_type<tc>, window_params = [{transform_indices = @transform_0, window_bounds = array<i64: 64, 128>}, {transform_indices = @transform_1, window_bounds = array<i64: 128, 128>}, {transform_indices = @transform_2, window_bounds = array<i64: 64, 1>}, {transform_indices = @transform_3, window_bounds = array<i64: 64, 128>}, {transform_indices = @transform_4, window_bounds = array<i64: 64, 128>}]} {
    %c0_i32 = arith.constant 0 : i32
    %0 = arith.cmpi eq, %arg1, %c0_i32 : i32
    %1 = arith.extui %0 : i1 to i32
    %c0_i32_0 = arith.constant 0 : i32
    %2 = arith.cmpi ne, %1, %c0_i32_0 : i32
    scf.if %2 {
      %cst_10 = arith.constant 0.000000e+00 : f32
      %12 = vector.broadcast %cst_10 : f32 to vector<64x128xf32>
      %c0_11 = arith.constant 0 : index
      %c0_12 = arith.constant 0 : index
      %13 = vector.load %arg7[%c0_11, %c0_12] : memref<64x128xf32, #tpu.memory_space<vmem>>, vector<64x128xf32>
      tpu.vector_store %arg7[%c0_11, %c0_12], %12 {strides = array<i32>} : memref<64x128xf32, #tpu.memory_space<vmem>>, vector<64x128xf32>,
    } else {
    }
    %c0 = arith.constant 0 : index
    %c0_1 = arith.constant 0 : index
    %3 = vector.load %arg7[%c0, %c0_1] : memref<64x128xf32, #tpu.memory_space<vmem>>, vector<64x128xf32>
    %c0_2 = arith.constant 0 : index
    %c0_3 = arith.constant 0 : index
    %4 = vector.load %arg2[%c0_2, %c0_3] : memref<64x128xbf16, #tpu.memory_space<vmem>>, vector<64x128xbf16>
    %c0_4 = arith.constant 0 : index
    %c0_5 = arith.constant 0 : index
    %5 = vector.load %arg3[%c0_4, %c0_5] : memref<128x128xbf16, #tpu.memory_space<vmem>>, vector<128x128xbf16>
    %cst = arith.constant dense<0.000000e+00> : vector<64x128xf32>
    %6 = tpu.matmul %4, %5, %cst {dimension_numbers = #tpu.dot_dimension_numbers<[1], [0], [0], [1], [0, 0, 1, 1], [], []>} : vector<64x128xbf16>, vector<128x128xbf16>, vector<64x128xf32> -> vector<64x128xf32>
    %7 = arith.addf %3, %6 : vector<64x128xf32>
    %c0_6 = arith.constant 0 : index
    %c0_7 = arith.constant 0 : index
    %8 = vector.load %arg7[%c0_6, %c0_7] : memref<64x128xf32, #tpu.memory_space<vmem>>, vector<64x128xf32>
    tpu.vector_store %arg7[%c0_6, %c0_7], %7 {strides = array<i32>} : memref<64x128xf32, #tpu.memory_space<vmem>>, vector<64x128xf32>,
    %c0_i32_8 = arith.constant 0 : i32
    %9 = arith.cmpi eq, %arg1, %c0_i32_8 : i32
    %10 = arith.extui %9 : i1 to i32
    %c0_i32_9 = arith.constant 0 : i32
    %11 = arith.cmpi ne, %10, %c0_i32_9 : i32
    scf.if %11 {
      %c0_10 = arith.constant 0 : index
      %c0_11 = arith.constant 0 : index
      %12 = vector.load %arg7[%c0_10, %c0_11] : memref<64x128xf32, #tpu.memory_space<vmem>>, vector<64x128xf32>
      %c0_12 = arith.constant 0 : index
      %c0_13 = arith.constant 0 : index
      %13 = vector.load %arg4[%c0_12, %c0_13] : memref<64x1xf32, #tpu.memory_space<vmem>>, vector<64x1xf32>
      %14 = vector.broadcast %13 : vector<64x1xf32> to vector<64x128xf32>
      %15 = arith.mulf %12, %14 : vector<64x128xf32>
      %c0_14 = arith.constant 0 : index
      %c0_15 = arith.constant 0 : index
      %16 = vector.load %arg5[%c0_14, %c0_15] : memref<64x128xf32, #tpu.memory_space<vmem>>, vector<64x128xf32>
      %17 = arith.addf %15, %16 : vector<64x128xf32>
      %cst_16 = arith.constant 5.000000e-01 : f32
      %18 = vector.broadcast %cst_16 : f32 to vector<64x128xf32>
      %19 = arith.mulf %18, %17 : vector<64x128xf32>
      %cst_17 = arith.constant 0.000000e+00 : f32
      %20 = vector.broadcast %cst_17 : f32 to vector<64x128xf32>
      %21 = arith.cmpf ogt, %19, %20 : vector<64x128xf32>
      %22 = math.exp %19 : vector<64x128xf32>
      %cst_18 = arith.constant 1.000000e+00 : f32
      %23 = vector.broadcast %cst_18 : f32 to vector<64x128xf32>
      %24 = arith.subf %22, %23 : vector<64x128xf32>
      %25 = arith.select %21, %19, %24 : vector<64x128xi1>, vector<64x128xf32>
      %26 = arith.truncf %25 : vector<64x128xf32> to vector<64x128xbf16>
      %c0_19 = arith.constant 0 : index
      %c0_20 = arith.constant 0 : index
      %27 = vector.load %arg6[%c0_19, %c0_20] : memref<64x128xbf16, #tpu.memory_space<vmem>>, vector<64x128xbf16>
      tpu.vector_store %arg6[%c0_19, %c0_20], %26 {strides = array<i32>} : memref<64x128xbf16, #tpu.memory_space<vmem>>, vector<64x128xbf16>,
    } else {
    }
    return
  }
  func.func @transform_0(%arg0: i32, %arg1: i32) -> (i32, i32) {
    %c0_i32 = arith.constant 0 : i32
    return %arg0, %arg1 : i32, i32
  }
  func.func @transform_1(%arg0: i32, %arg1: i32) -> (i32, i32) {
    %c0_i32 = arith.constant 0 : i32
    %c0_i32_0 = arith.constant 0 : i32
    return %arg1, %c0_i32 : i32, i32
  }
  func.func @transform_2(%arg0: i32, %arg1: i32) -> (i32, i32) {
    %c0_i32 = arith.constant 0 : i32
    %c0_i32_0 = arith.constant 0 : i32
    return %arg0, %c0_i32 : i32, i32
  }
  func.func @transform_3(%arg0: i32, %arg1: i32) -> (i32, i32) {
    %c0_i32 = arith.constant 0 : i32
    %c0_i32_0 = arith.constant 0 : i32
    return %arg0, %c0_i32 : i32, i32
  }
  func.func @transform_4(%arg0: i32, %arg1: i32) -> (i32, i32) {
    %c0_i32 = arith.constant 0 : i32
    %c0_i32_0 = arith.constant 0 : i32
    return %arg0, %c0_i32 : i32, i32
  }
}

</mosaic_0001>

<llo_original>
// kernel: gat_hgnnplus_forward.10
$region0: #{gat_hgnnplus_forward.10}
  #allocation0 [shape = 'u32[]', space=smem, size = 0x4, offset = 0x4, fixed_abs, tag = 'smem constant byte address 0x4 - core index']
  #allocation1 [shape = 'u32[144,128]{1,0:T(1,128)}', space=vmem, size = 0x12000, scoped, tag = 'internal scratch']
  #allocation2 [shape = 'f32[64,128]{1,0:T(8,128)}', space=vmem, size = 0x8000, scoped, tag = 'scratch operand']
  %s0 = inlined_call_operand.vmem [shape: bf16[128,256], index: 0, kind: input, shape index: {}]
  %s1 = inlined_call_operand.vmem [shape: bf16[256,128], index: 1, kind: input, shape index: {}]
  %s2 = inlined_call_operand.vmem [shape: f32[128,1], index: 2, kind: input, shape index: {}]
  %s3 = inlined_call_operand.vmem [shape: bf16[128,128], index: 3, kind: output, shape index: {}]
  %s4 = sld [smem:[#allocation0]]
  $region94: #{gat_hgnnplus_forward.10} parent=0
    _
  %s6 = ssub.s32 1, %s4
  %s7 = scalar_select 0, %s6, %s4
  $region1: #{gat_hgnnplus_forward.10} parent=0
    #allocation3 [shape = 'u8[32768]{0}', space=vmem, size = 0x8000, scoped, tag = 'input window, operand 0']
    loop: start=0, step=1, limit=6
    $region2: #{gat_hgnnplus_forward.10} parent=1 // loop_pre_header
      _
    $region3: #{gat_hgnnplus_forward.10} parent=1 // loop_header
      %s9 = sphi 0, %s13
      %p10 = scmp.ge.s32.totalorder %s9, 6
      %s16 = sphi 0, %s28
      %s17 = sphi 0, %s24
      %s18 = sphi 0, %s16
      %s19 = sphi 0, %s17
      %s20 = sphi 0, %s18
      %s21 = sphi 0, %s19
      %s33 = sphi 0, %s35
      %s36 = sphi 0, %s33
      %s37 = sphi 0, %s36
      %s53 = sphi 0, %s37
      %s59 = sphi 0, %s61
      %s62 = sphi 0, %s59
      %s63 = sphi 0, %s62
      %s79 = sphi 0, %s63
      %s85 = sphi 0, %s87
      %s88 = sphi 0, %s85
      %s89 = sphi 0, %s88
      %s105 = sphi 0, %s89
      %s111 = sphi 0, %s113
      %s114 = sphi 0, %s111
      %s115 = sphi 0, %s114
      %s131 = sphi 0, %s115
    $region4: #{gat_hgnnplus_forward.10} parent=1 // loop_header_branch
      %12 = sbr.rel (%p10) target = $region8
    $region5: #{gat_hgnnplus_forward.10} parent=1 // loop_body
      %s14 = ssub.s32 %s9, 1
      %s15 = ssub.s32 %s9, 2
      %s22 = sadd.s32 1, %s17
      %p23 = scmp.ge.s32.totalorder %s22, 2
      %s24 = scalar_select %p23, 0, %s22
      %s25 = sadd.s32 1, %s16
      %s26 = scalar_select %p23, %s25, %s16
      %p27 = scmp.ge.s32.totalorder %s26, 2
      %s28 = scalar_select %p27, 0, %s26
      %s29 = ssub.s32 %s16, %s28
      %s30 = ssub.s32 %s17, %s24
      %s31 = sor.u32 %s29, %s30
      %p32 = scmp.eq.s32.totalorder %s31, 0
      %s34 = sadd.s32 %s33, 1
      %s35 = scalar_select %p32, %s33, %s34
      %p38 = pneg %p32
      %p39 = scmp.eq.s32.totalorder %s9, 3
      %p40 = por %p38, %p39
      %p41 = scmp.ne.s32.totalorder %s33, %s36
      %p42 = scmp.eq.s32.totalorder %s9, 0
      %p43 = por %p41, %p42
      %p44 = scmp.ne.s32.totalorder %s33, %s36
      %p45 = scmp.eq.s32.totalorder %s14, 3
      %p46 = por %p44, %p45
      %p47 = scmp.ne.s32.totalorder %s36, %s37
      %p48 = scmp.eq.s32.totalorder %s14, 0
      %p49 = por %p47, %p48
      %p50 = scmp.ne.s32.totalorder %s36, %s37
      %p51 = scmp.eq.s32.totalorder %s15, 3
      %p52 = por %p50, %p51
      %p54 = scmp.ne.s32.totalorder %s37, %s53
      %p55 = scmp.eq.s32.totalorder %s15, 0
      %p56 = por %p54, %p55
      %s57 = ssub.s32 %s17, %s24
      %p58 = scmp.eq.s32.totalorder %s57, 0
      %s60 = sadd.s32 %s59, 1
      %s61 = scalar_select %p58, %s59, %s60
      %p64 = pneg %p58
      %p65 = scmp.eq.s32.totalorder %s9, 3
      %p66 = por %p64, %p65
      %p67 = scmp.ne.s32.totalorder %s59, %s62
      %p68 = scmp.eq.s32.totalorder %s9, 0
      %p69 = por %p67, %p68
      %p70 = scmp.ne.s32.totalorder %s59, %s62
      %p71 = scmp.eq.s32.totalorder %s14, 3
      %p72 = por %p70, %p71
      %p73 = scmp.ne.s32.totalorder %s62, %s63
      %p74 = scmp.eq.s32.totalorder %s14, 0
      %p75 = por %p73, %p74
      %p76 = scmp.ne.s32.totalorder %s62, %s63
      %p77 = scmp.eq.s32.totalorder %s15, 3
      %p78 = por %p76, %p77
      %p80 = scmp.ne.s32.totalorder %s63, %s79
      %p81 = scmp.eq.s32.totalorder %s15, 0
      %p82 = por %p80, %p81
      %s83 = ssub.s32 %s16, %s28
      %p84 = scmp.eq.s32.totalorder %s83, 0
      %s86 = sadd.s32 %s85, 1
      %s87 = scalar_select %p84, %s85, %s86
      %p90 = pneg %p84
      %p91 = scmp.eq.s32.totalorder %s9, 3
      %p92 = por %p90, %p91
      %p93 = scmp.ne.s32.totalorder %s85, %s88
      %p94 = scmp.eq.s32.totalorder %s9, 0
      %p95 = por %p93, %p94
      %p96 = scmp.ne.s32.totalorder %s85, %s88
      %p97 = scmp.eq.s32.totalorder %s14, 3
      %p98 = por %p96, %p97
      %p99 = scmp.ne.s32.totalorder %s88, %s89
      %p100 = scmp.eq.s32.totalorder %s14, 0
      %p101 = por %p99, %p100
      %p102 = scmp.ne.s32.totalorder %s88, %s89
      %p103 = scmp.eq.s32.totalorder %s15, 3
      %p104 = por %p102, %p103
      %p106 = scmp.ne.s32.totalorder %s89, %s105
      %p107 = scmp.eq.s32.totalorder %s15, 0
      %p108 = por %p106, %p107
      %s109 = ssub.s32 %s16, %s28
      %p110 = scmp.eq.s32.totalorder %s109, 0
      %s112 = sadd.s32 %s111, 1
      %s113 = scalar_select %p110, %s111, %s112
      %p116 = pneg %p110
      %p117 = scmp.eq.s32.totalorder %s9, 3
      %p118 = por %p116, %p117
      %p119 = scmp.ne.s32.totalorder %s111, %s114
      %p120 = scmp.eq.s32.totalorder %s9, 0
      %p121 = por %p119, %p120
      %p122 = scmp.ne.s32.totalorder %s111, %s114
      %p123 = scmp.eq.s32.totalorder %s14, 3
      %p124 = por %p122, %p123
      %p125 = scmp.ne.s32.totalorder %s114, %s115
      %p126 = scmp.eq.s32.totalorder %s14, 0
      %p127 = por %p125, %p126
      %p128 = scmp.ne.s32.totalorder %s114, %s115
      %p129 = scmp.eq.s32.totalorder %s15, 3
      %p130 = por %p128, %p129
      %p132 = scmp.ne.s32.totalorder %s115, %s131
      %p133 = scmp.eq.s32.totalorder %s15, 0
      %p134 = por %p132, %p133
      %p135 = scmp.le.s32.totalorder 1, %s9
      %p136 = scmp.lt.s32.totalorder %s9, 5
      %p137 = pnand %p135, %p136
      %p138 = pneg %p137
      // Predicated region
      $region9: #{gat_hgnnplus_forward.10} parent=5 // pred_check
        _
      $region10: #{gat_hgnnplus_forward.10} parent=5 // pred_check_branch
        %140 = sbr.rel (%p137) target = $region12
      $region11: #{gat_hgnnplus_forward.10} parent=5 // pred_region
        %s141 = ssub.s32 %s9, 1
      $region12: #{gat_hgnnplus_forward.10} parent=5 // pred_fallthru
        _
      %p142 = scmp.lt.s32.totalorder %s9, 4
      // Predicated region
      $region13: #{gat_hgnnplus_forward.10} parent=5 // pred_check
        %p143 = pneg %p142
      $region14: #{gat_hgnnplus_forward.10} parent=5 // pred_check_branch
        %145 = sbr.rel (%p143) target = $region16
      $region15: #{gat_hgnnplus_forward.10} parent=5 // pred_region
        // Predicated region
        $region17: #{gat_hgnnplus_forward.10} parent=15 // pred_check
          %p146 = pneg %p43
        $region18: #{gat_hgnnplus_forward.10} parent=15 // pred_check_branch
          %148 = sbr.rel (%p146) target = $region20
        $region19: #{gat_hgnnplus_forward.10} parent=15 // pred_region
          %s149 = sand.u32 %s33, 1
          %s150 = sand.u32 %s33, 1
          %s151 = smul.addr %s150, 32
          %s152 = scalar_lea.vmem [#allocation3], %s151
          %s153 = smul.u32 8, %s16
          %s154 = smul.addr %s153, 2
          %s155 = sadd.s32 %s17, %s154
          %s156 = smul.addr %s155, 4
          %s157 = scalar_lea.vmem %s0, %s156
          // Predicated region
          $region21: #{gat_hgnnplus_forward.10} parent=19 // pred_check
            _
          $region22: #{gat_hgnnplus_forward.10} parent=19 // pred_check_branch
            %159 = sbr.rel (0) target = $region24
          $region23: #{gat_hgnnplus_forward.10} parent=19 // pred_region
            // Predicated region
            $region25: #{gat_hgnnplus_forward.10} parent=23 // pred_check
              _
            $region26: #{gat_hgnnplus_forward.10} parent=23 // pred_check_branch
              %161 = sbr.rel target = $region28
            $region27: #{gat_hgnnplus_forward.10} parent=23 // pred_region
              // Predicated region
              $region40: #{gat_hgnnplus_forward.10} parent=27 // pred_check
                _
              $region41: #{gat_hgnnplus_forward.10} parent=27 // pred_check_branch
                %190 = sbr.rel (0) target = $region43
              $region42: #{gat_hgnnplus_forward.10} parent=27 // pred_region
                loop: start=0, step=1, limit=1
                $region44: #{gat_hgnnplus_forward.10} parent=42 // loop_pre_header
                  _
                $region45: #{gat_hgnnplus_forward.10} parent=42 // loop_header
                  %s192 = sphi 0, %s196
                  %p193 = scmp.ge.s32.totalorder %s192, 1
                  %s197 = sphi %s157, %s157
                  %s198 = sphi %s152, %s152
                $region46: #{gat_hgnnplus_forward.10} parent=42 // loop_header_branch
                  %195 = sbr.rel (%p193) target = $region50
                $region47: #{gat_hgnnplus_forward.10} parent=42 // loop_body
                  _
                $region48: #{gat_hgnnplus_forward.10} parent=42 // loop_footer
                  %s196 = sadd.s32 1, %s192
                $region49: #{gat_hgnnplus_forward.10} parent=42 // loop_footer_branch
                  %191 = sbr.rel target = $region45
                $region50: #{gat_hgnnplus_forward.10} parent=42 // loop_exit
                  _
                loop: start=0, step=1, limit=1
                $region51: #{gat_hgnnplus_forward.10} parent=42 // loop_pre_header
                  _
                $region52: #{gat_hgnnplus_forward.10} parent=42 // loop_header
                  %s201 = sphi 0, %s205
                  %p202 = scmp.ge.s32.totalorder %s201, 1
                  %s206 = sphi %s157, %s157
                  %s207 = sphi %s152, %s152
                $region53: #{gat_hgnnplus_forward.10} parent=42 // loop_header_branch
                  %204 = sbr.rel (%p202) target = $region57
                $region54: #{gat_hgnnplus_forward.10} parent=42 // loop_body
                  %v208 = vld [vmem:[%s206] sm:$0xf]
                  %209 = vst [vmem:[%s207] sm:$0xf] %v208
                  %v210 = vld [vmem:[%s206 + $0x8] sm:$0xf]
                  %211 = vst [vmem:[%s207 + $0x4] sm:$0xf] %v210
                  %v212 = vld [vmem:[%s206 + $0x10] sm:$0xf]
                  %213 = vst [vmem:[%s207 + $0x8] sm:$0xf] %v212
                  %v214 = vld [vmem:[%s206 + $0x18] sm:$0xf]
                  %215 = vst [vmem:[%s207 + $0xc] sm:$0xf] %v214
                  %v216 = vld [vmem:[%s206 + $0x20] sm:$0xf]
                  %217 = vst [vmem:[%s207 + $0x10] sm:$0xf] %v216
                  %v218 = vld [vmem:[%s206 + $0x28] sm:$0xf]
                  %219 = vst [vmem:[%s207 + $0x14] sm:$0xf] %v218
                  %v220 = vld [vmem:[%s206 + $0x30] sm:$0xf]
                  %221 = vst [vmem:[%s207 + $0x18] sm:$0xf] %v220
                  %v222 = vld [vmem:[%s206 + $0x38] sm:$0xf]
                  %223 = vst [vmem:[%s207 + $0x1c] sm:$0xf] %v222
                $region55: #{gat_hgnnplus_forward.10} parent=42 // loop_footer
                  %s205 = sadd.s32 1, %s201
                $region56: #{gat_hgnnplus_forward.10} parent=42 // loop_footer_branch
                  %200 = sbr.rel target = $region52
                $region57: #{gat_hgnnplus_forward.10} parent=42 // loop_exit
                  _
              $region43: #{gat_hgnnplus_forward.10} parent=27 // pred_fallthru
                _
            $region28: #{gat_hgnnplus_forward.10} parent=23 // pred_fallthru
              _
            // Predicated region
            $region29: #{gat_hgnnplus_forward.10} parent=23 // pred_check
              _
            $region30: #{gat_hgnnplus_forward.10} parent=23 // pred_check_branch
              %163 = sbr.rel (0) target = $region32
            $region31: #{gat_hgnnplus_forward.10} parent=23 // pred_region
              loop: start=0, step=1, limit=1
              $region33: #{gat_hgnnplus_forward.10} parent=31 // loop_pre_header
                _
              $region34: #{gat_hgnnplus_forward.10} parent=31 // loop_header
                %s166 = sphi 0, %s170
                %p167 = scmp.ge.s32.totalorder %s166, 1
                %s171 = sphi %s157, %s157
                %s172 = sphi %s152, %s152
              $region35: #{gat_hgnnplus_forward.10} parent=31 // loop_header_branch
                %169 = sbr.rel (%p167) target = $region39
              $region36: #{gat_hgnnplus_forward.10} parent=31 // loop_body
                %v173 = vld [vmem:[%s171] sm:$0xf]
                %174 = vst [vmem:[%s172] sm:$0xf] %v173
                %v175 = vld [vmem:[%s171 + $0x8] sm:$0xf]
                %176 = vst [vmem:[%s172 + $0x4] sm:$0xf] %v175
                %v177 = vld [vmem:[%s171 + $0x10] sm:$0xf]
                %178 = vst [vmem:[%s172 + $0x8] sm:$0xf] %v177
                %v179 = vld [vmem:[%s171 + $0x18] sm:$0xf]
                %180 = vst [vmem:[%s172 + $0xc] sm:$0xf] %v179
                %v181 = vld [vmem:[%s171 + $0x20] sm:$0xf]
                %182 = vst [vmem:[%s172 + $0x10] sm:$0xf] %v181
                %v183 = vld [vmem:[%s171 + $0x28] sm:$0xf]
                %184 = vst [vmem:[%s172 + $0x14] sm:$0xf] %v183
                %v185 = vld [vmem:[%s171 + $0x30] sm:$0xf]
                %186 = vst [vmem:[%s172 + $0x18] sm:$0xf] %v185
                %v187 = vld [vmem:[%s171 + $0x38] sm:$0xf]
                %188 = vst [vmem:[%s172 + $0x1c] sm:$0xf] %v187
              $region37: #{gat_hgnnplus_forward.10} parent=31 // loop_footer
                %s170 = sadd.s32 1, %s166
              $region38: #{gat_hgnnplus_forward.10} parent=31 // loop_footer_branch
                %165 = sbr.rel target = $region34
              $region39: #{gat_hgnnplus_forward.10} parent=31 // loop_exit
                _
            $region32: #{gat_hgnnplus_forward.10} parent=23 // pred_fallthru
              _
          $region24: #{gat_hgnnplus_forward.10} parent=19 // pred_fallthru
            _
          %224 = vnop
        $region20: #{gat_hgnnplus_forward.10} parent=15 // pred_fallthru
          _
        // Predicated region
        $region58: #{gat_hgnnplus_forward.10} parent=15 // pred_check
          %p225 = pneg %p69
        $region59: #{gat_hgnnplus_forward.10} parent=15 // pred_check_branch
          %227 = sbr.rel (%p225) target = $region61
        $region60: #{gat_hgnnplus_forward.10} parent=15 // pred_region
          %s228 = smul.u32 16, %s17
          %p229 = scmp.lt.s32.totalorder %s228, 31
          %s230 = scalar_select %p229, %s228, 31
          %s231 = smul.addr %s230, 4
          %s232 = scalar_lea.vmem %s1, %s231
          %s233 = smul.u32 16, %s17
        $region61: #{gat_hgnnplus_forward.10} parent=15 // pred_fallthru
          _
        // Predicated region
        $region62: #{gat_hgnnplus_forward.10} parent=15 // pred_check
          %p234 = pneg %p95
        $region63: #{gat_hgnnplus_forward.10} parent=15 // pred_check_branch
          %236 = sbr.rel (%p234) target = $region65
        $region64: #{gat_hgnnplus_forward.10} parent=15 // pred_region
          %s237 = smul.u32 8, %s16
          %p238 = scmp.lt.s32.totalorder %s237, 15
          %s239 = scalar_select %p238, %s237, 15
          %s240 = smul.addr %s239, 8
          %s241 = scalar_lea.vmem %s2, %s240
          %s242 = smul.u32 8, %s16
        $region65: #{gat_hgnnplus_forward.10} parent=15 // pred_fallthru
          _
      $region16: #{gat_hgnnplus_forward.10} parent=5 // pred_fallthru
        _
      %p243 = scmp.le.s32.totalorder 1, %s9
      %p244 = scmp.lt.s32.totalorder %s9, 5
      %p245 = pnand %p243, %p244
      %p246 = pneg %p245
      // Predicated region
      $region66: #{gat_hgnnplus_forward.10} parent=5 // pred_check
        _
      $region67: #{gat_hgnnplus_forward.10} parent=5 // pred_check_branch
        %248 = sbr.rel (%p245) target = $region69
      $region68: #{gat_hgnnplus_forward.10} parent=5 // pred_region
        %s249 = ssub.s32 %s9, 1
        %s250 = sand.u32 %s36, 1
        %s251 = sand.u32 %s36, 1
        %s252 = smul.addr %s251, 32
        %s253 = scalar_lea.vmem [#allocation3], %s252
        // Predicated region
        $region70: #{gat_hgnnplus_forward.10} parent=68 // pred_check
          %p254 = pneg %p49
        $region71: #{gat_hgnnplus_forward.10} parent=68 // pred_check_branch
          %256 = sbr.rel (%p254) target = $region73
        $region72: #{gat_hgnnplus_forward.10} parent=68 // pred_region
          _
        $region73: #{gat_hgnnplus_forward.10} parent=68 // pred_fallthru
          _
        %s257 = sand.u32 %s36, 1
        %s258 = sand.u32 %s36, 1
        %s259 = smul.addr %s258, 32
        %s260 = scalar_lea.vmem [#allocation3], %s259
        %p261 = pneg %p49
        %p262 = pneg %p46
        %s263 = smul.u32 16, %s19
        %p264 = scmp.lt.s32.totalorder %s263, 31
        %s265 = scalar_select %p264, %s263, 31
        %s266 = smul.addr %s265, 4
        %s267 = scalar_lea.vmem %s1, %s266
        %p268 = pneg %p75
        %p269 = pneg %p72
        %s270 = smul.u32 8, %s18
        %p271 = scmp.lt.s32.totalorder %s270, 15
        %s272 = scalar_select %p271, %s270, 15
        %s273 = smul.addr %s272, 8
        %s274 = scalar_lea.vmem %s2, %s273
        %p275 = pneg %p101
        %p276 = pneg %p98
        %p277 = pneg %p127
        %p278 = pneg %p124
        %s279 = smul.u32 8, %s18
        %p280 = scmp.lt.s32.totalorder %s279, 15
        %s281 = scalar_select %p280, %s279, 15
        %s282 = smul.addr %s281, 4
        %s283 = scalar_lea.vmem %s3, %s282
        %s284 = smul.u32 8, %s18
        %s285 = smul.u32 16, %s19
        %p286 = scmp.lt.s32.totalorder %s285, 31
        %s287 = scalar_select %p286, %s285, 31
        %s288 = smul.addr %s287, 4
        %s289 = scalar_lea.vmem %s1, %s288
        %s290 = smul.u32 16, %s19
        %s291 = smul.u32 8, %s18
        %p292 = scmp.lt.s32.totalorder %s291, 15
        %s293 = scalar_select %p292, %s291, 15
        %s294 = smul.addr %s293, 8
        %s295 = scalar_lea.vmem %s2, %s294
        %s296 = smul.u32 8, %s18
        %s297 = smul.u32 8, %s18
        %p298 = scmp.lt.s32.totalorder %s297, 15
        %s299 = scalar_select %p298, %s297, 15
        %s300 = smul.addr %s299, 4
        %s301 = scalar_lea.vmem %s3, %s300
        %s302 = smul.u32 8, %s18
        %p304 = scmp.eq.s32.totalorder %s19, 0
        // Predicated region
        $region74: #{gat_hgnnplus_forward.10} parent=68 // pred_check
          %p305 = pneg %p304
        $region75: #{gat_hgnnplus_forward.10} parent=68 // pred_check_branch
          %307 = sbr.rel (%p305) target = $region77
        $region76: #{gat_hgnnplus_forward.10} parent=68 // pred_region
          %308 = vst [vmem:[#allocation2] sm:$0xff] 0.0
          %309 = vst [vmem:[#allocation2 + $0x8] sm:$0xff] 0.0
          %310 = vst [vmem:[#allocation2 + $0x10] sm:$0xff] 0.0
          %311 = vst [vmem:[#allocation2 + $0x18] sm:$0xff] 0.0
          %312 = vst [vmem:[#allocation2 + $0x20] sm:$0xff] 0.0
          %313 = vst [vmem:[#allocation2 + $0x28] sm:$0xff] 0.0
          %314 = vst [vmem:[#allocation2 + $0x30] sm:$0xff] 0.0
          %315 = vst [vmem:[#allocation2 + $0x38] sm:$0xff] 0.0
        $region77: #{gat_hgnnplus_forward.10} parent=68 // pred_fallthru
          _
        %v316 = vld [vmem:[#allocation2] sm:$0xff]
        %v317 = vld [vmem:[#allocation2 + $0x8] sm:$0xff]
        %v318 = vld [vmem:[#allocation2 + $0x10] sm:$0xff]
        %v319 = vld [vmem:[#allocation2 + $0x18] sm:$0xff]
        %v320 = vld [vmem:[#allocation2 + $0x20] sm:$0xff]
        %v321 = vld [vmem:[#allocation2 + $0x28] sm:$0xff]
        %v322 = vld [vmem:[#allocation2 + $0x30] sm:$0xff]
        %v323 = vld [vmem:[#allocation2 + $0x38] sm:$0xff]
        %v324 = vld [vmem:[%s253] sm:$0xf]
        %v325 = vld [vmem:[%s253 + $0x4] sm:$0xf]
        %v326 = vld [vmem:[%s253 + $0x8] sm:$0xf]
        %v327 = vld [vmem:[%s253 + $0xc] sm:$0xf]
        %v328 = vld [vmem:[%s253 + $0x10] sm:$0xf]
        %v329 = vld [vmem:[%s253 + $0x14] sm:$0xf]
        %v330 = vld [vmem:[%s253 + $0x18] sm:$0xf]
        %v331 = vld [vmem:[%s253 + $0x1c] sm:$0xf]
        %v332 = vld [vmem:[%s289] sm:$0xf]
        %v333 = vld [vmem:[%s289 + $0x4] sm:$0xf]
        %v334 = vld [vmem:[%s289 + $0x8] sm:$0xf]
        %v335 = vld [vmem:[%s289 + $0xc] sm:$0xf]
        %v336 = vld [vmem:[%s289 + $0x10] sm:$0xf]
        %v337 = vld [vmem:[%s289 + $0x14] sm:$0xf]
        %v338 = vld [vmem:[%s289 + $0x18] sm:$0xf]
        %v339 = vld [vmem:[%s289 + $0x1c] sm:$0xf]
        %v340 = vld [vmem:[%s289 + $0x20] sm:$0xf]
        %v341 = vld [vmem:[%s289 + $0x24] sm:$0xf]
        %v342 = vld [vmem:[%s289 + $0x28] sm:$0xf]
        %v343 = vld [vmem:[%s289 + $0x2c] sm:$0xf]
        %v344 = vld [vmem:[%s289 + $0x30] sm:$0xf]
        %v345 = vld [vmem:[%s289 + $0x34] sm:$0xf]
        %v346 = vld [vmem:[%s289 + $0x38] sm:$0xf]
        %v347 = vld [vmem:[%s289 + $0x3c] sm:$0xf]
        %v356 = vunpack.c.l.b16 %v324
        %v357 = vunpack.c.l.b16 %v325
        %v358 = vunpack.c.l.b16 %v326
        %v359 = vunpack.c.l.b16 %v327
        %v360 = vunpack.c.l.b16 %v328
        %v361 = vunpack.c.l.b16 %v329
        %v362 = vunpack.c.l.b16 %v330
        %v363 = vunpack.c.l.b16 %v331
        %v364 = vpack.c.b16 %v357, %v356
        %v365 = vpack.c.b16 %v359, %v358
        %v366 = vpack.c.b16 %v361, %v360
        %v367 = vpack.c.b16 %v363, %v362
        %v388 = vunpack.c.l.b16 %v332
        %v389 = vunpack.c.l.b16 %v333
        %v390 = vunpack.c.l.b16 %v334
        %v391 = vunpack.c.l.b16 %v335
        %v392 = vunpack.c.l.b16 %v336
        %v393 = vunpack.c.l.b16 %v337
        %v394 = vunpack.c.l.b16 %v338
        %v395 = vunpack.c.l.b16 %v339
        %v396 = vunpack.c.l.b16 %v340
        %v397 = vunpack.c.l.b16 %v341
        %v398 = vunpack.c.l.b16 %v342
        %v399 = vunpack.c.l.b16 %v343
        %v400 = vunpack.c.l.b16 %v344
        %v401 = vunpack.c.l.b16 %v345
        %v402 = vunpack.c.l.b16 %v346
        %v403 = vunpack.c.l.b16 %v347
        %v404 = vpack.c.b16 %v389, %v388
        %v405 = vpack.c.b16 %v391, %v390
        %v406 = vpack.c.b16 %v393, %v392
        %v407 = vpack.c.b16 %v395, %v394
        %v408 = vpack.c.b16 %v397, %v396
        %v409 = vpack.c.b16 %v399, %v398
        %v410 = vpack.c.b16 %v401, %v400
        %v411 = vpack.c.b16 %v403, %v402
        %420 = vmatprep.subr.bf16.mxu0 0
        %421 = vmatpush1.bf16.msra.mxu0 %v404
        %422 = vmatprep.subr.bf16.mxu0 0
        %423 = vmatpush1.bf16.msra.mxu0 %v405
        %424 = vmatprep.subr.bf16.mxu0 0
        %425 = vmatpush1.bf16.msra.mxu0 %v406
        %426 = vmatprep.subr.bf16.mxu0 0
        %427 = vmatpush1.bf16.msra.mxu0 %v407
        %428 = vmatprep.subr.bf16.mxu0 0
        %429 = vmatpush1.bf16.msra.mxu0 %v408
        %430 = vmatprep.subr.bf16.mxu0 0
        %431 = vmatpush1.bf16.msra.mxu0 %v409
        %432 = vmatprep.subr.bf16.mxu0 0
        %433 = vmatpush1.bf16.msra.mxu0 %v410
        %434 = vmatprep.subr.bf16.mxu0 0
        %435 = vmatpush1.bf16.msra.mxu0 %v411
        %436 = vmatprep.subr.bf16.mxu0 0
        %437 = vmatpush1.bf16.msra.mxu0 0
        %438 = vmatprep.subr.bf16.mxu0 0
        %439 = vmatpush1.bf16.msra.mxu0 0
        %440 = vmatprep.subr.bf16.mxu0 0
        %441 = vmatpush1.bf16.msra.mxu0 0
        %442 = vmatprep.subr.bf16.mxu0 0
        %443 = vmatpush1.bf16.msra.mxu0 0
        %444 = vmatprep.subr.bf16.mxu0 0
        %445 = vmatpush1.bf16.msra.mxu0 0
        %446 = vmatprep.subr.bf16.mxu0 0
        %447 = vmatpush1.bf16.msra.mxu0 0
        %448 = vmatprep.subr.bf16.mxu0 0
        %449 = vmatpush1.bf16.msra.mxu0 0
        %450 = vmatprep.subr.bf16.mxu0 0
        %451 = vmatpush1.bf16.msra.mxu0 0
        %452 = vmatprep.mubr.bf16.mxu0 0
        %453 = vmatmul.mubr.bf16.gmra.mrb[0].mxu0 %v364
        %v454 = vpop.f32.mrb[0].mxu0
        %v455 = vadd.f32 0.0, %v454
        %v456 = vpop.f32.mrb[0].mxu0
        %v457 = vpop.f32.mrb[0].mxu0
        %v458 = vadd.f32 0.0, %v457
        %v459 = vpop.f32.mrb[0].mxu0
        %460 = vmatprep.mubr.bf16.mxu0 0
        %461 = vmatmul.mubr.bf16.gmra.mrb[0].mxu0 %v365
        %v462 = vpop.f32.mrb[0].mxu0
        %v463 = vadd.f32 0.0, %v462
        %v464 = vpop.f32.mrb[0].mxu0
        %v465 = vpop.f32.mrb[0].mxu0
        %v466 = vadd.f32 0.0, %v465
        %v467 = vpop.f32.mrb[0].mxu0
        %468 = vmatprep.mubr.bf16.mxu0 0
        %469 = vmatmul.mubr.bf16.gmra.mrb[0].mxu0 %v366
        %v470 = vpop.f32.mrb[0].mxu0
        %v471 = vadd.f32 0.0, %v470
        %v472 = vpop.f32.mrb[0].mxu0
        %v473 = vpop.f32.mrb[0].mxu0
        %v474 = vadd.f32 0.0, %v473
        %v475 = vpop.f32.mrb[0].mxu0
        %476 = vmatprep.mubr.bf16.mxu0 0
        %477 = vmatmul.mubr.bf16.gmra.mrb[0].mxu0 %v367
        %v478 = vpop.f32.mrb[0].mxu0
        %v479 = vadd.f32 0.0, %v478
        %v480 = vpop.f32.mrb[0].mxu0
        %v481 = vpop.f32.mrb[0].mxu0
        %v482 = vadd.f32 0.0, %v481
        %v483 = vpop.f32.mrb[0].mxu0
        %484 = vdwg.mxu0
        %v485 = vadd.f32 %v316, %v455
        %v486 = vadd.f32 %v317, %v458
        %v487 = vadd.f32 %v318, %v463
        %v488 = vadd.f32 %v319, %v466
        %v489 = vadd.f32 %v320, %v471
        %v490 = vadd.f32 %v321, %v474
        %v491 = vadd.f32 %v322, %v479
        %v492 = vadd.f32 %v323, %v482
        %493 = vst [vmem:[#allocation2] sm:$0xff] %v485
        %494 = vst [vmem:[#allocation2 + $0x8] sm:$0xff] %v486
        %495 = vst [vmem:[#allocation2 + $0x10] sm:$0xff] %v487
        %496 = vst [vmem:[#allocation2 + $0x18] sm:$0xff] %v488
        %497 = vst [vmem:[#allocation2 + $0x20] sm:$0xff] %v489
        %498 = vst [vmem:[#allocation2 + $0x28] sm:$0xff] %v490
        %499 = vst [vmem:[#allocation2 + $0x30] sm:$0xff] %v491
        %500 = vst [vmem:[#allocation2 + $0x38] sm:$0xff] %v492
        %p501 = scmp.eq.s32.totalorder %s19, 1
        // Predicated region
        $region78: #{gat_hgnnplus_forward.10} parent=68 // pred_check
          %p502 = pneg %p501
        $region79: #{gat_hgnnplus_forward.10} parent=68 // pred_check_branch
          %504 = sbr.rel (%p502) target = $region81
        $region80: #{gat_hgnnplus_forward.10} parent=68 // pred_region
          %v505 = vld [vmem:[#allocation2] sm:$0xff]
          %v506 = vld [vmem:[#allocation2 + $0x8] sm:$0xff]
          %v507 = vld [vmem:[#allocation2 + $0x10] sm:$0xff]
          %v508 = vld [vmem:[#allocation2 + $0x18] sm:$0xff]
          %v509 = vld [vmem:[#allocation2 + $0x20] sm:$0xff]
          %v510 = vld [vmem:[#allocation2 + $0x28] sm:$0xff]
          %v511 = vld [vmem:[#allocation2 + $0x30] sm:$0xff]
          %v512 = vld [vmem:[#allocation2 + $0x38] sm:$0xff]
          %v513 = vld [vmem:[%s295] sm:$0xff]
          %v514 = vld [vmem:[%s295 + $0x8] sm:$0xff]
          %v515 = vld [vmem:[%s295 + $0x10] sm:$0xff]
          %v516 = vld [vmem:[%s295 + $0x18] sm:$0xff]
          %v517 = vld [vmem:[%s295 + $0x20] sm:$0xff]
          %v518 = vld [vmem:[%s295 + $0x28] sm:$0xff]
          %v519 = vld [vmem:[%s295 + $0x30] sm:$0xff]
          %v520 = vld [vmem:[%s295 + $0x38] sm:$0xff]
          %522 = vset.pattern.permute.xlu0 0
          %523 = vperm.xlu0 %522, %v513
          %v524 = vpop.permute.xlu0 %523
          %527 = vset.pattern.permute.xlu0 0
          %528 = vperm.xlu0 %527, %v514
          %v529 = vpop.permute.xlu0 %528
          %532 = vset.pattern.permute.xlu0 0
          %533 = vperm.xlu0 %532, %v515
          %v534 = vpop.permute.xlu0 %533
          %537 = vset.pattern.permute.xlu0 0
          %538 = vperm.xlu0 %537, %v516
          %v539 = vpop.permute.xlu0 %538
          %542 = vset.pattern.permute.xlu0 0
          %543 = vperm.xlu0 %542, %v517
          %v544 = vpop.permute.xlu0 %543
          %547 = vset.pattern.permute.xlu0 0
          %548 = vperm.xlu0 %547, %v518
          %v549 = vpop.permute.xlu0 %548
          %552 = vset.pattern.permute.xlu0 0
          %553 = vperm.xlu0 %552, %v519
          %v554 = vpop.permute.xlu0 %553
          %557 = vset.pattern.permute.xlu0 0
          %558 = vperm.xlu0 %557, %v520
          %v559 = vpop.permute.xlu0 %558
          %v561 = vmul.f32 %v505, %v524
          %v562 = vmul.f32 %v506, %v529
          %v563 = vmul.f32 %v507, %v534
          %v564 = vmul.f32 %v508, %v539
          %v565 = vmul.f32 %v509, %v544
          %v566 = vmul.f32 %v510, %v549
          %v567 = vmul.f32 %v511, %v554
          %v568 = vmul.f32 %v512, %v559
          %v569 = vpack.c.bf16 %v562, %v561
          %v570 = vpack.c.bf16 %v564, %v563
          %v571 = vpack.c.bf16 %v566, %v565
          %v572 = vpack.c.bf16 %v568, %v567
          %v577 = vunpack.c.l.b16 %v569
          %v578 = vunpack.c.h.b16 %v569
          %v579 = vunpack.c.l.b16 %v570
          %v580 = vunpack.c.h.b16 %v570
          %v581 = vunpack.c.l.b16 %v571
          %v582 = vunpack.c.h.b16 %v571
          %v583 = vunpack.c.l.b16 %v572
          %v584 = vunpack.c.h.b16 %v572
          %v585 = vpack.c.b16 %v577, %v577
          %v586 = vpack.c.b16 %v578, %v578
          %v587 = vpack.c.b16 %v579, %v579
          %v588 = vpack.c.b16 %v580, %v580
          %v589 = vpack.c.b16 %v581, %v581
          %v590 = vpack.c.b16 %v582, %v582
          %v591 = vpack.c.b16 %v583, %v583
          %v592 = vpack.c.b16 %v584, %v584
          %601 = vst [vmem:[%s301] sm:$0xf] %v585
          %602 = vst [vmem:[%s301 + $0x4] sm:$0xf] %v586
          %603 = vst [vmem:[%s301 + $0x8] sm:$0xf] %v587
          %604 = vst [vmem:[%s301 + $0xc] sm:$0xf] %v588
          %605 = vst [vmem:[%s301 + $0x10] sm:$0xf] %v589
          %606 = vst [vmem:[%s301 + $0x14] sm:$0xf] %v590
          %607 = vst [vmem:[%s301 + $0x18] sm:$0xf] %v591
          %608 = vst [vmem:[%s301 + $0x1c] sm:$0xf] %v592
        $region81: #{gat_hgnnplus_forward.10} parent=68 // pred_fallthru
          _
        %s609 = smul.u32 8, %s18
        %p610 = scmp.lt.s32.totalorder %s609, 15
        %s611 = scalar_select %p610, %s609, 15
        %s612 = smul.addr %s611, 4
        %s613 = scalar_lea.vmem %s3, %s612
        // Predicated region
        $region82: #{gat_hgnnplus_forward.10} parent=68 // pred_check
          %p614 = pneg %p124
        $region83: #{gat_hgnnplus_forward.10} parent=68 // pred_check_branch
          %616 = sbr.rel (%p614) target = $region85
        $region84: #{gat_hgnnplus_forward.10} parent=68 // pred_region
          %s617 = smul.u32 8, %s18
        $region85: #{gat_hgnnplus_forward.10} parent=68 // pred_fallthru
          _
      $region69: #{gat_hgnnplus_forward.10} parent=5 // pred_fallthru
        _
      %p618 = scmp.le.s32.totalorder 2, %s9
      // Predicated region
      $region86: #{gat_hgnnplus_forward.10} parent=5 // pred_check
        %p619 = pneg %p618
      $region87: #{gat_hgnnplus_forward.10} parent=5 // pred_check_branch
        %621 = sbr.rel (%p619) target = $region89
      $region88: #{gat_hgnnplus_forward.10} parent=5 // pred_region
        %s622 = ssub.s32 %s9, 2
        // Predicated region
        $region90: #{gat_hgnnplus_forward.10} parent=88 // pred_check
          %p623 = pneg %p130
        $region91: #{gat_hgnnplus_forward.10} parent=88 // pred_check_branch
          %625 = sbr.rel (%p623) target = $region93
        $region92: #{gat_hgnnplus_forward.10} parent=88 // pred_region
          %s626 = smul.u32 8, %s20
          %p627 = scmp.lt.s32.totalorder %s626, 15
          %s628 = scalar_select %p627, %s626, 15
          %s629 = smul.addr %s628, 4
          %s630 = scalar_lea.vmem %s3, %s629
        $region93: #{gat_hgnnplus_forward.10} parent=88 // pred_fallthru
          _
      $region89: #{gat_hgnnplus_forward.10} parent=5 // pred_fallthru
        _
    $region6: #{gat_hgnnplus_forward.10} parent=1 // loop_footer
      %s13 = sadd.s32 1, %s9
    $region7: #{gat_hgnnplus_forward.10} parent=1 // loop_footer_branch
      %8 = sbr.rel target = $region3
    $region8: #{gat_hgnnplus_forward.10} parent=1 // loop_exit
      _

// kernel: gat_hgnnplus_forward.8
$region0: #{gat_hgnnplus_forward.8}
  #allocation0 [shape = 'u32[]', space=smem, size = 0x4, offset = 0x4, fixed_abs, tag = 'smem constant byte address 0x4 - core index']
  #allocation1 [shape = 'u32[144,128]{1,0:T(1,128)}', space=vmem, size = 0x12000, scoped, tag = 'internal scratch']
  %s0 = inlined_call_operand.vmem [shape: bf16[256,128], index: 0, kind: input, shape index: {}]
  %s1 = inlined_call_operand.vmem [shape: bf16[128,128], index: 1, kind: input, shape index: {}]
  %s2 = inlined_call_operand.vmem [shape: f32[1,128], index: 2, kind: input, shape index: {}]
  %s3 = inlined_call_operand.vmem [shape: f32[1,128], index: 3, kind: input, shape index: {}]
  %s4 = inlined_call_operand.vmem [shape: f32[1,128], index: 4, kind: input, shape index: {}]
  %s5 = inlined_call_operand.vmem [shape: bf16[256,128], index: 5, kind: output, shape index: {0}]
  %s6 = inlined_call_operand.vmem [shape: f32[256,1], index: 6, kind: output, shape index: {1}]
  %s7 = inlined_call_operand.vmem [shape: f32[256,1], index: 7, kind: output, shape index: {2}]
  %8 = xla_tuple %s5, %s6, %s7
  %s9 = sld [smem:[#allocation0]]
  $region69: #{gat_hgnnplus_forward.8} parent=0
    _
  %s11 = ssub.s32 1, %s9
  %s12 = scalar_select 0, %s11, %s9
  loop: start=0, step=1, limit=6
  $region2: #{gat_hgnnplus_forward.8} parent=0 // loop_pre_header
    _
  $region3: #{gat_hgnnplus_forward.8} parent=0 // loop_header
    %s14 = sphi 0, %s18
    %p15 = scmp.ge.s32.totalorder %s14, 6
    %s24 = sphi 0, %s26
    %s27 = sphi 0, %s24
    %s28 = sphi 0, %s27
    %s44 = sphi 0, %s28
    %s48 = sphi 0, %s48
    %s50 = sphi 0, %s48
    %s51 = sphi 0, %s50
    %s65 = sphi 0, %s51
    %s69 = sphi 0, %s69
    %s71 = sphi 0, %s69
    %s72 = sphi 0, %s71
    %s86 = sphi 0, %s72
    %s90 = sphi 0, %s90
    %s92 = sphi 0, %s90
    %s93 = sphi 0, %s92
    %s107 = sphi 0, %s93
    %s111 = sphi 0, %s111
    %s113 = sphi 0, %s111
    %s114 = sphi 0, %s113
    %s128 = sphi 0, %s114
    %s134 = sphi 0, %s136
    %s137 = sphi 0, %s134
    %s138 = sphi 0, %s137
    %s154 = sphi 0, %s138
    %s160 = sphi 0, %s162
    %s163 = sphi 0, %s160
    %s164 = sphi 0, %s163
    %s180 = sphi 0, %s164
    %s186 = sphi 0, %s188
    %s189 = sphi 0, %s186
    %s190 = sphi 0, %s189
    %s206 = sphi 0, %s190
  $region4: #{gat_hgnnplus_forward.8} parent=0 // loop_header_branch
    %17 = sbr.rel (%p15) target = $region8
  $region5: #{gat_hgnnplus_forward.8} parent=0 // loop_body
    %s19 = ssub.s32 %s14, 1
    %s20 = ssub.s32 %s14, 2
    %s21 = sadd.s32 %s14, 1
    %s22 = ssub.s32 %s14, %s21
    %p23 = scmp.eq.s32.totalorder %s22, 0
    %s25 = sadd.s32 %s24, 1
    %s26 = scalar_select %p23, %s24, %s25
    %p29 = pneg %p23
    %p30 = scmp.eq.s32.totalorder %s14, 3
    %p31 = por %p29, %p30
    %p32 = scmp.ne.s32.totalorder %s24, %s27
    %p33 = scmp.eq.s32.totalorder %s14, 0
    %p34 = por %p32, %p33
    %p35 = scmp.ne.s32.totalorder %s24, %s27
    %p36 = scmp.eq.s32.totalorder %s19, 3
    %p37 = por %p35, %p36
    %p38 = scmp.ne.s32.totalorder %s27, %s28
    %p39 = scmp.eq.s32.totalorder %s19, 0
    %p40 = por %p38, %p39
    %p41 = scmp.ne.s32.totalorder %s27, %s28
    %p42 = scmp.eq.s32.totalorder %s20, 3
    %p43 = por %p41, %p42
    %p45 = scmp.ne.s32.totalorder %s28, %s44
    %p46 = scmp.eq.s32.totalorder %s20, 0
    %p47 = por %p45, %p46
    %s49 = sadd.s32 %s48, 1
    %p52 = scmp.eq.s32.totalorder %s14, 3
    %p53 = scmp.ne.s32.totalorder %s48, %s50
    %p54 = scmp.eq.s32.totalorder %s14, 0
    %p55 = por %p53, %p54
    %p56 = scmp.ne.s32.totalorder %s48, %s50
    %p57 = scmp.eq.s32.totalorder %s19, 3
    %p58 = por %p56, %p57
    %p59 = scmp.ne.s32.totalorder %s50, %s51
    %p60 = scmp.eq.s32.totalorder %s19, 0
    %p61 = por %p59, %p60
    %p62 = scmp.ne.s32.totalorder %s50, %s51
    %p63 = scmp.eq.s32.totalorder %s20, 3
    %p64 = por %p62, %p63
    %p66 = scmp.ne.s32.totalorder %s51, %s65
    %p67 = scmp.eq.s32.totalorder %s20, 0
    %p68 = por %p66, %p67
    %s70 = sadd.s32 %s69, 1
    %p73 = scmp.eq.s32.totalorder %s14, 3
    %p74 = scmp.ne.s32.totalorder %s69, %s71
    %p75 = scmp.eq.s32.totalorder %s14, 0
    %p76 = por %p74, %p75
    %p77 = scmp.ne.s32.totalorder %s69, %s71
    %p78 = scmp.eq.s32.totalorder %s19, 3
    %p79 = por %p77, %p78
    %p80 = scmp.ne.s32.totalorder %s71, %s72
    %p81 = scmp.eq.s32.totalorder %s19, 0
    %p82 = por %p80, %p81
    %p83 = scmp.ne.s32.totalorder %s71, %s72
    %p84 = scmp.eq.s32.totalorder %s20, 3
    %p85 = por %p83, %p84
    %p87 = scmp.ne.s32.totalorder %s72, %s86
    %p88 = scmp.eq.s32.totalorder %s20, 0
    %p89 = por %p87, %p88
    %s91 = sadd.s32 %s90, 1
    %p94 = scmp.eq.s32.totalorder %s14, 3
    %p95 = scmp.ne.s32.totalorder %s90, %s92
    %p96 = scmp.eq.s32.totalorder %s14, 0
    %p97 = por %p95, %p96
    %p98 = scmp.ne.s32.totalorder %s90, %s92
    %p99 = scmp.eq.s32.totalorder %s19, 3
    %p100 = por %p98, %p99
    %p101 = scmp.ne.s32.totalorder %s92, %s93
    %p102 = scmp.eq.s32.totalorder %s19, 0
    %p103 = por %p101, %p102
    %p104 = scmp.ne.s32.totalorder %s92, %s93
    %p105 = scmp.eq.s32.totalorder %s20, 3
    %p106 = por %p104, %p105
    %p108 = scmp.ne.s32.totalorder %s93, %s107
    %p109 = scmp.eq.s32.totalorder %s20, 0
    %p110 = por %p108, %p109
    %s112 = sadd.s32 %s111, 1
    %p115 = scmp.eq.s32.totalorder %s14, 3
    %p116 = scmp.ne.s32.totalorder %s111, %s113
    %p117 = scmp.eq.s32.totalorder %s14, 0
    %p118 = por %p116, %p117
    %p119 = scmp.ne.s32.totalorder %s111, %s113
    %p120 = scmp.eq.s32.totalorder %s19, 3
    %p121 = por %p119, %p120
    %p122 = scmp.ne.s32.totalorder %s113, %s114
    %p123 = scmp.eq.s32.totalorder %s19, 0
    %p124 = por %p122, %p123
    %p125 = scmp.ne.s32.totalorder %s113, %s114
    %p126 = scmp.eq.s32.totalorder %s20, 3
    %p127 = por %p125, %p126
    %p129 = scmp.ne.s32.totalorder %s114, %s128
    %p130 = scmp.eq.s32.totalorder %s20, 0
    %p131 = por %p129, %p130
    %s132 = ssub.s32 %s14, %s21
    %p133 = scmp.eq.s32.totalorder %s132, 0
    %s135 = sadd.s32 %s134, 1
    %s136 = scalar_select %p133, %s134, %s135
    %p139 = pneg %p133
    %p140 = scmp.eq.s32.totalorder %s14, 3
    %p141 = por %p139, %p140
    %p142 = scmp.ne.s32.totalorder %s134, %s137
    %p143 = scmp.eq.s32.totalorder %s14, 0
    %p144 = por %p142, %p143
    %p145 = scmp.ne.s32.totalorder %s134, %s137
    %p146 = scmp.eq.s32.totalorder %s19, 3
    %p147 = por %p145, %p146
    %p148 = scmp.ne.s32.totalorder %s137, %s138
    %p149 = scmp.eq.s32.totalorder %s19, 0
    %p150 = por %p148, %p149
    %p151 = scmp.ne.s32.totalorder %s137, %s138
    %p152 = scmp.eq.s32.totalorder %s20, 3
    %p153 = por %p151, %p152
    %p155 = scmp.ne.s32.totalorder %s138, %s154
    %p156 = scmp.eq.s32.totalorder %s20, 0
    %p157 = por %p155, %p156
    %s158 = ssub.s32 %s14, %s21
    %p159 = scmp.eq.s32.totalorder %s158, 0
    %s161 = sadd.s32 %s160, 1
    %s162 = scalar_select %p159, %s160, %s161
    %p165 = pneg %p159
    %p166 = scmp.eq.s32.totalorder %s14, 3
    %p167 = por %p165, %p166
    %p168 = scmp.ne.s32.totalorder %s160, %s163
    %p169 = scmp.eq.s32.totalorder %s14, 0
    %p170 = por %p168, %p169
    %p171 = scmp.ne.s32.totalorder %s160, %s163
    %p172 = scmp.eq.s32.totalorder %s19, 3
    %p173 = por %p171, %p172
    %p174 = scmp.ne.s32.totalorder %s163, %s164
    %p175 = scmp.eq.s32.totalorder %s19, 0
    %p176 = por %p174, %p175
    %p177 = scmp.ne.s32.totalorder %s163, %s164
    %p178 = scmp.eq.s32.totalorder %s20, 3
    %p179 = por %p177, %p178
    %p181 = scmp.ne.s32.totalorder %s164, %s180
    %p182 = scmp.eq.s32.totalorder %s20, 0
    %p183 = por %p181, %p182
    %s184 = ssub.s32 %s14, %s21
    %p185 = scmp.eq.s32.totalorder %s184, 0
    %s187 = sadd.s32 %s186, 1
    %s188 = scalar_select %p185, %s186, %s187
    %p191 = pneg %p185
    %p192 = scmp.eq.s32.totalorder %s14, 3
    %p193 = por %p191, %p192
    %p194 = scmp.ne.s32.totalorder %s186, %s189
    %p195 = scmp.eq.s32.totalorder %s14, 0
    %p196 = por %p194, %p195
    %p197 = scmp.ne.s32.totalorder %s186, %s189
    %p198 = scmp.eq.s32.totalorder %s19, 3
    %p199 = por %p197, %p198
    %p200 = scmp.ne.s32.totalorder %s189, %s190
    %p201 = scmp.eq.s32.totalorder %s19, 0
    %p202 = por %p200, %p201
    %p203 = scmp.ne.s32.totalorder %s189, %s190
    %p204 = scmp.eq.s32.totalorder %s20, 3
    %p205 = por %p203, %p204
    %p207 = scmp.ne.s32.totalorder %s190, %s206
    %p208 = scmp.eq.s32.totalorder %s20, 0
    %p209 = por %p207, %p208
    %p210 = scmp.le.s32.totalorder 1, %s14
    %p211 = scmp.lt.s32.totalorder %s14, 5
    %p212 = pnand %p210, %p211
    %p213 = pneg %p212
    // Predicated region
    $region9: #{gat_hgnnplus_forward.8} parent=5 // pred_check
      _
    $region10: #{gat_hgnnplus_forward.8} parent=5 // pred_check_branch
      %215 = sbr.rel (%p212) target = $region12
    $region11: #{gat_hgnnplus_forward.8} parent=5 // pred_region
      %s216 = ssub.s32 %s14, 1
      // Predicated region
      $region13: #{gat_hgnnplus_forward.8} parent=11 // pred_check
        %p217 = pneg %p61
      $region14: #{gat_hgnnplus_forward.8} parent=11 // pred_check_branch
        %219 = sbr.rel (%p217) target = $region16
      $region15: #{gat_hgnnplus_forward.8} parent=11 // pred_region
        _
      $region16: #{gat_hgnnplus_forward.8} parent=11 // pred_fallthru
        _
      // Predicated region
      $region17: #{gat_hgnnplus_forward.8} parent=11 // pred_check
        %p220 = pneg %p82
      $region18: #{gat_hgnnplus_forward.8} parent=11 // pred_check_branch
        %222 = sbr.rel (%p220) target = $region20
      $region19: #{gat_hgnnplus_forward.8} parent=11 // pred_region
        _
      $region20: #{gat_hgnnplus_forward.8} parent=11 // pred_fallthru
        _
      // Predicated region
      $region21: #{gat_hgnnplus_forward.8} parent=11 // pred_check
        %p223 = pneg %p103
      $region22: #{gat_hgnnplus_forward.8} parent=11 // pred_check_branch
        %225 = sbr.rel (%p223) target = $region24
      $region23: #{gat_hgnnplus_forward.8} parent=11 // pred_region
        _
      $region24: #{gat_hgnnplus_forward.8} parent=11 // pred_fallthru
        _
      // Predicated region
      $region25: #{gat_hgnnplus_forward.8} parent=11 // pred_check
        %p226 = pneg %p124
      $region26: #{gat_hgnnplus_forward.8} parent=11 // pred_check_branch
        %228 = sbr.rel (%p226) target = $region28
      $region27: #{gat_hgnnplus_forward.8} parent=11 // pred_region
        _
      $region28: #{gat_hgnnplus_forward.8} parent=11 // pred_fallthru
        _
    $region12: #{gat_hgnnplus_forward.8} parent=5 // pred_fallthru
      _
    %p229 = scmp.lt.s32.totalorder %s14, 4
    // Predicated region
    $region29: #{gat_hgnnplus_forward.8} parent=5 // pred_check
      %p230 = pneg %p229
    $region30: #{gat_hgnnplus_forward.8} parent=5 // pred_check_branch
      %232 = sbr.rel (%p230) target = $region32
    $region31: #{gat_hgnnplus_forward.8} parent=5 // pred_region
      // Predicated region
      $region33: #{gat_hgnnplus_forward.8} parent=31 // pred_check
        %p233 = pneg %p34
      $region34: #{gat_hgnnplus_forward.8} parent=31 // pred_check_branch
        %235 = sbr.rel (%p233) target = $region36
      $region35: #{gat_hgnnplus_forward.8} parent=31 // pred_region
        %s236 = smul.u32 8, %s14
        %p237 = scmp.lt.s32.totalorder %s236, 31
        %s238 = scalar_select %p237, %s236, 31
        %s239 = smul.addr %s238, 4
        %s240 = scalar_lea.vmem %s0, %s239
        %s241 = smul.u32 8, %s14
      $region36: #{gat_hgnnplus_forward.8} parent=31 // pred_fallthru
        _
    $region32: #{gat_hgnnplus_forward.8} parent=5 // pred_fallthru
      _
    %p242 = scmp.le.s32.totalorder 1, %s14
    %p243 = scmp.lt.s32.totalorder %s14, 5
    %p244 = pnand %p242, %p243
    %p245 = pneg %p244
    // Predicated region
    $region37: #{gat_hgnnplus_forward.8} parent=5 // pred_check
      _
    $region38: #{gat_hgnnplus_forward.8} parent=5 // pred_check_branch
      %247 = sbr.rel (%p244) target = $region40
    $region39: #{gat_hgnnplus_forward.8} parent=5 // pred_region
      %s248 = ssub.s32 %s14, 1
      %s249 = smul.u32 8, %s19
      %p250 = scmp.lt.s32.totalorder %s249, 31
      %s251 = scalar_select %p250, %s249, 31
      %s252 = smul.addr %s251, 4
      %s253 = scalar_lea.vmem %s0, %s252
      %p254 = pneg %p40
      %p255 = pneg %p37
      %p256 = pneg %p61
      %p257 = pneg %p58
      %p258 = pneg %p82
      %p259 = pneg %p79
      %p260 = pneg %p103
      %p261 = pneg %p100
      %p262 = pneg %p124
      %p263 = pneg %p121
      %p264 = pneg %p150
      %p265 = pneg %p147
      %s266 = smul.u32 8, %s19
      %p267 = scmp.lt.s32.totalorder %s266, 31
      %s268 = scalar_select %p267, %s266, 31
      %s269 = smul.addr %s268, 4
      %s270 = scalar_lea.vmem %s5, %s269
      %p271 = pneg %p176
      %p272 = pneg %p173
      %s273 = smul.u32 8, %s19
      %p274 = scmp.lt.s32.totalorder %s273, 31
      %s275 = scalar_select %p274, %s273, 31
      %s276 = smul.addr %s275, 8
      %s277 = scalar_lea.vmem %s6, %s276
      %p278 = pneg %p202
      %p279 = pneg %p199
      %s280 = smul.u32 8, %s19
      %p281 = scmp.lt.s32.totalorder %s280, 31
      %s282 = scalar_select %p281, %s280, 31
      %s283 = smul.addr %s282, 8
      %s284 = scalar_lea.vmem %s7, %s283
      %s285 = smul.u32 8, %s19
      %p286 = scmp.lt.s32.totalorder %s285, 31
      %s287 = scalar_select %p286, %s285, 31
      %s288 = smul.addr %s287, 4
      %s289 = scalar_lea.vmem %s0, %s288
      %s290 = smul.u32 8, %s19
      %s291 = smul.u32 8, %s19
      %p292 = scmp.lt.s32.totalorder %s291, 31
      %s293 = scalar_select %p292, %s291, 31
      %s294 = smul.addr %s293, 4
      %s295 = scalar_lea.vmem %s5, %s294
      %s296 = smul.u32 8, %s19
      %s297 = smul.u32 8, %s19
      %p298 = scmp.lt.s32.totalorder %s297, 31
      %s299 = scalar_select %p298, %s297, 31
      %s300 = smul.addr %s299, 8
      %s301 = scalar_lea.vmem %s6, %s300
      %s302 = smul.u32 8, %s19
      %s303 = smul.u32 8, %s19
      %p304 = scmp.lt.s32.totalorder %s303, 31
      %s305 = scalar_select %p304, %s303, 31
      %s306 = smul.addr %s305, 8
      %s307 = scalar_lea.vmem %s7, %s306
      %s308 = smul.u32 8, %s19
      %v310 = vld [vmem:[%s289] sm:$0xf]
      %v311 = vld [vmem:[%s289 + $0x4] sm:$0xf]
      %v312 = vld [vmem:[%s289 + $0x8] sm:$0xf]
      %v313 = vld [vmem:[%s289 + $0xc] sm:$0xf]
      %v314 = vld [vmem:[%s289 + $0x10] sm:$0xf]
      %v315 = vld [vmem:[%s289 + $0x14] sm:$0xf]
      %v316 = vld [vmem:[%s289 + $0x18] sm:$0xf]
      %v317 = vld [vmem:[%s289 + $0x1c] sm:$0xf]
      %v318 = vld [vmem:[%s1] sm:$0xf]
      %v319 = vld [vmem:[%s1 + $0x4] sm:$0xf]
      %v320 = vld [vmem:[%s1 + $0x8] sm:$0xf]
      %v321 = vld [vmem:[%s1 + $0xc] sm:$0xf]
      %v322 = vld [vmem:[%s1 + $0x10] sm:$0xf]
      %v323 = vld [vmem:[%s1 + $0x14] sm:$0xf]
      %v324 = vld [vmem:[%s1 + $0x18] sm:$0xf]
      %v325 = vld [vmem:[%s1 + $0x1c] sm:$0xf]
      %v326 = vld [vmem:[%s1 + $0x20] sm:$0xf]
      %v327 = vld [vmem:[%s1 + $0x24] sm:$0xf]
      %v328 = vld [vmem:[%s1 + $0x28] sm:$0xf]
      %v329 = vld [vmem:[%s1 + $0x2c] sm:$0xf]
      %v330 = vld [vmem:[%s1 + $0x30] sm:$0xf]
      %v331 = vld [vmem:[%s1 + $0x34] sm:$0xf]
      %v332 = vld [vmem:[%s1 + $0x38] sm:$0xf]
      %v333 = vld [vmem:[%s1 + $0x3c] sm:$0xf]
      %v334 = vld [vmem:[%s2] sm:$0x1]
      %v336 = vlaneseq
      %v337 = vshrl.u32 %v336, 7
      %v338 = vsub.s32 0, %v337
      %v339 = vrot.slane %v334, %v338
      %v349 = vunpack.c.l.b16 %v310
      %v350 = vunpack.c.l.b16 %v311
      %v351 = vunpack.c.l.b16 %v312
      %v352 = vunpack.c.l.b16 %v313
      %v353 = vunpack.c.l.b16 %v314
      %v354 = vunpack.c.l.b16 %v315
      %v355 = vunpack.c.l.b16 %v316
      %v356 = vunpack.c.l.b16 %v317
      %v357 = vpack.c.b16 %v350, %v349
      %v358 = vpack.c.b16 %v352, %v351
      %v359 = vpack.c.b16 %v354, %v353
      %v360 = vpack.c.b16 %v356, %v355
      %v381 = vunpack.c.l.b16 %v318
      %v382 = vunpack.c.l.b16 %v319
      %v383 = vunpack.c.l.b16 %v320
      %v384 = vunpack.c.l.b16 %v321
      %v385 = vunpack.c.l.b16 %v322
      %v386 = vunpack.c.l.b16 %v323
      %v387 = vunpack.c.l.b16 %v324
      %v388 = vunpack.c.l.b16 %v325
      %v389 = vunpack.c.l.b16 %v326
      %v390 = vunpack.c.l.b16 %v327
      %v391 = vunpack.c.l.b16 %v328
      %v392 = vunpack.c.l.b16 %v329
      %v393 = vunpack.c.l.b16 %v330
      %v394 = vunpack.c.l.b16 %v331
      %v395 = vunpack.c.l.b16 %v332
      %v396 = vunpack.c.l.b16 %v333
      %v397 = vpack.c.b16 %v382, %v381
      %v398 = vpack.c.b16 %v384, %v383
      %v399 = vpack.c.b16 %v386, %v385
      %v400 = vpack.c.b16 %v388, %v387
      %v401 = vpack.c.b16 %v390, %v389
      %v402 = vpack.c.b16 %v392, %v391
      %v403 = vpack.c.b16 %v394, %v393
      %v404 = vpack.c.b16 %v396, %v395
      %413 = vmatprep.subr.bf16.mxu0 0
      %414 = vmatpush1.bf16.msra.mxu0 %v397
      %415 = vmatprep.subr.bf16.mxu0 0
      %416 = vmatpush1.bf16.msra.mxu0 %v398
      %417 = vmatprep.subr.bf16.mxu0 0
      %418 = vmatpush1.bf16.msra.mxu0 %v399
      %419 = vmatprep.subr.bf16.mxu0 0
      %420 = vmatpush1.bf16.msra.mxu0 %v400
      %421 = vmatprep.subr.bf16.mxu0 0
      %422 = vmatpush1.bf16.msra.mxu0 %v401
      %423 = vmatprep.subr.bf16.mxu0 0
      %424 = vmatpush1.bf16.msra.mxu0 %v402
      %425 = vmatprep.subr.bf16.mxu0 0
      %426 = vmatpush1.bf16.msra.mxu0 %v403
      %427 = vmatprep.subr.bf16.mxu0 0
      %428 = vmatpush1.bf16.msra.mxu0 %v404
      %429 = vmatprep.subr.bf16.mxu0 0
      %430 = vmatpush1.bf16.msra.mxu0 0
      %431 = vmatprep.subr.bf16.mxu0 0
      %432 = vmatpush1.bf16.msra.mxu0 0
      %433 = vmatprep.subr.bf16.mxu0 0
      %434 = vmatpush1.bf16.msra.mxu0 0
      %435 = vmatprep.subr.bf16.mxu0 0
      %436 = vmatpush1.bf16.msra.mxu0 0
      %437 = vmatprep.subr.bf16.mxu0 0
      %438 = vmatpush1.bf16.msra.mxu0 0
      %439 = vmatprep.subr.bf16.mxu0 0
      %440 = vmatpush1.bf16.msra.mxu0 0
      %441 = vmatprep.subr.bf16.mxu0 0
      %442 = vmatpush1.bf16.msra.mxu0 0
      %443 = vmatprep.subr.bf16.mxu0 0
      %444 = vmatpush1.bf16.msra.mxu0 0
      %445 = vmatprep.mubr.bf16.mxu0 0
      %446 = vmatmul.mubr.bf16.gmra.mrb[0].mxu0 %v357
      %v447 = vpop.f32.mrb[0].mxu0
      %v448 = vadd.f32 %v339, %v447
      %v449 = vpop.f32.mrb[0].mxu0
      %v450 = vpop.f32.mrb[0].mxu0
      %v451 = vadd.f32 %v339, %v450
      %v452 = vpop.f32.mrb[0].mxu0
      %453 = vmatprep.mubr.bf16.mxu0 0
      %454 = vmatmul.mubr.bf16.gmra.mrb[0].mxu0 %v358
      %v455 = vpop.f32.mrb[0].mxu0
      %v456 = vadd.f32 %v339, %v455
      %v457 = vpop.f32.mrb[0].mxu0
      %v458 = vpop.f32.mrb[0].mxu0
      %v459 = vadd.f32 %v339, %v458
      %v460 = vpop.f32.mrb[0].mxu0
      %461 = vmatprep.mubr.bf16.mxu0 0
      %462 = vmatmul.mubr.bf16.gmra.mrb[0].mxu0 %v359
      %v463 = vpop.f32.mrb[0].mxu0
      %v464 = vadd.f32 %v339, %v463
      %v465 = vpop.f32.mrb[0].mxu0
      %v466 = vpop.f32.mrb[0].mxu0
      %v467 = vadd.f32 %v339, %v466
      %v468 = vpop.f32.mrb[0].mxu0
      %469 = vmatprep.mubr.bf16.mxu0 0
      %470 = vmatmul.mubr.bf16.gmra.mrb[0].mxu0 %v360
      %v471 = vpop.f32.mrb[0].mxu0
      %v472 = vadd.f32 %v339, %v471
      %v473 = vpop.f32.mrb[0].mxu0
      %v474 = vpop.f32.mrb[0].mxu0
      %v475 = vadd.f32 %v339, %v474
      %v476 = vpop.f32.mrb[0].mxu0
      %477 = vdwg.mxu0
      %v478 = vpack.c.bf16 %v451, %v448
      %v479 = vpack.c.bf16 %v459, %v456
      %v480 = vpack.c.bf16 %v467, %v464
      %v481 = vpack.c.bf16 %v475, %v472
      %v486 = vunpack.c.l.b16 %v478
      %v487 = vunpack.c.h.b16 %v478
      %v488 = vunpack.c.l.b16 %v479
      %v489 = vunpack.c.h.b16 %v479
      %v490 = vunpack.c.l.b16 %v480
      %v491 = vunpack.c.h.b16 %v480
      %v492 = vunpack.c.l.b16 %v481
      %v493 = vunpack.c.h.b16 %v481
      %v494 = vpack.c.b16 %v486, %v486
      %v495 = vpack.c.b16 %v487, %v487
      %v496 = vpack.c.b16 %v488, %v488
      %v497 = vpack.c.b16 %v489, %v489
      %v498 = vpack.c.b16 %v490, %v490
      %v499 = vpack.c.b16 %v491, %v491
      %v500 = vpack.c.b16 %v492, %v492
      %v501 = vpack.c.b16 %v493, %v493
      %510 = vst [vmem:[%s295] sm:$0xf] %v494
      %511 = vst [vmem:[%s295 + $0x4] sm:$0xf] %v495
      %512 = vst [vmem:[%s295 + $0x8] sm:$0xf] %v496
      %513 = vst [vmem:[%s295 + $0xc] sm:$0xf] %v497
      %514 = vst [vmem:[%s295 + $0x10] sm:$0xf] %v498
      %515 = vst [vmem:[%s295 + $0x14] sm:$0xf] %v499
      %516 = vst [vmem:[%s295 + $0x18] sm:$0xf] %v500
      %517 = vst [vmem:[%s295 + $0x1c] sm:$0xf] %v501
      %v518 = vld [vmem:[%s3] sm:$0x1]
      %v520 = vlaneseq
      %v521 = vshrl.u32 %v520, 7
      %v522 = vsub.s32 0, %v521
      %v523 = vrot.slane %v518, %v522
      %v525 = vmul.f32 %v448, %v523
      %v526 = vmul.f32 %v451, %v523
      %v527 = vmul.f32 %v456, %v523
      %v528 = vmul.f32 %v459, %v523
      %v529 = vmul.f32 %v464, %v523
      %v530 = vmul.f32 %v467, %v523
      %v531 = vmul.f32 %v472, %v523
      %v532 = vmul.f32 %v475, %v523
      %533 = vadd.xlane.f32.xlu0 %v525
      %v534 = vpop.xlane.xlu0 %533
      %535 = vadd.xlane.f32.xlu0 %v526
      %v536 = vpop.xlane.xlu0 %535
      %537 = vadd.xlane.f32.xlu0 %v527
      %v538 = vpop.xlane.xlu0 %537
      %539 = vadd.xlane.f32.xlu0 %v528
      %v540 = vpop.xlane.xlu0 %539
      %541 = vadd.xlane.f32.xlu0 %v529
      %v542 = vpop.xlane.xlu0 %541
      %543 = vadd.xlane.f32.xlu0 %v530
      %v544 = vpop.xlane.xlu0 %543
      %545 = vadd.xlane.f32.xlu0 %v531
      %v546 = vpop.xlane.xlu0 %545
      %547 = vadd.xlane.f32.xlu0 %v532
      %v548 = vpop.xlane.xlu0 %547
      %vm549 = vcmask 7168
      %550 = vst.msk [vmem:[%s301] sm:$0xff] %vm549, %v534
      %551 = vst.msk [vmem:[%s301 + $0x8] sm:$0xff] %vm549, %v536
      %552 = vst.msk [vmem:[%s301 + $0x10] sm:$0xff] %vm549, %v538
      %553 = vst.msk [vmem:[%s301 + $0x18] sm:$0xff] %vm549, %v540
      %554 = vst.msk [vmem:[%s301 + $0x20] sm:$0xff] %vm549, %v542
      %555 = vst.msk [vmem:[%s301 + $0x28] sm:$0xff] %vm549, %v544
      %556 = vst.msk [vmem:[%s301 + $0x30] sm:$0xff] %vm549, %v546
      %557 = vst.msk [vmem:[%s301 + $0x38] sm:$0xff] %vm549, %v548
      %v558 = vld [vmem:[%s4] sm:$0x1]
      %v560 = vlaneseq
      %v561 = vshrl.u32 %v560, 7
      %v562 = vsub.s32 0, %v561
      %v563 = vrot.slane %v558, %v562
      %v565 = vmul.f32 %v448, %v563
      %v566 = vmul.f32 %v451, %v563
      %v567 = vmul.f32 %v456, %v563
      %v568 = vmul.f32 %v459, %v563
      %v569 = vmul.f32 %v464, %v563
      %v570 = vmul.f32 %v467, %v563
      %v571 = vmul.f32 %v472, %v563
      %v572 = vmul.f32 %v475, %v563
      %573 = vadd.xlane.f32.xlu0 %v565
      %v574 = vpop.xlane.xlu0 %573
      %575 = vadd.xlane.f32.xlu0 %v566
      %v576 = vpop.xlane.xlu0 %575
      %577 = vadd.xlane.f32.xlu0 %v567
      %v578 = vpop.xlane.xlu0 %577
      %579 = vadd.xlane.f32.xlu0 %v568
      %v580 = vpop.xlane.xlu0 %579
      %581 = vadd.xlane.f32.xlu0 %v569
      %v582 = vpop.xlane.xlu0 %581
      %583 = vadd.xlane.f32.xlu0 %v570
      %v584 = vpop.xlane.xlu0 %583
      %585 = vadd.xlane.f32.xlu0 %v571
      %v586 = vpop.xlane.xlu0 %585
      %587 = vadd.xlane.f32.xlu0 %v572
      %v588 = vpop.xlane.xlu0 %587
      %589 = vst.msk [vmem:[%s307] sm:$0xff] %vm549, %v574
      %590 = vst.msk [vmem:[%s307 + $0x8] sm:$0xff] %vm549, %v576
      %591 = vst.msk [vmem:[%s307 + $0x10] sm:$0xff] %vm549, %v578
      %592 = vst.msk [vmem:[%s307 + $0x18] sm:$0xff] %vm549, %v580
      %593 = vst.msk [vmem:[%s307 + $0x20] sm:$0xff] %vm549, %v582
      %594 = vst.msk [vmem:[%s307 + $0x28] sm:$0xff] %vm549, %v584
      %595 = vst.msk [vmem:[%s307 + $0x30] sm:$0xff] %vm549, %v586
      %596 = vst.msk [vmem:[%s307 + $0x38] sm:$0xff] %vm549, %v588
      %s597 = smul.u32 8, %s19
      %p598 = scmp.lt.s32.totalorder %s597, 31
      %s599 = scalar_select %p598, %s597, 31
      %s600 = smul.addr %s599, 4
      %s601 = scalar_lea.vmem %s5, %s600
      %s602 = smul.u32 8, %s19
      %p603 = scmp.lt.s32.totalorder %s602, 31
      %s604 = scalar_select %p603, %s602, 31
      %s605 = smul.addr %s604, 8
      %s606 = scalar_lea.vmem %s6, %s605
      %s607 = smul.u32 8, %s19
      %p608 = scmp.lt.s32.totalorder %s607, 31
      %s609 = scalar_select %p608, %s607, 31
      %s610 = smul.addr %s609, 8
      %s611 = scalar_lea.vmem %s7, %s610
      // Predicated region
      $region41: #{gat_hgnnplus_forward.8} parent=39 // pred_check
        %p612 = pneg %p147
      $region42: #{gat_hgnnplus_forward.8} parent=39 // pred_check_branch
        %614 = sbr.rel (%p612) target = $region44
      $region43: #{gat_hgnnplus_forward.8} parent=39 // pred_region
        %s615 = smul.u32 8, %s19
      $region44: #{gat_hgnnplus_forward.8} parent=39 // pred_fallthru
        _
      // Predicated region
      $region45: #{gat_hgnnplus_forward.8} parent=39 // pred_check
        %p616 = pneg %p173
      $region46: #{gat_hgnnplus_forward.8} parent=39 // pred_check_branch
        %618 = sbr.rel (%p616) target = $region48
      $region47: #{gat_hgnnplus_forward.8} parent=39 // pred_region
        %s619 = smul.u32 8, %s19
      $region48: #{gat_hgnnplus_forward.8} parent=39 // pred_fallthru
        _
      // Predicated region
      $region49: #{gat_hgnnplus_forward.8} parent=39 // pred_check
        %p620 = pneg %p199
      $region50: #{gat_hgnnplus_forward.8} parent=39 // pred_check_branch
        %622 = sbr.rel (%p620) target = $region52
      $region51: #{gat_hgnnplus_forward.8} parent=39 // pred_region
        %s623 = smul.u32 8, %s19
      $region52: #{gat_hgnnplus_forward.8} parent=39 // pred_fallthru
        _
    $region40: #{gat_hgnnplus_forward.8} parent=5 // pred_fallthru
      _
    %p624 = scmp.le.s32.totalorder 2, %s14
    // Predicated region
    $region53: #{gat_hgnnplus_forward.8} parent=5 // pred_check
      %p625 = pneg %p624
    $region54: #{gat_hgnnplus_forward.8} parent=5 // pred_check_branch
      %627 = sbr.rel (%p625) target = $region56
    $region55: #{gat_hgnnplus_forward.8} parent=5 // pred_region
      %s628 = ssub.s32 %s14, 2
      // Predicated region
      $region57: #{gat_hgnnplus_forward.8} parent=55 // pred_check
        %p629 = pneg %p153
      $region58: #{gat_hgnnplus_forward.8} parent=55 // pred_check_branch
        %631 = sbr.rel (%p629) target = $region60
      $region59: #{gat_hgnnplus_forward.8} parent=55 // pred_region
        %s632 = smul.u32 8, %s20
        %p633 = scmp.lt.s32.totalorder %s632, 31
        %s634 = scalar_select %p633, %s632, 31
        %s635 = smul.addr %s634, 4
        %s636 = scalar_lea.vmem %s5, %s635
      $region60: #{gat_hgnnplus_forward.8} parent=55 // pred_fallthru
        _
      // Predicated region
      $region61: #{gat_hgnnplus_forward.8} parent=55 // pred_check
        %p637 = pneg %p179
      $region62: #{gat_hgnnplus_forward.8} parent=55 // pred_check_branch
        %639 = sbr.rel (%p637) target = $region64
      $region63: #{gat_hgnnplus_forward.8} parent=55 // pred_region
        %s640 = smul.u32 8, %s20
        %p641 = scmp.lt.s32.totalorder %s640, 31
        %s642 = scalar_select %p641, %s640, 31
        %s643 = smul.addr %s642, 8
        %s644 = scalar_lea.vmem %s6, %s643
      $region64: #{gat_hgnnplus_forward.8} parent=55 // pred_fallthru
        _
      // Predicated region
      $region65: #{gat_hgnnplus_forward.8} parent=55 // pred_check
        %p645 = pneg %p205
      $region66: #{gat_hgnnplus_forward.8} parent=55 // pred_check_branch
        %647 = sbr.rel (%p645) target = $region68
      $region67: #{gat_hgnnplus_forward.8} parent=55 // pred_region
        %s648 = smul.u32 8, %s20
        %p649 = scmp.lt.s32.totalorder %s648, 31
        %s650 = scalar_select %p649, %s648, 31
        %s651 = smul.addr %s650, 8
        %s652 = scalar_lea.vmem %s7, %s651
      $region68: #{gat_hgnnplus_forward.8} parent=55 // pred_fallthru
        _
    $region56: #{gat_hgnnplus_forward.8} parent=5 // pred_fallthru
      _
  $region6: #{gat_hgnnplus_forward.8} parent=0 // loop_footer
    %s18 = sadd.s32 1, %s14
  $region7: #{gat_hgnnplus_forward.8} parent=0 // loop_footer_branch
    %13 = sbr.rel target = $region3
  $region8: #{gat_hgnnplus_forward.8} parent=0 // loop_exit
    _

// kernel: gat_hgnnplus_forward.11
$region0: #{gat_hgnnplus_forward.11}
  #allocation0 [shape = 'u32[]', space=smem, size = 0x4, offset = 0x4, fixed_abs, tag = 'smem constant byte address 0x4 - core index']
  #allocation1 [shape = 'u32[144,128]{1,0:T(1,128)}', space=vmem, size = 0x12000, scoped, tag = 'internal scratch']
  #allocation2 [shape = 'f32[64,128]{1,0:T(8,128)}', space=vmem, size = 0x8000, scoped, tag = 'scratch operand']
  %s0 = inlined_call_operand.vmem [shape: bf16[256,128], index: 0, kind: input, shape index: {}]
  %s1 = inlined_call_operand.vmem [shape: bf16[128,128], index: 1, kind: input, shape index: {}]
  %s2 = inlined_call_operand.vmem [shape: f32[256,1], index: 2, kind: input, shape index: {}]
  %s3 = inlined_call_operand.vmem [shape: f32[256,128], index: 3, kind: input, shape index: {}]
  %s4 = inlined_call_operand.vmem [shape: bf16[256,128], index: 4, kind: output, shape index: {}]
  %s5 = sld [smem:[#allocation0]]
  $region57: #{gat_hgnnplus_forward.11} parent=0
    _
  %s7 = ssub.s32 1, %s5
  %s8 = scalar_select 0, %s7, %s5
  loop: start=0, step=1, limit=6
  $region2: #{gat_hgnnplus_forward.11} parent=0 // loop_pre_header
    _
  $region3: #{gat_hgnnplus_forward.11} parent=0 // loop_header
    %s10 = sphi 0, %s14
    %p11 = scmp.ge.s32.totalorder %s10, 6
    %s17 = sphi 0, %s29
    %s18 = sphi 0, %s25
    %s19 = sphi 0, %s17
    %s20 = sphi 0, %s18
    %s21 = sphi 0, %s19
    %s22 = sphi 0, %s20
    %s34 = sphi 0, %s36
    %s37 = sphi 0, %s34
    %s38 = sphi 0, %s37
    %s54 = sphi 0, %s38
    %s60 = sphi 0, %s62
    %s63 = sphi 0, %s60
    %s64 = sphi 0, %s63
    %s80 = sphi 0, %s64
    %s86 = sphi 0, %s88
    %s89 = sphi 0, %s86
    %s90 = sphi 0, %s89
    %s106 = sphi 0, %s90
    %s112 = sphi 0, %s114
    %s115 = sphi 0, %s112
    %s116 = sphi 0, %s115
    %s132 = sphi 0, %s116
    %s138 = sphi 0, %s140
    %s141 = sphi 0, %s138
    %s142 = sphi 0, %s141
    %s158 = sphi 0, %s142
  $region4: #{gat_hgnnplus_forward.11} parent=0 // loop_header_branch
    %13 = sbr.rel (%p11) target = $region8
  $region5: #{gat_hgnnplus_forward.11} parent=0 // loop_body
    %s15 = ssub.s32 %s10, 1
    %s16 = ssub.s32 %s10, 2
    %s23 = sadd.s32 1, %s18
    %p24 = scmp.ge.s32.totalorder %s23, 1
    %s25 = scalar_select %p24, 0, %s23
    %s26 = sadd.s32 1, %s17
    %s27 = scalar_select %p24, %s26, %s17
    %p28 = scmp.ge.s32.totalorder %s27, 4
    %s29 = scalar_select %p28, 0, %s27
    %s30 = ssub.s32 %s17, %s29
    %s31 = ssub.s32 %s18, %s25
    %s32 = sor.u32 %s30, %s31
    %p33 = scmp.eq.s32.totalorder %s32, 0
    %s35 = sadd.s32 %s34, 1
    %s36 = scalar_select %p33, %s34, %s35
    %p39 = pneg %p33
    %p40 = scmp.eq.s32.totalorder %s10, 3
    %p41 = por %p39, %p40
    %p42 = scmp.ne.s32.totalorder %s34, %s37
    %p43 = scmp.eq.s32.totalorder %s10, 0
    %p44 = por %p42, %p43
    %p45 = scmp.ne.s32.totalorder %s34, %s37
    %p46 = scmp.eq.s32.totalorder %s15, 3
    %p47 = por %p45, %p46
    %p48 = scmp.ne.s32.totalorder %s37, %s38
    %p49 = scmp.eq.s32.totalorder %s15, 0
    %p50 = por %p48, %p49
    %p51 = scmp.ne.s32.totalorder %s37, %s38
    %p52 = scmp.eq.s32.totalorder %s16, 3
    %p53 = por %p51, %p52
    %p55 = scmp.ne.s32.totalorder %s38, %s54
    %p56 = scmp.eq.s32.totalorder %s16, 0
    %p57 = por %p55, %p56
    %s58 = ssub.s32 %s18, %s25
    %p59 = scmp.eq.s32.totalorder %s58, 0
    %s61 = sadd.s32 %s60, 1
    %s62 = scalar_select %p59, %s60, %s61
    %p65 = pneg %p59
    %p66 = scmp.eq.s32.totalorder %s10, 3
    %p67 = por %p65, %p66
    %p68 = scmp.ne.s32.totalorder %s60, %s63
    %p69 = scmp.eq.s32.totalorder %s10, 0
    %p70 = por %p68, %p69
    %p71 = scmp.ne.s32.totalorder %s60, %s63
    %p72 = scmp.eq.s32.totalorder %s15, 3
    %p73 = por %p71, %p72
    %p74 = scmp.ne.s32.totalorder %s63, %s64
    %p75 = scmp.eq.s32.totalorder %s15, 0
    %p76 = por %p74, %p75
    %p77 = scmp.ne.s32.totalorder %s63, %s64
    %p78 = scmp.eq.s32.totalorder %s16, 3
    %p79 = por %p77, %p78
    %p81 = scmp.ne.s32.totalorder %s64, %s80
    %p82 = scmp.eq.s32.totalorder %s16, 0
    %p83 = por %p81, %p82
    %s84 = ssub.s32 %s17, %s29
    %p85 = scmp.eq.s32.totalorder %s84, 0
    %s87 = sadd.s32 %s86, 1
    %s88 = scalar_select %p85, %s86, %s87
    %p91 = pneg %p85
    %p92 = scmp.eq.s32.totalorder %s10, 3
    %p93 = por %p91, %p92
    %p94 = scmp.ne.s32.totalorder %s86, %s89
    %p95 = scmp.eq.s32.totalorder %s10, 0
    %p96 = por %p94, %p95
    %p97 = scmp.ne.s32.totalorder %s86, %s89
    %p98 = scmp.eq.s32.totalorder %s15, 3
    %p99 = por %p97, %p98
    %p100 = scmp.ne.s32.totalorder %s89, %s90
    %p101 = scmp.eq.s32.totalorder %s15, 0
    %p102 = por %p100, %p101
    %p103 = scmp.ne.s32.totalorder %s89, %s90
    %p104 = scmp.eq.s32.totalorder %s16, 3
    %p105 = por %p103, %p104
    %p107 = scmp.ne.s32.totalorder %s90, %s106
    %p108 = scmp.eq.s32.totalorder %s16, 0
    %p109 = por %p107, %p108
    %s110 = ssub.s32 %s17, %s29
    %p111 = scmp.eq.s32.totalorder %s110, 0
    %s113 = sadd.s32 %s112, 1
    %s114 = scalar_select %p111, %s112, %s113
    %p117 = pneg %p111
    %p118 = scmp.eq.s32.totalorder %s10, 3
    %p119 = por %p117, %p118
    %p120 = scmp.ne.s32.totalorder %s112, %s115
    %p121 = scmp.eq.s32.totalorder %s10, 0
    %p122 = por %p120, %p121
    %p123 = scmp.ne.s32.totalorder %s112, %s115
    %p124 = scmp.eq.s32.totalorder %s15, 3
    %p125 = por %p123, %p124
    %p126 = scmp.ne.s32.totalorder %s115, %s116
    %p127 = scmp.eq.s32.totalorder %s15, 0
    %p128 = por %p126, %p127
    %p129 = scmp.ne.s32.totalorder %s115, %s116
    %p130 = scmp.eq.s32.totalorder %s16, 3
    %p131 = por %p129, %p130
    %p133 = scmp.ne.s32.totalorder %s116, %s132
    %p134 = scmp.eq.s32.totalorder %s16, 0
    %p135 = por %p133, %p134
    %s136 = ssub.s32 %s17, %s29
    %p137 = scmp.eq.s32.totalorder %s136, 0
    %s139 = sadd.s32 %s138, 1
    %s140 = scalar_select %p137, %s138, %s139
    %p143 = pneg %p137
    %p144 = scmp.eq.s32.totalorder %s10, 3
    %p145 = por %p143, %p144
    %p146 = scmp.ne.s32.totalorder %s138, %s141
    %p147 = scmp.eq.s32.totalorder %s10, 0
    %p148 = por %p146, %p147
    %p149 = scmp.ne.s32.totalorder %s138, %s141
    %p150 = scmp.eq.s32.totalorder %s15, 3
    %p151 = por %p149, %p150
    %p152 = scmp.ne.s32.totalorder %s141, %s142
    %p153 = scmp.eq.s32.totalorder %s15, 0
    %p154 = por %p152, %p153
    %p155 = scmp.ne.s32.totalorder %s141, %s142
    %p156 = scmp.eq.s32.totalorder %s16, 3
    %p157 = por %p155, %p156
    %p159 = scmp.ne.s32.totalorder %s142, %s158
    %p160 = scmp.eq.s32.totalorder %s16, 0
    %p161 = por %p159, %p160
    %p162 = scmp.le.s32.totalorder 1, %s10
    %p163 = scmp.lt.s32.totalorder %s10, 5
    %p164 = pnand %p162, %p163
    %p165 = pneg %p164
    // Predicated region
    $region9: #{gat_hgnnplus_forward.11} parent=5 // pred_check
      _
    $region10: #{gat_hgnnplus_forward.11} parent=5 // pred_check_branch
      %167 = sbr.rel (%p164) target = $region12
    $region11: #{gat_hgnnplus_forward.11} parent=5 // pred_region
      %s168 = ssub.s32 %s10, 1
      // Predicated region
      $region13: #{gat_hgnnplus_forward.11} parent=11 // pred_check
        %p169 = pneg %p76
      $region14: #{gat_hgnnplus_forward.11} parent=11 // pred_check_branch
        %171 = sbr.rel (%p169) target = $region16
      $region15: #{gat_hgnnplus_forward.11} parent=11 // pred_region
        %s172 = smul.u32 16, %s20
        %p173 = scmp.lt.s32.totalorder %s172, 15
        %s174 = scalar_select %p173, %s172, 15
        %s175 = smul.addr %s174, 4
        %s176 = scalar_lea.vmem %s1, %s175
        %s177 = smul.u32 16, %s20
      $region16: #{gat_hgnnplus_forward.11} parent=11 // pred_fallthru
        _
    $region12: #{gat_hgnnplus_forward.11} parent=5 // pred_fallthru
      _
    %p178 = scmp.lt.s32.totalorder %s10, 4
    // Predicated region
    $region17: #{gat_hgnnplus_forward.11} parent=5 // pred_check
      %p179 = pneg %p178
    $region18: #{gat_hgnnplus_forward.11} parent=5 // pred_check_branch
      %181 = sbr.rel (%p179) target = $region20
    $region19: #{gat_hgnnplus_forward.11} parent=5 // pred_region
      // Predicated region
      $region21: #{gat_hgnnplus_forward.11} parent=19 // pred_check
        %p182 = pneg %p44
      $region22: #{gat_hgnnplus_forward.11} parent=19 // pred_check_branch
        %184 = sbr.rel (%p182) target = $region24
      $region23: #{gat_hgnnplus_forward.11} parent=19 // pred_region
        %s185 = smul.u32 8, %s17
        %p186 = scmp.lt.s32.totalorder %s185, 31
        %s187 = scalar_select %p186, %s185, 31
        %p188 = scmp.lt.s32.totalorder %s18, 0
        %s189 = scalar_select %p188, %s18, 0
        %s190 = sadd.s32 %s189, %s187
        %s191 = smul.addr %s190, 4
        %s192 = scalar_lea.vmem %s0, %s191
        %s193 = smul.u32 8, %s17
      $region24: #{gat_hgnnplus_forward.11} parent=19 // pred_fallthru
        _
      // Predicated region
      $region25: #{gat_hgnnplus_forward.11} parent=19 // pred_check
        %p194 = pneg %p96
      $region26: #{gat_hgnnplus_forward.11} parent=19 // pred_check_branch
        %196 = sbr.rel (%p194) target = $region28
      $region27: #{gat_hgnnplus_forward.11} parent=19 // pred_region
        %s197 = smul.u32 8, %s17
        %p198 = scmp.lt.s32.totalorder %s197, 31
        %s199 = scalar_select %p198, %s197, 31
        %s200 = smul.addr %s199, 8
        %s201 = scalar_lea.vmem %s2, %s200
        %s202 = smul.u32 8, %s17
      $region28: #{gat_hgnnplus_forward.11} parent=19 // pred_fallthru
        _
      // Predicated region
      $region29: #{gat_hgnnplus_forward.11} parent=19 // pred_check
        %p203 = pneg %p122
      $region30: #{gat_hgnnplus_forward.11} parent=19 // pred_check_branch
        %205 = sbr.rel (%p203) target = $region32
      $region31: #{gat_hgnnplus_forward.11} parent=19 // pred_region
        %s206 = smul.u32 8, %s17
        %p207 = scmp.lt.s32.totalorder %s206, 31
        %s208 = scalar_select %p207, %s206, 31
        %s209 = smul.addr %s208, 8
        %s210 = scalar_lea.vmem %s3, %s209
        %s211 = smul.u32 8, %s17
      $region32: #{gat_hgnnplus_forward.11} parent=19 // pred_fallthru
        _
    $region20: #{gat_hgnnplus_forward.11} parent=5 // pred_fallthru
      _
    %p212 = scmp.le.s32.totalorder 1, %s10
    %p213 = scmp.lt.s32.totalorder %s10, 5
    %p214 = pnand %p212, %p213
    %p215 = pneg %p214
    // Predicated region
    $region33: #{gat_hgnnplus_forward.11} parent=5 // pred_check
      _
    $region34: #{gat_hgnnplus_forward.11} parent=5 // pred_check_branch
      %217 = sbr.rel (%p214) target = $region36
    $region35: #{gat_hgnnplus_forward.11} parent=5 // pred_region
      %s218 = ssub.s32 %s10, 1
      %s219 = smul.u32 8, %s19
      %p220 = scmp.lt.s32.totalorder %s219, 31
      %s221 = scalar_select %p220, %s219, 31
      %p222 = scmp.lt.s32.totalorder %s20, 0
      %s223 = scalar_select %p222, %s20, 0
      %s224 = sadd.s32 %s223, %s221
      %s225 = smul.addr %s224, 4
      %s226 = scalar_lea.vmem %s0, %s225
      %p227 = pneg %p50
      %p228 = pneg %p47
      %s229 = smul.u32 16, %s20
      %p230 = scmp.lt.s32.totalorder %s229, 15
      %s231 = scalar_select %p230, %s229, 15
      %s232 = smul.addr %s231, 4
      %s233 = scalar_lea.vmem %s1, %s232
      %p234 = pneg %p76
      %p235 = pneg %p73
      %s236 = smul.u32 8, %s19
      %p237 = scmp.lt.s32.totalorder %s236, 31
      %s238 = scalar_select %p237, %s236, 31
      %s239 = smul.addr %s238, 8
      %s240 = scalar_lea.vmem %s2, %s239
      %p241 = pneg %p102
      %p242 = pneg %p99
      %s243 = smul.u32 8, %s19
      %p244 = scmp.lt.s32.totalorder %s243, 31
      %s245 = scalar_select %p244, %s243, 31
      %s246 = smul.addr %s245, 8
      %s247 = scalar_lea.vmem %s3, %s246
      %p248 = pneg %p128
      %p249 = pneg %p125
      %p250 = pneg %p154
      %p251 = pneg %p151
      %s252 = smul.u32 8, %s19
      %p253 = scmp.lt.s32.totalorder %s252, 31
      %s254 = scalar_select %p253, %s252, 31
      %s255 = smul.addr %s254, 4
      %s256 = scalar_lea.vmem %s4, %s255
      %s257 = smul.u32 8, %s19
      %p258 = scmp.lt.s32.totalorder %s257, 31
      %s259 = scalar_select %p258, %s257, 31
      %p260 = scmp.lt.s32.totalorder %s20, 0
      %s261 = scalar_select %p260, %s20, 0
      %s262 = sadd.s32 %s261, %s259
      %s263 = smul.addr %s262, 4
      %s264 = scalar_lea.vmem %s0, %s263
      %s265 = smul.u32 8, %s19
      %s266 = smul.u32 16, %s20
      %p267 = scmp.lt.s32.totalorder %s266, 15
      %s268 = scalar_select %p267, %s266, 15
      %s269 = smul.addr %s268, 4
      %s270 = scalar_lea.vmem %s1, %s269
      %s271 = smul.u32 16, %s20
      %s272 = smul.u32 8, %s19
      %p273 = scmp.lt.s32.totalorder %s272, 31
      %s274 = scalar_select %p273, %s272, 31
      %s275 = smul.addr %s274, 8
      %s276 = scalar_lea.vmem %s2, %s275
      %s277 = smul.u32 8, %s19
      %s278 = smul.u32 8, %s19
      %p279 = scmp.lt.s32.totalorder %s278, 31
      %s280 = scalar_select %p279, %s278, 31
      %s281 = smul.addr %s280, 8
      %s282 = scalar_lea.vmem %s3, %s281
      %s283 = smul.u32 8, %s19
      %s284 = smul.u32 8, %s19
      %p285 = scmp.lt.s32.totalorder %s284, 31
      %s286 = scalar_select %p285, %s284, 31
      %s287 = smul.addr %s286, 4
      %s288 = scalar_lea.vmem %s4, %s287
      %s289 = smul.u32 8, %s19
      %p291 = scmp.eq.s32.totalorder %s20, 0
      // Predicated region
      $region37: #{gat_hgnnplus_forward.11} parent=35 // pred_check
        %p292 = pneg %p291
      $region38: #{gat_hgnnplus_forward.11} parent=35 // pred_check_branch
        %294 = sbr.rel (%p292) target = $region40
      $region39: #{gat_hgnnplus_forward.11} parent=35 // pred_region
        %295 = vst [vmem:[#allocation2] sm:$0xff] 0.0
        %296 = vst [vmem:[#allocation2 + $0x8] sm:$0xff] 0.0
        %297 = vst [vmem:[#allocation2 + $0x10] sm:$0xff] 0.0
        %298 = vst [vmem:[#allocation2 + $0x18] sm:$0xff] 0.0
        %299 = vst [vmem:[#allocation2 + $0x20] sm:$0xff] 0.0
        %300 = vst [vmem:[#allocation2 + $0x28] sm:$0xff] 0.0
        %301 = vst [vmem:[#allocation2 + $0x30] sm:$0xff] 0.0
        %302 = vst [vmem:[#allocation2 + $0x38] sm:$0xff] 0.0
      $region40: #{gat_hgnnplus_forward.11} parent=35 // pred_fallthru
        _
      %v303 = vld [vmem:[#allocation2] sm:$0xff]
      %v304 = vld [vmem:[#allocation2 + $0x8] sm:$0xff]
      %v305 = vld [vmem:[#allocation2 + $0x10] sm:$0xff]
      %v306 = vld [vmem:[#allocation2 + $0x18] sm:$0xff]
      %v307 = vld [vmem:[#allocation2 + $0x20] sm:$0xff]
      %v308 = vld [vmem:[#allocation2 + $0x28] sm:$0xff]
      %v309 = vld [vmem:[#allocation2 + $0x30] sm:$0xff]
      %v310 = vld [vmem:[#allocation2 + $0x38] sm:$0xff]
      %v311 = vld [vmem:[%s264] sm:$0xf]
      %v312 = vld [vmem:[%s264 + $0x4] sm:$0xf]
      %v313 = vld [vmem:[%s264 + $0x8] sm:$0xf]
      %v314 = vld [vmem:[%s264 + $0xc] sm:$0xf]
      %v315 = vld [vmem:[%s264 + $0x10] sm:$0xf]
      %v316 = vld [vmem:[%s264 + $0x14] sm:$0xf]
      %v317 = vld [vmem:[%s264 + $0x18] sm:$0xf]
      %v318 = vld [vmem:[%s264 + $0x1c] sm:$0xf]
      %v319 = vld [vmem:[%s270] sm:$0xf]
      %v320 = vld [vmem:[%s270 + $0x4] sm:$0xf]
      %v321 = vld [vmem:[%s270 + $0x8] sm:$0xf]
      %v322 = vld [vmem:[%s270 + $0xc] sm:$0xf]
      %v323 = vld [vmem:[%s270 + $0x10] sm:$0xf]
      %v324 = vld [vmem:[%s270 + $0x14] sm:$0xf]
      %v325 = vld [vmem:[%s270 + $0x18] sm:$0xf]
      %v326 = vld [vmem:[%s270 + $0x1c] sm:$0xf]
      %v327 = vld [vmem:[%s270 + $0x20] sm:$0xf]
      %v328 = vld [vmem:[%s270 + $0x24] sm:$0xf]
      %v329 = vld [vmem:[%s270 + $0x28] sm:$0xf]
      %v330 = vld [vmem:[%s270 + $0x2c] sm:$0xf]
      %v331 = vld [vmem:[%s270 + $0x30] sm:$0xf]
      %v332 = vld [vmem:[%s270 + $0x34] sm:$0xf]
      %v333 = vld [vmem:[%s270 + $0x38] sm:$0xf]
      %v334 = vld [vmem:[%s270 + $0x3c] sm:$0xf]
      %v343 = vunpack.c.l.b16 %v311
      %v344 = vunpack.c.l.b16 %v312
      %v345 = vunpack.c.l.b16 %v313
      %v346 = vunpack.c.l.b16 %v314
      %v347 = vunpack.c.l.b16 %v315
      %v348 = vunpack.c.l.b16 %v316
      %v349 = vunpack.c.l.b16 %v317
      %v350 = vunpack.c.l.b16 %v318
      %v351 = vpack.c.b16 %v344, %v343
      %v352 = vpack.c.b16 %v346, %v345
      %v353 = vpack.c.b16 %v348, %v347
      %v354 = vpack.c.b16 %v350, %v349
      %v375 = vunpack.c.l.b16 %v319
      %v376 = vunpack.c.l.b16 %v320
      %v377 = vunpack.c.l.b16 %v321
      %v378 = vunpack.c.l.b16 %v322
      %v379 = vunpack.c.l.b16 %v323
      %v380 = vunpack.c.l.b16 %v324
      %v381 = vunpack.c.l.b16 %v325
      %v382 = vunpack.c.l.b16 %v326
      %v383 = vunpack.c.l.b16 %v327
      %v384 = vunpack.c.l.b16 %v328
      %v385 = vunpack.c.l.b16 %v329
      %v386 = vunpack.c.l.b16 %v330
      %v387 = vunpack.c.l.b16 %v331
      %v388 = vunpack.c.l.b16 %v332
      %v389 = vunpack.c.l.b16 %v333
      %v390 = vunpack.c.l.b16 %v334
      %v391 = vpack.c.b16 %v376, %v375
      %v392 = vpack.c.b16 %v378, %v377
      %v393 = vpack.c.b16 %v380, %v379
      %v394 = vpack.c.b16 %v382, %v381
      %v395 = vpack.c.b16 %v384, %v383
      %v396 = vpack.c.b16 %v386, %v385
      %v397 = vpack.c.b16 %v388, %v387
      %v398 = vpack.c.b16 %v390, %v389
      %407 = vmatprep.subr.bf16.mxu0 0
      %408 = vmatpush1.bf16.msra.mxu0 %v391
      %409 = vmatprep.subr.bf16.mxu0 0
      %410 = vmatpush1.bf16.msra.mxu0 %v392
      %411 = vmatprep.subr.bf16.mxu0 0
      %412 = vmatpush1.bf16.msra.mxu0 %v393
      %413 = vmatprep.subr.bf16.mxu0 0
      %414 = vmatpush1.bf16.msra.mxu0 %v394
      %415 = vmatprep.subr.bf16.mxu0 0
      %416 = vmatpush1.bf16.msra.mxu0 %v395
      %417 = vmatprep.subr.bf16.mxu0 0
      %418 = vmatpush1.bf16.msra.mxu0 %v396
      %419 = vmatprep.subr.bf16.mxu0 0
      %420 = vmatpush1.bf16.msra.mxu0 %v397
      %421 = vmatprep.subr.bf16.mxu0 0
      %422 = vmatpush1.bf16.msra.mxu0 %v398
      %423 = vmatprep.subr.bf16.mxu0 0
      %424 = vmatpush1.bf16.msra.mxu0 0
      %425 = vmatprep.subr.bf16.mxu0 0
      %426 = vmatpush1.bf16.msra.mxu0 0
      %427 = vmatprep.subr.bf16.mxu0 0
      %428 = vmatpush1.bf16.msra.mxu0 0
      %429 = vmatprep.subr.bf16.mxu0 0
      %430 = vmatpush1.bf16.msra.mxu0 0
      %431 = vmatprep.subr.bf16.mxu0 0
      %432 = vmatpush1.bf16.msra.mxu0 0
      %433 = vmatprep.subr.bf16.mxu0 0
      %434 = vmatpush1.bf16.msra.mxu0 0
      %435 = vmatprep.subr.bf16.mxu0 0
      %436 = vmatpush1.bf16.msra.mxu0 0
      %437 = vmatprep.subr.bf16.mxu0 0
      %438 = vmatpush1.bf16.msra.mxu0 0
      %439 = vmatprep.mubr.bf16.mxu0 0
      %440 = vmatmul.mubr.bf16.gmra.mrb[0].mxu0 %v351
      %v441 = vpop.f32.mrb[0].mxu0
      %v442 = vadd.f32 0.0, %v441
      %v443 = vpop.f32.mrb[0].mxu0
      %v444 = vpop.f32.mrb[0].mxu0
      %v445 = vadd.f32 0.0, %v444
      %v446 = vpop.f32.mrb[0].mxu0
      %447 = vmatprep.mubr.bf16.mxu0 0
      %448 = vmatmul.mubr.bf16.gmra.mrb[0].mxu0 %v352
      %v449 = vpop.f32.mrb[0].mxu0
      %v450 = vadd.f32 0.0, %v449
      %v451 = vpop.f32.mrb[0].mxu0
      %v452 = vpop.f32.mrb[0].mxu0
      %v453 = vadd.f32 0.0, %v452
      %v454 = vpop.f32.mrb[0].mxu0
      %455 = vmatprep.mubr.bf16.mxu0 0
      %456 = vmatmul.mubr.bf16.gmra.mrb[0].mxu0 %v353
      %v457 = vpop.f32.mrb[0].mxu0
      %v458 = vadd.f32 0.0, %v457
      %v459 = vpop.f32.mrb[0].mxu0
      %v460 = vpop.f32.mrb[0].mxu0
      %v461 = vadd.f32 0.0, %v460
      %v462 = vpop.f32.mrb[0].mxu0
      %463 = vmatprep.mubr.bf16.mxu0 0
      %464 = vmatmul.mubr.bf16.gmra.mrb[0].mxu0 %v354
      %v465 = vpop.f32.mrb[0].mxu0
      %v466 = vadd.f32 0.0, %v465
      %v467 = vpop.f32.mrb[0].mxu0
      %v468 = vpop.f32.mrb[0].mxu0
      %v469 = vadd.f32 0.0, %v468
      %v470 = vpop.f32.mrb[0].mxu0
      %471 = vdwg.mxu0
      %v472 = vadd.f32 %v303, %v442
      %v473 = vadd.f32 %v304, %v445
      %v474 = vadd.f32 %v305, %v450
      %v475 = vadd.f32 %v306, %v453
      %v476 = vadd.f32 %v307, %v458
      %v477 = vadd.f32 %v308, %v461
      %v478 = vadd.f32 %v309, %v466
      %v479 = vadd.f32 %v310, %v469
      %480 = vst [vmem:[#allocation2] sm:$0xff] %v472
      %481 = vst [vmem:[#allocation2 + $0x8] sm:$0xff] %v473
      %482 = vst [vmem:[#allocation2 + $0x10] sm:$0xff] %v474
      %483 = vst [vmem:[#allocation2 + $0x18] sm:$0xff] %v475
      %484 = vst [vmem:[#allocation2 + $0x20] sm:$0xff] %v476
      %485 = vst [vmem:[#allocation2 + $0x28] sm:$0xff] %v477
      %486 = vst [vmem:[#allocation2 + $0x30] sm:$0xff] %v478
      %487 = vst [vmem:[#allocation2 + $0x38] sm:$0xff] %v479
      // Predicated region
      $region41: #{gat_hgnnplus_forward.11} parent=35 // pred_check
        %p488 = pneg %p291
      $region42: #{gat_hgnnplus_forward.11} parent=35 // pred_check_branch
        %490 = sbr.rel (%p488) target = $region44
      $region43: #{gat_hgnnplus_forward.11} parent=35 // pred_region
        %v491 = vld [vmem:[#allocation2] sm:$0xff]
        %v492 = vld [vmem:[#allocation2 + $0x8] sm:$0xff]
        %v493 = vld [vmem:[#allocation2 + $0x10] sm:$0xff]
        %v494 = vld [vmem:[#allocation2 + $0x18] sm:$0xff]
        %v495 = vld [vmem:[#allocation2 + $0x20] sm:$0xff]
        %v496 = vld [vmem:[#allocation2 + $0x28] sm:$0xff]
        %v497 = vld [vmem:[#allocation2 + $0x30] sm:$0xff]
        %v498 = vld [vmem:[#allocation2 + $0x38] sm:$0xff]
        %v499 = vld [vmem:[%s276] sm:$0xff]
        %v500 = vld [vmem:[%s276 + $0x8] sm:$0xff]
        %v501 = vld [vmem:[%s276 + $0x10] sm:$0xff]
        %v502 = vld [vmem:[%s276 + $0x18] sm:$0xff]
        %v503 = vld [vmem:[%s276 + $0x20] sm:$0xff]
        %v504 = vld [vmem:[%s276 + $0x28] sm:$0xff]
        %v505 = vld [vmem:[%s276 + $0x30] sm:$0xff]
        %v506 = vld [vmem:[%s276 + $0x38] sm:$0xff]
        %508 = vset.pattern.permute.xlu0 0
        %509 = vperm.xlu0 %508, %v499
        %v510 = vpop.permute.xlu0 %509
        %513 = vset.pattern.permute.xlu0 0
        %514 = vperm.xlu0 %513, %v500
        %v515 = vpop.permute.xlu0 %514
        %518 = vset.pattern.permute.xlu0 0
        %519 = vperm.xlu0 %518, %v501
        %v520 = vpop.permute.xlu0 %519
        %523 = vset.pattern.permute.xlu0 0
        %524 = vperm.xlu0 %523, %v502
        %v525 = vpop.permute.xlu0 %524
        %528 = vset.pattern.permute.xlu0 0
        %529 = vperm.xlu0 %528, %v503
        %v530 = vpop.permute.xlu0 %529
        %533 = vset.pattern.permute.xlu0 0
        %534 = vperm.xlu0 %533, %v504
        %v535 = vpop.permute.xlu0 %534
        %538 = vset.pattern.permute.xlu0 0
        %539 = vperm.xlu0 %538, %v505
        %v540 = vpop.permute.xlu0 %539
        %543 = vset.pattern.permute.xlu0 0
        %544 = vperm.xlu0 %543, %v506
        %v545 = vpop.permute.xlu0 %544
        %v547 = vmul.f32 %v491, %v510
        %v548 = vmul.f32 %v492, %v515
        %v549 = vmul.f32 %v493, %v520
        %v550 = vmul.f32 %v494, %v525
        %v551 = vmul.f32 %v495, %v530
        %v552 = vmul.f32 %v496, %v535
        %v553 = vmul.f32 %v497, %v540
        %v554 = vmul.f32 %v498, %v545
        %v555 = vld [vmem:[%s282] sm:$0xff]
        %v556 = vld [vmem:[%s282 + $0x8] sm:$0xff]
        %v557 = vld [vmem:[%s282 + $0x10] sm:$0xff]
        %v558 = vld [vmem:[%s282 + $0x18] sm:$0xff]
        %v559 = vld [vmem:[%s282 + $0x20] sm:$0xff]
        %v560 = vld [vmem:[%s282 + $0x28] sm:$0xff]
        %v561 = vld [vmem:[%s282 + $0x30] sm:$0xff]
        %v562 = vld [vmem:[%s282 + $0x38] sm:$0xff]
        %v563 = vadd.f32 %v547, %v555
        %v564 = vadd.f32 %v548, %v556
        %v565 = vadd.f32 %v549, %v557
        %v566 = vadd.f32 %v550, %v558
        %v567 = vadd.f32 %v551, %v559
        %v568 = vadd.f32 %v552, %v560
        %v569 = vadd.f32 %v553, %v561
        %v570 = vadd.f32 %v554, %v562
        %v571 = vmul.f32 %v563, 0.5
        %v572 = vmul.f32 %v564, 0.5
        %v573 = vmul.f32 %v565, 0.5
        %v574 = vmul.f32 %v566, 0.5
        %v575 = vmul.f32 %v567, 0.5
        %v576 = vmul.f32 %v568, 0.5
        %v577 = vmul.f32 %v569, 0.5
        %v578 = vmul.f32 %v570, 0.5
        %vm579 = vcmp.gt.f32.partialorder %v571, 0.0
        %vm580 = vcmp.gt.f32.partialorder %v572, 0.0
        %vm581 = vcmp.gt.f32.partialorder %v573, 0.0
        %vm582 = vcmp.gt.f32.partialorder %v574, 0.0
        %vm583 = vcmp.gt.f32.partialorder %v575, 0.0
        %vm584 = vcmp.gt.f32.partialorder %v576, 0.0
        %vm585 = vcmp.gt.f32.partialorder %v577, 0.0
        %vm586 = vcmp.gt.f32.partialorder %v578, 0.0
        %v587 = vmul.f32 %v571, 1.442695
        %v588 = vpow.pop %v587
        %v589 = vmul.f32 %v572, 1.442695
        %v590 = vpow.pop %v589
        %v591 = vmul.f32 %v573, 1.442695
        %v592 = vpow.pop %v591
        %v593 = vmul.f32 %v574, 1.442695
        %v594 = vpow.pop %v593
        %v595 = vmul.f32 %v575, 1.442695
        %v596 = vpow.pop %v595
        %v597 = vmul.f32 %v576, 1.442695
        %v598 = vpow.pop %v597
        %v599 = vmul.f32 %v577, 1.442695
        %v600 = vpow.pop %v599
        %v601 = vmul.f32 %v578, 1.442695
        %v602 = vpow.pop %v601
        %v603 = vsub.f32 %v588, 1.0
        %v604 = vsub.f32 %v590, 1.0
        %v605 = vsub.f32 %v592, 1.0
        %v606 = vsub.f32 %v594, 1.0
        %v607 = vsub.f32 %v596, 1.0
        %v608 = vsub.f32 %v598, 1.0
        %v609 = vsub.f32 %v600, 1.0
        %v610 = vsub.f32 %v602, 1.0
        %v611 = vsel %vm579, %v571, %v603
        %v612 = vsel %vm580, %v572, %v604
        %v613 = vsel %vm581, %v573, %v605
        %v614 = vsel %vm582, %v574, %v606
        %v615 = vsel %vm583, %v575, %v607
        %v616 = vsel %vm584, %v576, %v608
        %v617 = vsel %vm585, %v577, %v609
        %v618 = vsel %vm586, %v578, %v610
        %v619 = vmax.f32 %v611, 0.0
        %v620 = vmax.f32 %v612, 0.0
        %v621 = vmax.f32 %v613, 0.0
        %v622 = vmax.f32 %v614, 0.0
        %v623 = vmax.f32 %v615, 0.0
        %v624 = vmax.f32 %v616, 0.0
        %v625 = vmax.f32 %v617, 0.0
        %v626 = vmax.f32 %v618, 0.0
        %v627 = vpack.c.bf16 %v620, %v619
        %v628 = vpack.c.bf16 %v622, %v621
        %v629 = vpack.c.bf16 %v624, %v623
        %v630 = vpack.c.bf16 %v626, %v625
        %v635 = vunpack.c.l.b16 %v627
        %v636 = vunpack.c.h.b16 %v627
        %v637 = vunpack.c.l.b16 %v628
        %v638 = vunpack.c.h.b16 %v628
        %v639 = vunpack.c.l.b16 %v629
        %v640 = vunpack.c.h.b16 %v629
        %v641 = vunpack.c.l.b16 %v630
        %v642 = vunpack.c.h.b16 %v630
        %v643 = vpack.c.b16 %v635, %v635
        %v644 = vpack.c.b16 %v636, %v636
        %v645 = vpack.c.b16 %v637, %v637
        %v646 = vpack.c.b16 %v638, %v638
        %v647 = vpack.c.b16 %v639, %v639
        %v648 = vpack.c.b16 %v640, %v640
        %v649 = vpack.c.b16 %v641, %v641
        %v650 = vpack.c.b16 %v642, %v642
        %659 = vst [vmem:[%s288] sm:$0xf] %v643
        %660 = vst [vmem:[%s288 + $0x4] sm:$0xf] %v644
        %661 = vst [vmem:[%s288 + $0x8] sm:$0xf] %v645
        %662 = vst [vmem:[%s288 + $0xc] sm:$0xf] %v646
        %663 = vst [vmem:[%s288 + $0x10] sm:$0xf] %v647
        %664 = vst [vmem:[%s288 + $0x14] sm:$0xf] %v648
        %665 = vst [vmem:[%s288 + $0x18] sm:$0xf] %v649
        %666 = vst [vmem:[%s288 + $0x1c] sm:$0xf] %v650
      $region44: #{gat_hgnnplus_forward.11} parent=35 // pred_fallthru
        _
      %s667 = smul.u32 8, %s19
      %p668 = scmp.lt.s32.totalorder %s667, 31
      %s669 = scalar_select %p668, %s667, 31
      %s670 = smul.addr %s669, 4
      %s671 = scalar_lea.vmem %s4, %s670
      // Predicated region
      $region45: #{gat_hgnnplus_forward.11} parent=35 // pred_check
        %p672 = pneg %p151
      $region46: #{gat_hgnnplus_forward.11} parent=35 // pred_check_branch
        %674 = sbr.rel (%p672) target = $region48
      $region47: #{gat_hgnnplus_forward.11} parent=35 // pred_region
        %s675 = smul.u32 8, %s19
      $region48: #{gat_hgnnplus_forward.11} parent=35 // pred_fallthru
        _
    $region36: #{gat_hgnnplus_forward.11} parent=5 // pred_fallthru
      _
    %p676 = scmp.le.s32.totalorder 2, %s10
    // Predicated region
    $region49: #{gat_hgnnplus_forward.11} parent=5 // pred_check
      %p677 = pneg %p676
    $region50: #{gat_hgnnplus_forward.11} parent=5 // pred_check_branch
      %679 = sbr.rel (%p677) target = $region52
    $region51: #{gat_hgnnplus_forward.11} parent=5 // pred_region
      %s680 = ssub.s32 %s10, 2
      // Predicated region
      $region53: #{gat_hgnnplus_forward.11} parent=51 // pred_check
        %p681 = pneg %p157
      $region54: #{gat_hgnnplus_forward.11} parent=51 // pred_check_branch
        %683 = sbr.rel (%p681) target = $region56
      $region55: #{gat_hgnnplus_forward.11} parent=51 // pred_region
        %s684 = smul.u32 8, %s21
        %p685 = scmp.lt.s32.totalorder %s684, 31
        %s686 = scalar_select %p685, %s684, 31
        %s687 = smul.addr %s686, 4
        %s688 = scalar_lea.vmem %s4, %s687
      $region56: #{gat_hgnnplus_forward.11} parent=51 // pred_fallthru
        _
    $region52: #{gat_hgnnplus_forward.11} parent=5 // pred_fallthru
      _
  $region6: #{gat_hgnnplus_forward.11} parent=0 // loop_footer
    %s14 = sadd.s32 1, %s10
  $region7: #{gat_hgnnplus_forward.11} parent=0 // loop_footer_branch
    %9 = sbr.rel target = $region3
  $region8: #{gat_hgnnplus_forward.11} parent=0 // loop_exit
    _

// kernel: gat_hgnnplus_forward.9
$region0: #{gat_hgnnplus_forward.9}
  #allocation0 [shape = 'u32[]', space=smem, size = 0x4, offset = 0x4, fixed_abs, tag = 'smem constant byte address 0x4 - core index']
  #allocation1 [shape = 'u32[144,128]{1,0:T(1,128)}', space=vmem, size = 0x12000, scoped, tag = 'internal scratch']
  #allocation2 [shape = 'f32[64,1]{1,0:T(8,128)}', space=vmem, size = 0x8000, scoped, tag = 'scratch operand']
  #allocation3 [shape = 'f32[64,1]{1,0:T(8,128)}', space=vmem, size = 0x8000, scoped, tag = 'scratch operand']
  #allocation4 [shape = 'f32[64,128]{1,0:T(8,128)}', space=vmem, size = 0x8000, scoped, tag = 'scratch operand']
  %s0 = inlined_call_operand.vmem [shape: bf16[256,256], index: 0, kind: input, shape index: {}]
  %s1 = inlined_call_operand.vmem [shape: f32[256,1], index: 1, kind: input, shape index: {}]
  %s2 = inlined_call_operand.vmem [shape: f32[1,256], index: 2, kind: input, shape index: {}]
  %s3 = inlined_call_operand.vmem [shape: bf16[256,128], index: 3, kind: input, shape index: {}]
  %s4 = inlined_call_operand.vmem [shape: f32[256,128], index: 4, kind: output, shape index: {}]
  %s5 = sld [smem:[#allocation0]]
  $region98: #{gat_hgnnplus_forward.9} parent=0
    _
  %s7 = ssub.s32 1, %s5
  %s8 = scalar_select 0, %s7, %s5
  $region1: #{gat_hgnnplus_forward.9} parent=0
    #allocation5 [shape = 'u8[32768]{0}', space=vmem, size = 0x8000, scoped, tag = 'input window, operand 0']
    loop: start=0, step=1, limit=10
    $region2: #{gat_hgnnplus_forward.9} parent=1 // loop_pre_header
      _
    $region3: #{gat_hgnnplus_forward.9} parent=1 // loop_header
      %s10 = sphi 0, %s14
      %p11 = scmp.ge.s32.totalorder %s10, 10
      %s17 = sphi 0, %s29
      %s18 = sphi 0, %s25
      %s19 = sphi 0, %s17
      %s20 = sphi 0, %s18
      %s21 = sphi 0, %s19
      %s22 = sphi 0, %s20
      %s34 = sphi 0, %s36
      %s37 = sphi 0, %s34
      %s38 = sphi 0, %s37
      %s54 = sphi 0, %s38
      %s60 = sphi 0, %s62
      %s63 = sphi 0, %s60
      %s64 = sphi 0, %s63
      %s80 = sphi 0, %s64
      %s86 = sphi 0, %s88
      %s89 = sphi 0, %s86
      %s90 = sphi 0, %s89
      %s106 = sphi 0, %s90
      %s112 = sphi 0, %s114
      %s115 = sphi 0, %s112
      %s116 = sphi 0, %s115
      %s132 = sphi 0, %s116
      %s138 = sphi 0, %s140
      %s141 = sphi 0, %s138
      %s142 = sphi 0, %s141
      %s158 = sphi 0, %s142
    $region4: #{gat_hgnnplus_forward.9} parent=1 // loop_header_branch
      %13 = sbr.rel (%p11) target = $region8
    $region5: #{gat_hgnnplus_forward.9} parent=1 // loop_body
      %s15 = ssub.s32 %s10, 1
      %s16 = ssub.s32 %s10, 2
      %s23 = sadd.s32 1, %s18
      %p24 = scmp.ge.s32.totalorder %s23, 2
      %s25 = scalar_select %p24, 0, %s23
      %s26 = sadd.s32 1, %s17
      %s27 = scalar_select %p24, %s26, %s17
      %p28 = scmp.ge.s32.totalorder %s27, 4
      %s29 = scalar_select %p28, 0, %s27
      %s30 = ssub.s32 %s17, %s29
      %s31 = ssub.s32 %s18, %s25
      %s32 = sor.u32 %s30, %s31
      %p33 = scmp.eq.s32.totalorder %s32, 0
      %s35 = sadd.s32 %s34, 1
      %s36 = scalar_select %p33, %s34, %s35
      %p39 = pneg %p33
      %p40 = scmp.eq.s32.totalorder %s10, 7
      %p41 = por %p39, %p40
      %p42 = scmp.ne.s32.totalorder %s34, %s37
      %p43 = scmp.eq.s32.totalorder %s10, 0
      %p44 = por %p42, %p43
      %p45 = scmp.ne.s32.totalorder %s34, %s37
      %p46 = scmp.eq.s32.totalorder %s15, 7
      %p47 = por %p45, %p46
      %p48 = scmp.ne.s32.totalorder %s37, %s38
      %p49 = scmp.eq.s32.totalorder %s15, 0
      %p50 = por %p48, %p49
      %p51 = scmp.ne.s32.totalorder %s37, %s38
      %p52 = scmp.eq.s32.totalorder %s16, 7
      %p53 = por %p51, %p52
      %p55 = scmp.ne.s32.totalorder %s38, %s54
      %p56 = scmp.eq.s32.totalorder %s16, 0
      %p57 = por %p55, %p56
      %s58 = ssub.s32 %s17, %s29
      %p59 = scmp.eq.s32.totalorder %s58, 0
      %s61 = sadd.s32 %s60, 1
      %s62 = scalar_select %p59, %s60, %s61
      %p65 = pneg %p59
      %p66 = scmp.eq.s32.totalorder %s10, 7
      %p67 = por %p65, %p66
      %p68 = scmp.ne.s32.totalorder %s60, %s63
      %p69 = scmp.eq.s32.totalorder %s10, 0
      %p70 = por %p68, %p69
      %p71 = scmp.ne.s32.totalorder %s60, %s63
      %p72 = scmp.eq.s32.totalorder %s15, 7
      %p73 = por %p71, %p72
      %p74 = scmp.ne.s32.totalorder %s63, %s64
      %p75 = scmp.eq.s32.totalorder %s15, 0
      %p76 = por %p74, %p75
      %p77 = scmp.ne.s32.totalorder %s63, %s64
      %p78 = scmp.eq.s32.totalorder %s16, 7
      %p79 = por %p77, %p78
      %p81 = scmp.ne.s32.totalorder %s64, %s80
      %p82 = scmp.eq.s32.totalorder %s16, 0
      %p83 = por %p81, %p82
      %s84 = ssub.s32 %s18, %s25
      %p85 = scmp.eq.s32.totalorder %s84, 0
      %s87 = sadd.s32 %s86, 1
      %s88 = scalar_select %p85, %s86, %s87
      %p91 = pneg %p85
      %p92 = scmp.eq.s32.totalorder %s10, 7
      %p93 = por %p91, %p92
      %p94 = scmp.ne.s32.totalorder %s86, %s89
      %p95 = scmp.eq.s32.totalorder %s10, 0
      %p96 = por %p94, %p95
      %p97 = scmp.ne.s32.totalorder %s86, %s89
      %p98 = scmp.eq.s32.totalorder %s15, 7
      %p99 = por %p97, %p98
      %p100 = scmp.ne.s32.totalorder %s89, %s90
      %p101 = scmp.eq.s32.totalorder %s15, 0
      %p102 = por %p100, %p101
      %p103 = scmp.ne.s32.totalorder %s89, %s90
      %p104 = scmp.eq.s32.totalorder %s16, 7
      %p105 = por %p103, %p104
      %p107 = scmp.ne.s32.totalorder %s90, %s106
      %p108 = scmp.eq.s32.totalorder %s16, 0
      %p109 = por %p107, %p108
      %s110 = ssub.s32 %s18, %s25
      %p111 = scmp.eq.s32.totalorder %s110, 0
      %s113 = sadd.s32 %s112, 1
      %s114 = scalar_select %p111, %s112, %s113
      %p117 = pneg %p111
      %p118 = scmp.eq.s32.totalorder %s10, 7
      %p119 = por %p117, %p118
      %p120 = scmp.ne.s32.totalorder %s112, %s115
      %p121 = scmp.eq.s32.totalorder %s10, 0
      %p122 = por %p120, %p121
      %p123 = scmp.ne.s32.totalorder %s112, %s115
      %p124 = scmp.eq.s32.totalorder %s15, 7
      %p125 = por %p123, %p124
      %p126 = scmp.ne.s32.totalorder %s115, %s116
      %p127 = scmp.eq.s32.totalorder %s15, 0
      %p128 = por %p126, %p127
      %p129 = scmp.ne.s32.totalorder %s115, %s116
      %p130 = scmp.eq.s32.totalorder %s16, 7
      %p131 = por %p129, %p130
      %p133 = scmp.ne.s32.totalorder %s116, %s132
      %p134 = scmp.eq.s32.totalorder %s16, 0
      %p135 = por %p133, %p134
      %s136 = ssub.s32 %s17, %s29
      %p137 = scmp.eq.s32.totalorder %s136, 0
      %s139 = sadd.s32 %s138, 1
      %s140 = scalar_select %p137, %s138, %s139
      %p143 = pneg %p137
      %p144 = scmp.eq.s32.totalorder %s10, 7
      %p145 = por %p143, %p144
      %p146 = scmp.ne.s32.totalorder %s138, %s141
      %p147 = scmp.eq.s32.totalorder %s10, 0
      %p148 = por %p146, %p147
      %p149 = scmp.ne.s32.totalorder %s138, %s141
      %p150 = scmp.eq.s32.totalorder %s15, 7
      %p151 = por %p149, %p150
      %p152 = scmp.ne.s32.totalorder %s141, %s142
      %p153 = scmp.eq.s32.totalorder %s15, 0
      %p154 = por %p152, %p153
      %p155 = scmp.ne.s32.totalorder %s141, %s142
      %p156 = scmp.eq.s32.totalorder %s16, 7
      %p157 = por %p155, %p156
      %p159 = scmp.ne.s32.totalorder %s142, %s158
      %p160 = scmp.eq.s32.totalorder %s16, 0
      %p161 = por %p159, %p160
      %p162 = scmp.le.s32.totalorder 1, %s10
      %p163 = scmp.lt.s32.totalorder %s10, 9
      %p164 = pnand %p162, %p163
      %p165 = pneg %p164
      // Predicated region
      $region9: #{gat_hgnnplus_forward.9} parent=5 // pred_check
        _
      $region10: #{gat_hgnnplus_forward.9} parent=5 // pred_check_branch
        %167 = sbr.rel (%p164) target = $region12
      $region11: #{gat_hgnnplus_forward.9} parent=5 // pred_region
        %s168 = ssub.s32 %s10, 1
      $region12: #{gat_hgnnplus_forward.9} parent=5 // pred_fallthru
        _
      %p169 = scmp.lt.s32.totalorder %s10, 8
      // Predicated region
      $region13: #{gat_hgnnplus_forward.9} parent=5 // pred_check
        %p170 = pneg %p169
      $region14: #{gat_hgnnplus_forward.9} parent=5 // pred_check_branch
        %172 = sbr.rel (%p170) target = $region16
      $region15: #{gat_hgnnplus_forward.9} parent=5 // pred_region
        // Predicated region
        $region17: #{gat_hgnnplus_forward.9} parent=15 // pred_check
          %p173 = pneg %p44
        $region18: #{gat_hgnnplus_forward.9} parent=15 // pred_check_branch
          %175 = sbr.rel (%p173) target = $region20
        $region19: #{gat_hgnnplus_forward.9} parent=15 // pred_region
          %s176 = sand.u32 %s34, 1
          %s177 = sand.u32 %s34, 1
          %s178 = smul.addr %s177, 32
          %s179 = scalar_lea.vmem [#allocation5], %s178
          %s180 = smul.u32 8, %s17
          %s181 = smul.addr %s180, 2
          %s182 = sadd.s32 %s18, %s181
          %s183 = smul.addr %s182, 4
          %s184 = scalar_lea.vmem %s0, %s183
          // Predicated region
          $region21: #{gat_hgnnplus_forward.9} parent=19 // pred_check
            _
          $region22: #{gat_hgnnplus_forward.9} parent=19 // pred_check_branch
            %186 = sbr.rel (0) target = $region24
          $region23: #{gat_hgnnplus_forward.9} parent=19 // pred_region
            // Predicated region
            $region25: #{gat_hgnnplus_forward.9} parent=23 // pred_check
              _
            $region26: #{gat_hgnnplus_forward.9} parent=23 // pred_check_branch
              %188 = sbr.rel target = $region28
            $region27: #{gat_hgnnplus_forward.9} parent=23 // pred_region
              // Predicated region
              $region40: #{gat_hgnnplus_forward.9} parent=27 // pred_check
                _
              $region41: #{gat_hgnnplus_forward.9} parent=27 // pred_check_branch
                %217 = sbr.rel (0) target = $region43
              $region42: #{gat_hgnnplus_forward.9} parent=27 // pred_region
                loop: start=0, step=1, limit=1
                $region44: #{gat_hgnnplus_forward.9} parent=42 // loop_pre_header
                  _
                $region45: #{gat_hgnnplus_forward.9} parent=42 // loop_header
                  %s219 = sphi 0, %s223
                  %p220 = scmp.ge.s32.totalorder %s219, 1
                  %s224 = sphi %s184, %s184
                  %s225 = sphi %s179, %s179
                $region46: #{gat_hgnnplus_forward.9} parent=42 // loop_header_branch
                  %222 = sbr.rel (%p220) target = $region50
                $region47: #{gat_hgnnplus_forward.9} parent=42 // loop_body
                  _
                $region48: #{gat_hgnnplus_forward.9} parent=42 // loop_footer
                  %s223 = sadd.s32 1, %s219
                $region49: #{gat_hgnnplus_forward.9} parent=42 // loop_footer_branch
                  %218 = sbr.rel target = $region45
                $region50: #{gat_hgnnplus_forward.9} parent=42 // loop_exit
                  _
                loop: start=0, step=1, limit=1
                $region51: #{gat_hgnnplus_forward.9} parent=42 // loop_pre_header
                  _
                $region52: #{gat_hgnnplus_forward.9} parent=42 // loop_header
                  %s228 = sphi 0, %s232
                  %p229 = scmp.ge.s32.totalorder %s228, 1
                  %s233 = sphi %s184, %s184
                  %s234 = sphi %s179, %s179
                $region53: #{gat_hgnnplus_forward.9} parent=42 // loop_header_branch
                  %231 = sbr.rel (%p229) target = $region57
                $region54: #{gat_hgnnplus_forward.9} parent=42 // loop_body
                  %v235 = vld [vmem:[%s233] sm:$0xf]
                  %236 = vst [vmem:[%s234] sm:$0xf] %v235
                  %v237 = vld [vmem:[%s233 + $0x8] sm:$0xf]
                  %238 = vst [vmem:[%s234 + $0x4] sm:$0xf] %v237
                  %v239 = vld [vmem:[%s233 + $0x10] sm:$0xf]
                  %240 = vst [vmem:[%s234 + $0x8] sm:$0xf] %v239
                  %v241 = vld [vmem:[%s233 + $0x18] sm:$0xf]
                  %242 = vst [vmem:[%s234 + $0xc] sm:$0xf] %v241
                  %v243 = vld [vmem:[%s233 + $0x20] sm:$0xf]
                  %244 = vst [vmem:[%s234 + $0x10] sm:$0xf] %v243
                  %v245 = vld [vmem:[%s233 + $0x28] sm:$0xf]
                  %246 = vst [vmem:[%s234 + $0x14] sm:$0xf] %v245
                  %v247 = vld [vmem:[%s233 + $0x30] sm:$0xf]
                  %248 = vst [vmem:[%s234 + $0x18] sm:$0xf] %v247
                  %v249 = vld [vmem:[%s233 + $0x38] sm:$0xf]
                  %250 = vst [vmem:[%s234 + $0x1c] sm:$0xf] %v249
                $region55: #{gat_hgnnplus_forward.9} parent=42 // loop_footer
                  %s232 = sadd.s32 1, %s228
                $region56: #{gat_hgnnplus_forward.9} parent=42 // loop_footer_branch
                  %227 = sbr.rel target = $region52
                $region57: #{gat_hgnnplus_forward.9} parent=42 // loop_exit
                  _
              $region43: #{gat_hgnnplus_forward.9} parent=27 // pred_fallthru
                _
            $region28: #{gat_hgnnplus_forward.9} parent=23 // pred_fallthru
              _
            // Predicated region
            $region29: #{gat_hgnnplus_forward.9} parent=23 // pred_check
              _
            $region30: #{gat_hgnnplus_forward.9} parent=23 // pred_check_branch
              %190 = sbr.rel (0) target = $region32
            $region31: #{gat_hgnnplus_forward.9} parent=23 // pred_region
              loop: start=0, step=1, limit=1
              $region33: #{gat_hgnnplus_forward.9} parent=31 // loop_pre_header
                _
              $region34: #{gat_hgnnplus_forward.9} parent=31 // loop_header
                %s193 = sphi 0, %s197
                %p194 = scmp.ge.s32.totalorder %s193, 1
                %s198 = sphi %s184, %s184
                %s199 = sphi %s179, %s179
              $region35: #{gat_hgnnplus_forward.9} parent=31 // loop_header_branch
                %196 = sbr.rel (%p194) target = $region39
              $region36: #{gat_hgnnplus_forward.9} parent=31 // loop_body
                %v200 = vld [vmem:[%s198] sm:$0xf]
                %201 = vst [vmem:[%s199] sm:$0xf] %v200
                %v202 = vld [vmem:[%s198 + $0x8] sm:$0xf]
                %203 = vst [vmem:[%s199 + $0x4] sm:$0xf] %v202
                %v204 = vld [vmem:[%s198 + $0x10] sm:$0xf]
                %205 = vst [vmem:[%s199 + $0x8] sm:$0xf] %v204
                %v206 = vld [vmem:[%s198 + $0x18] sm:$0xf]
                %207 = vst [vmem:[%s199 + $0xc] sm:$0xf] %v206
                %v208 = vld [vmem:[%s198 + $0x20] sm:$0xf]
                %209 = vst [vmem:[%s199 + $0x10] sm:$0xf] %v208
                %v210 = vld [vmem:[%s198 + $0x28] sm:$0xf]
                %211 = vst [vmem:[%s199 + $0x14] sm:$0xf] %v210
                %v212 = vld [vmem:[%s198 + $0x30] sm:$0xf]
                %213 = vst [vmem:[%s199 + $0x18] sm:$0xf] %v212
                %v214 = vld [vmem:[%s198 + $0x38] sm:$0xf]
                %215 = vst [vmem:[%s199 + $0x1c] sm:$0xf] %v214
              $region37: #{gat_hgnnplus_forward.9} parent=31 // loop_footer
                %s197 = sadd.s32 1, %s193
              $region38: #{gat_hgnnplus_forward.9} parent=31 // loop_footer_branch
                %192 = sbr.rel target = $region34
              $region39: #{gat_hgnnplus_forward.9} parent=31 // loop_exit
                _
            $region32: #{gat_hgnnplus_forward.9} parent=23 // pred_fallthru
              _
          $region24: #{gat_hgnnplus_forward.9} parent=19 // pred_fallthru
            _
          %251 = vnop
        $region20: #{gat_hgnnplus_forward.9} parent=15 // pred_fallthru
          _
        // Predicated region
        $region58: #{gat_hgnnplus_forward.9} parent=15 // pred_check
          %p252 = pneg %p70
        $region59: #{gat_hgnnplus_forward.9} parent=15 // pred_check_branch
          %254 = sbr.rel (%p252) target = $region61
        $region60: #{gat_hgnnplus_forward.9} parent=15 // pred_region
          %s255 = smul.u32 8, %s17
          %p256 = scmp.lt.s32.totalorder %s255, 31
          %s257 = scalar_select %p256, %s255, 31
          %s258 = smul.addr %s257, 8
          %s259 = scalar_lea.vmem %s1, %s258
          %s260 = smul.u32 8, %s17
        $region61: #{gat_hgnnplus_forward.9} parent=15 // pred_fallthru
          _
        // Predicated region
        $region62: #{gat_hgnnplus_forward.9} parent=15 // pred_check
          %p261 = pneg %p96
        $region63: #{gat_hgnnplus_forward.9} parent=15 // pred_check_branch
          %263 = sbr.rel (%p261) target = $region65
        $region64: #{gat_hgnnplus_forward.9} parent=15 // pred_region
          %p264 = scmp.lt.s32.totalorder %s18, 1
          %s265 = scalar_select %p264, %s18, 1
          %s266 = scalar_lea.vmem %s2, %s265
        $region65: #{gat_hgnnplus_forward.9} parent=15 // pred_fallthru
          _
        // Predicated region
        $region66: #{gat_hgnnplus_forward.9} parent=15 // pred_check
          %p267 = pneg %p122
        $region67: #{gat_hgnnplus_forward.9} parent=15 // pred_check_branch
          %269 = sbr.rel (%p267) target = $region69
        $region68: #{gat_hgnnplus_forward.9} parent=15 // pred_region
          %s270 = smul.u32 16, %s18
          %p271 = scmp.lt.s32.totalorder %s270, 31
          %s272 = scalar_select %p271, %s270, 31
          %s273 = smul.addr %s272, 4
          %s274 = scalar_lea.vmem %s3, %s273
          %s275 = smul.u32 16, %s18
        $region69: #{gat_hgnnplus_forward.9} parent=15 // pred_fallthru
          _
      $region16: #{gat_hgnnplus_forward.9} parent=5 // pred_fallthru
        _
      %p276 = scmp.le.s32.totalorder 1, %s10
      %p277 = scmp.lt.s32.totalorder %s10, 9
      %p278 = pnand %p276, %p277
      %p279 = pneg %p278
      // Predicated region
      $region70: #{gat_hgnnplus_forward.9} parent=5 // pred_check
        _
      $region71: #{gat_hgnnplus_forward.9} parent=5 // pred_check_branch
        %281 = sbr.rel (%p278) target = $region73
      $region72: #{gat_hgnnplus_forward.9} parent=5 // pred_region
        %s282 = ssub.s32 %s10, 1
        %s283 = sand.u32 %s37, 1
        %s284 = sand.u32 %s37, 1
        %s285 = smul.addr %s284, 32
        %s286 = scalar_lea.vmem [#allocation5], %s285
        // Predicated region
        $region74: #{gat_hgnnplus_forward.9} parent=72 // pred_check
          %p287 = pneg %p50
        $region75: #{gat_hgnnplus_forward.9} parent=72 // pred_check_branch
          %289 = sbr.rel (%p287) target = $region77
        $region76: #{gat_hgnnplus_forward.9} parent=72 // pred_region
          _
        $region77: #{gat_hgnnplus_forward.9} parent=72 // pred_fallthru
          _
        %s290 = sand.u32 %s37, 1
        %s291 = sand.u32 %s37, 1
        %s292 = smul.addr %s291, 32
        %s293 = scalar_lea.vmem [#allocation5], %s292
        %p294 = pneg %p50
        %p295 = pneg %p47
        %s296 = smul.u32 8, %s19
        %p297 = scmp.lt.s32.totalorder %s296, 31
        %s298 = scalar_select %p297, %s296, 31
        %s299 = smul.addr %s298, 8
        %s300 = scalar_lea.vmem %s1, %s299
        %p301 = pneg %p76
        %p302 = pneg %p73
        %p303 = scmp.lt.s32.totalorder %s20, 1
        %s304 = scalar_select %p303, %s20, 1
        %s305 = scalar_lea.vmem %s2, %s304
        %p306 = pneg %p102
        %p307 = pneg %p99
        %s308 = smul.u32 16, %s20
        %p309 = scmp.lt.s32.totalorder %s308, 31
        %s310 = scalar_select %p309, %s308, 31
        %s311 = smul.addr %s310, 4
        %s312 = scalar_lea.vmem %s3, %s311
        %p313 = pneg %p128
        %p314 = pneg %p125
        %p315 = pneg %p154
        %p316 = pneg %p151
        %s317 = smul.u32 8, %s19
        %p318 = scmp.lt.s32.totalorder %s317, 31
        %s319 = scalar_select %p318, %s317, 31
        %s320 = smul.addr %s319, 8
        %s321 = scalar_lea.vmem %s4, %s320
        %s322 = smul.u32 8, %s19
        %s323 = smul.u32 8, %s19
        %p324 = scmp.lt.s32.totalorder %s323, 31
        %s325 = scalar_select %p324, %s323, 31
        %s326 = smul.addr %s325, 8
        %s327 = scalar_lea.vmem %s1, %s326
        %s328 = smul.u32 8, %s19
        %p329 = scmp.lt.s32.totalorder %s20, 1
        %s330 = scalar_select %p329, %s20, 1
        %s331 = scalar_lea.vmem %s2, %s330
        %s332 = smul.u32 16, %s20
        %p333 = scmp.lt.s32.totalorder %s332, 31
        %s334 = scalar_select %p333, %s332, 31
        %s335 = smul.addr %s334, 4
        %s336 = scalar_lea.vmem %s3, %s335
        %s337 = smul.u32 16, %s20
        %s338 = smul.u32 8, %s19
        %p339 = scmp.lt.s32.totalorder %s338, 31
        %s340 = scalar_select %p339, %s338, 31
        %s341 = smul.addr %s340, 8
        %s342 = scalar_lea.vmem %s4, %s341
        %s343 = smul.u32 8, %s19
        %p347 = scmp.eq.s32.totalorder %s20, 0
        // Predicated region
        $region78: #{gat_hgnnplus_forward.9} parent=72 // pred_check
          %p348 = pneg %p347
        $region79: #{gat_hgnnplus_forward.9} parent=72 // pred_check_branch
          %350 = sbr.rel (%p348) target = $region81
        $region80: #{gat_hgnnplus_forward.9} parent=72 // pred_region
          %vm351 = vcmask 7168
          %352 = vst.msk [vmem:[#allocation2] sm:$0xff] %vm351, -1e+30
          %353 = vst.msk [vmem:[#allocation2 + $0x8] sm:$0xff] %vm351, -1e+30
          %354 = vst.msk [vmem:[#allocation2 + $0x10] sm:$0xff] %vm351, -1e+30
          %355 = vst.msk [vmem:[#allocation2 + $0x18] sm:$0xff] %vm351, -1e+30
          %356 = vst.msk [vmem:[#allocation2 + $0x20] sm:$0xff] %vm351, -1e+30
          %357 = vst.msk [vmem:[#allocation2 + $0x28] sm:$0xff] %vm351, -1e+30
          %358 = vst.msk [vmem:[#allocation2 + $0x30] sm:$0xff] %vm351, -1e+30
          %359 = vst.msk [vmem:[#allocation2 + $0x38] sm:$0xff] %vm351, -1e+30
          %360 = vst.msk [vmem:[#allocation3] sm:$0xff] %vm351, 0.0
          %361 = vst.msk [vmem:[#allocation3 + $0x8] sm:$0xff] %vm351, 0.0
          %362 = vst.msk [vmem:[#allocation3 + $0x10] sm:$0xff] %vm351, 0.0
          %363 = vst.msk [vmem:[#allocation3 + $0x18] sm:$0xff] %vm351, 0.0
          %364 = vst.msk [vmem:[#allocation3 + $0x20] sm:$0xff] %vm351, 0.0
          %365 = vst.msk [vmem:[#allocation3 + $0x28] sm:$0xff] %vm351, 0.0
          %366 = vst.msk [vmem:[#allocation3 + $0x30] sm:$0xff] %vm351, 0.0
          %367 = vst.msk [vmem:[#allocation3 + $0x38] sm:$0xff] %vm351, 0.0
          %368 = vst [vmem:[#allocation4] sm:$0xff] 0.0
          %369 = vst [vmem:[#allocation4 + $0x8] sm:$0xff] 0.0
          %370 = vst [vmem:[#allocation4 + $0x10] sm:$0xff] 0.0
          %371 = vst [vmem:[#allocation4 + $0x18] sm:$0xff] 0.0
          %372 = vst [vmem:[#allocation4 + $0x20] sm:$0xff] 0.0
          %373 = vst [vmem:[#allocation4 + $0x28] sm:$0xff] 0.0
          %374 = vst [vmem:[#allocation4 + $0x30] sm:$0xff] 0.0
          %375 = vst [vmem:[#allocation4 + $0x38] sm:$0xff] 0.0
        $region81: #{gat_hgnnplus_forward.9} parent=72 // pred_fallthru
          _
        %v376 = vld [vmem:[%s286] sm:$0xf]
        %v377 = vld [vmem:[%s286 + $0x4] sm:$0xf]
        %v378 = vld [vmem:[%s286 + $0x8] sm:$0xf]
        %v379 = vld [vmem:[%s286 + $0xc] sm:$0xf]
        %v380 = vld [vmem:[%s286 + $0x10] sm:$0xf]
        %v381 = vld [vmem:[%s286 + $0x14] sm:$0xf]
        %v382 = vld [vmem:[%s286 + $0x18] sm:$0xf]
        %v383 = vld [vmem:[%s286 + $0x1c] sm:$0xf]
        %vm384 = vcmp.gt.bf16.partialorder %v376, 0
        %vm385 = vcmp.gt.bf16.partialorder %v377, 0
        %vm386 = vcmp.gt.bf16.partialorder %v378, 0
        %vm387 = vcmp.gt.bf16.partialorder %v379, 0
        %vm388 = vcmp.gt.bf16.partialorder %v380, 0
        %vm389 = vcmp.gt.bf16.partialorder %v381, 0
        %vm390 = vcmp.gt.bf16.partialorder %v382, 0
        %vm391 = vcmp.gt.bf16.partialorder %v383, 0
        %v392 = vld [vmem:[%s331] sm:$0x1]
        %v393 = vld [vmem:[%s327] sm:$0xff]
        %v394 = vld [vmem:[%s327 + $0x8] sm:$0xff]
        %v395 = vld [vmem:[%s327 + $0x10] sm:$0xff]
        %v396 = vld [vmem:[%s327 + $0x18] sm:$0xff]
        %v397 = vld [vmem:[%s327 + $0x20] sm:$0xff]
        %v398 = vld [vmem:[%s327 + $0x28] sm:$0xff]
        %v399 = vld [vmem:[%s327 + $0x30] sm:$0xff]
        %v400 = vld [vmem:[%s327 + $0x38] sm:$0xff]
        %v402 = vlaneseq
        %v403 = vshrl.u32 %v402, 7
        %v404 = vsub.s32 0, %v403
        %v405 = vrot.slane %v392, %v404
        %408 = vset.pattern.permute.xlu0 0
        %409 = vperm.xlu0 %408, %v393
        %v410 = vpop.permute.xlu0 %409
        %413 = vset.pattern.permute.xlu0 0
        %414 = vperm.xlu0 %413, %v394
        %v415 = vpop.permute.xlu0 %414
        %418 = vset.pattern.permute.xlu0 0
        %419 = vperm.xlu0 %418, %v395
        %v420 = vpop.permute.xlu0 %419
        %423 = vset.pattern.permute.xlu0 0
        %424 = vperm.xlu0 %423, %v396
        %v425 = vpop.permute.xlu0 %424
        %428 = vset.pattern.permute.xlu0 0
        %429 = vperm.xlu0 %428, %v397
        %v430 = vpop.permute.xlu0 %429
        %433 = vset.pattern.permute.xlu0 0
        %434 = vperm.xlu0 %433, %v398
        %v435 = vpop.permute.xlu0 %434
        %438 = vset.pattern.permute.xlu0 0
        %439 = vperm.xlu0 %438, %v399
        %v440 = vpop.permute.xlu0 %439
        %443 = vset.pattern.permute.xlu0 0
        %444 = vperm.xlu0 %443, %v400
        %v445 = vpop.permute.xlu0 %444
        %v447 = vadd.f32 %v405, %v410
        %v448 = vadd.f32 %v405, %v415
        %v449 = vadd.f32 %v405, %v420
        %v450 = vadd.f32 %v405, %v425
        %v451 = vadd.f32 %v405, %v430
        %v452 = vadd.f32 %v405, %v435
        %v453 = vadd.f32 %v405, %v440
        %v454 = vadd.f32 %v405, %v445
        %vm455 = vcmp.ge.f32.partialorder %v447, 0.0
        %vm456 = vcmp.ge.f32.partialorder %v448, 0.0
        %vm457 = vcmp.ge.f32.partialorder %v449, 0.0
        %vm458 = vcmp.ge.f32.partialorder %v450, 0.0
        %vm459 = vcmp.ge.f32.partialorder %v451, 0.0
        %vm460 = vcmp.ge.f32.partialorder %v452, 0.0
        %vm461 = vcmp.ge.f32.partialorder %v453, 0.0
        %vm462 = vcmp.ge.f32.partialorder %v454, 0.0
        %v463 = vmul.f32 %v447, 0.2
        %v464 = vmul.f32 %v448, 0.2
        %v465 = vmul.f32 %v449, 0.2
        %v466 = vmul.f32 %v450, 0.2
        %v467 = vmul.f32 %v451, 0.2
        %v468 = vmul.f32 %v452, 0.2
        %v469 = vmul.f32 %v453, 0.2
        %v470 = vmul.f32 %v454, 0.2
        %v471 = vsel %vm455, %v447, %v463
        %v472 = vsel %vm456, %v448, %v464
        %v473 = vsel %vm457, %v449, %v465
        %v474 = vsel %vm458, %v450, %v466
        %v475 = vsel %vm459, %v451, %v467
        %v476 = vsel %vm460, %v452, %v468
        %v477 = vsel %vm461, %v453, %v469
        %v478 = vsel %vm462, %v454, %v470
        %v479 = vsel %vm384, 65537, 0
        %v480 = vsel %vm385, 65537, 0
        %v481 = vsel %vm386, 65537, 0
        %v482 = vsel %vm387, 65537, 0
        %v483 = vsel %vm388, 65537, 0
        %v484 = vsel %vm389, 65537, 0
        %v485 = vsel %vm390, 65537, 0
        %v486 = vsel %vm391, 65537, 0
        %v487 = vunpack.c.l.b16 %v479
        %v488 = vunpack.c.l.b16 %v480
        %v489 = vunpack.c.l.b16 %v481
        %v490 = vunpack.c.l.b16 %v482
        %v491 = vunpack.c.l.b16 %v483
        %v492 = vunpack.c.l.b16 %v484
        %v493 = vunpack.c.l.b16 %v485
        %v494 = vunpack.c.l.b16 %v486
        %vm495 = vcmp.ne.s32.totalorder %v487, 0
        %vm496 = vcmp.ne.s32.totalorder %v488, 0
        %vm497 = vcmp.ne.s32.totalorder %v489, 0
        %vm498 = vcmp.ne.s32.totalorder %v490, 0
        %vm499 = vcmp.ne.s32.totalorder %v491, 0
        %vm500 = vcmp.ne.s32.totalorder %v492, 0
        %vm501 = vcmp.ne.s32.totalorder %v493, 0
        %vm502 = vcmp.ne.s32.totalorder %v494, 0
        %v503 = vsel %vm495, %v471, -1e+30
        %v504 = vsel %vm496, %v472, -1e+30
        %v505 = vsel %vm497, %v473, -1e+30
        %v506 = vsel %vm498, %v474, -1e+30
        %v507 = vsel %vm499, %v475, -1e+30
        %v508 = vsel %vm500, %v476, -1e+30
        %v509 = vsel %vm501, %v477, -1e+30
        %v510 = vsel %vm502, %v478, -1e+30
        %v511 = vld [vmem:[#allocation2] sm:$0xff]
        %v512 = vld [vmem:[#allocation2 + $0x8] sm:$0xff]
        %v513 = vld [vmem:[#allocation2 + $0x10] sm:$0xff]
        %v514 = vld [vmem:[#allocation2 + $0x18] sm:$0xff]
        %v515 = vld [vmem:[#allocation2 + $0x20] sm:$0xff]
        %v516 = vld [vmem:[#allocation2 + $0x28] sm:$0xff]
        %v517 = vld [vmem:[#allocation2 + $0x30] sm:$0xff]
        %v518 = vld [vmem:[#allocation2 + $0x38] sm:$0xff]
        %519 = vmax.xlane.f32.xlu0 %v503
        %v520 = vpop.xlane.xlu0 %519
        %521 = vmax.xlane.f32.xlu0 %v504
        %v522 = vpop.xlane.xlu0 %521
        %523 = vmax.xlane.f32.xlu0 %v505
        %v524 = vpop.xlane.xlu0 %523
        %525 = vmax.xlane.f32.xlu0 %v506
        %v526 = vpop.xlane.xlu0 %525
        %527 = vmax.xlane.f32.xlu0 %v507
        %v528 = vpop.xlane.xlu0 %527
        %529 = vmax.xlane.f32.xlu0 %v508
        %v530 = vpop.xlane.xlu0 %529
        %531 = vmax.xlane.f32.xlu0 %v509
        %v532 = vpop.xlane.xlu0 %531
        %533 = vmax.xlane.f32.xlu0 %v510
        %v534 = vpop.xlane.xlu0 %533
        %v535 = vmax.f32 %v511, %v520
        %v536 = vmax.f32 %v512, %v522
        %v537 = vmax.f32 %v513, %v524
        %v538 = vmax.f32 %v514, %v526
        %v539 = vmax.f32 %v515, %v528
        %v540 = vmax.f32 %v516, %v530
        %v541 = vmax.f32 %v517, %v532
        %v542 = vmax.f32 %v518, %v534
        %v543 = vsub.f32 %v511, %v535
        %v544 = vsub.f32 %v512, %v536
        %v545 = vsub.f32 %v513, %v537
        %v546 = vsub.f32 %v514, %v538
        %v547 = vsub.f32 %v515, %v539
        %v548 = vsub.f32 %v516, %v540
        %v549 = vsub.f32 %v517, %v541
        %v550 = vsub.f32 %v518, %v542
        %v551 = vmul.f32 %v543, 1.442695
        %v552 = vpow.pop %v551
        %v553 = vmul.f32 %v544, 1.442695
        %v554 = vpow.pop %v553
        %v555 = vmul.f32 %v545, 1.442695
        %v556 = vpow.pop %v555
        %v557 = vmul.f32 %v546, 1.442695
        %v558 = vpow.pop %v557
        %v559 = vmul.f32 %v547, 1.442695
        %v560 = vpow.pop %v559
        %v561 = vmul.f32 %v548, 1.442695
        %v562 = vpow.pop %v561
        %v563 = vmul.f32 %v549, 1.442695
        %v564 = vpow.pop %v563
        %v565 = vmul.f32 %v550, 1.442695
        %v566 = vpow.pop %v565
        %568 = vset.pattern.permute.xlu0 0
        %569 = vperm.xlu0 %568, %v535
        %v570 = vpop.permute.xlu0 %569
        %573 = vset.pattern.permute.xlu0 0
        %574 = vperm.xlu0 %573, %v536
        %v575 = vpop.permute.xlu0 %574
        %578 = vset.pattern.permute.xlu0 0
        %579 = vperm.xlu0 %578, %v537
        %v580 = vpop.permute.xlu0 %579
        %583 = vset.pattern.permute.xlu0 0
        %584 = vperm.xlu0 %583, %v538
        %v585 = vpop.permute.xlu0 %584
        %588 = vset.pattern.permute.xlu0 0
        %589 = vperm.xlu0 %588, %v539
        %v590 = vpop.permute.xlu0 %589
        %593 = vset.pattern.permute.xlu0 0
        %594 = vperm.xlu0 %593, %v540
        %v595 = vpop.permute.xlu0 %594
        %598 = vset.pattern.permute.xlu0 0
        %599 = vperm.xlu0 %598, %v541
        %v600 = vpop.permute.xlu0 %599
        %603 = vset.pattern.permute.xlu0 0
        %604 = vperm.xlu0 %603, %v542
        %v605 = vpop.permute.xlu0 %604
        %v607 = vsub.f32 %v503, %v570
        %v608 = vsub.f32 %v504, %v575
        %v609 = vsub.f32 %v505, %v580
        %v610 = vsub.f32 %v506, %v585
        %v611 = vsub.f32 %v507, %v590
        %v612 = vsub.f32 %v508, %v595
        %v613 = vsub.f32 %v509, %v600
        %v614 = vsub.f32 %v510, %v605
        %v615 = vmul.f32 %v607, 1.442695
        %v616 = vpow.pop %v615
        %v617 = vmul.f32 %v608, 1.442695
        %v618 = vpow.pop %v617
        %v619 = vmul.f32 %v609, 1.442695
        %v620 = vpow.pop %v619
        %v621 = vmul.f32 %v610, 1.442695
        %v622 = vpow.pop %v621
        %v623 = vmul.f32 %v611, 1.442695
        %v624 = vpow.pop %v623
        %v625 = vmul.f32 %v612, 1.442695
        %v626 = vpow.pop %v625
        %v627 = vmul.f32 %v613, 1.442695
        %v628 = vpow.pop %v627
        %v629 = vmul.f32 %v614, 1.442695
        %v630 = vpow.pop %v629
        %v631 = vsel %vm495, %v616, 0.0
        %v632 = vsel %vm496, %v618, 0.0
        %v633 = vsel %vm497, %v620, 0.0
        %v634 = vsel %vm498, %v622, 0.0
        %v635 = vsel %vm499, %v624, 0.0
        %v636 = vsel %vm500, %v626, 0.0
        %v637 = vsel %vm501, %v628, 0.0
        %v638 = vsel %vm502, %v630, 0.0
        %v639 = vld [vmem:[#allocation3] sm:$0xff]
        %v640 = vld [vmem:[#allocation3 + $0x8] sm:$0xff]
        %v641 = vld [vmem:[#allocation3 + $0x10] sm:$0xff]
        %v642 = vld [vmem:[#allocation3 + $0x18] sm:$0xff]
        %v643 = vld [vmem:[#allocation3 + $0x20] sm:$0xff]
        %v644 = vld [vmem:[#allocation3 + $0x28] sm:$0xff]
        %v645 = vld [vmem:[#allocation3 + $0x30] sm:$0xff]
        %v646 = vld [vmem:[#allocation3 + $0x38] sm:$0xff]
        %v647 = vmul.f32 %v552, %v639
        %v648 = vmul.f32 %v554, %v640
        %v649 = vmul.f32 %v556, %v641
        %v650 = vmul.f32 %v558, %v642
        %v651 = vmul.f32 %v560, %v643
        %v652 = vmul.f32 %v562, %v644
        %v653 = vmul.f32 %v564, %v645
        %v654 = vmul.f32 %v566, %v646
        %655 = vadd.xlane.f32.xlu0 %v631
        %v656 = vpop.xlane.xlu0 %655
        %657 = vadd.xlane.f32.xlu0 %v632
        %v658 = vpop.xlane.xlu0 %657
        %659 = vadd.xlane.f32.xlu0 %v633
        %v660 = vpop.xlane.xlu0 %659
        %661 = vadd.xlane.f32.xlu0 %v634
        %v662 = vpop.xlane.xlu0 %661
        %663 = vadd.xlane.f32.xlu0 %v635
        %v664 = vpop.xlane.xlu0 %663
        %665 = vadd.xlane.f32.xlu0 %v636
        %v666 = vpop.xlane.xlu0 %665
        %667 = vadd.xlane.f32.xlu0 %v637
        %v668 = vpop.xlane.xlu0 %667
        %669 = vadd.xlane.f32.xlu0 %v638
        %v670 = vpop.xlane.xlu0 %669
        %v671 = vadd.f32 %v647, %v656
        %v672 = vadd.f32 %v648, %v658
        %v673 = vadd.f32 %v649, %v660
        %v674 = vadd.f32 %v650, %v662
        %v675 = vadd.f32 %v651, %v664
        %v676 = vadd.f32 %v652, %v666
        %v677 = vadd.f32 %v653, %v668
        %v678 = vadd.f32 %v654, %v670
        %vm679 = vcmask 7168
        %680 = vst.msk [vmem:[#allocation3] sm:$0xff] %vm679, %v671
        %681 = vst.msk [vmem:[#allocation3 + $0x8] sm:$0xff] %vm679, %v672
        %682 = vst.msk [vmem:[#allocation3 + $0x10] sm:$0xff] %vm679, %v673
        %683 = vst.msk [vmem:[#allocation3 + $0x18] sm:$0xff] %vm679, %v674
        %684 = vst.msk [vmem:[#allocation3 + $0x20] sm:$0xff] %vm679, %v675
        %685 = vst.msk [vmem:[#allocation3 + $0x28] sm:$0xff] %vm679, %v676
        %686 = vst.msk [vmem:[#allocation3 + $0x30] sm:$0xff] %vm679, %v677
        %687 = vst.msk [vmem:[#allocation3 + $0x38] sm:$0xff] %vm679, %v678
        %v688 = vld [vmem:[#allocation4] sm:$0xff]
        %v689 = vld [vmem:[#allocation4 + $0x8] sm:$0xff]
        %v690 = vld [vmem:[#allocation4 + $0x10] sm:$0xff]
        %v691 = vld [vmem:[#allocation4 + $0x18] sm:$0xff]
        %v692 = vld [vmem:[#allocation4 + $0x20] sm:$0xff]
        %v693 = vld [vmem:[#allocation4 + $0x28] sm:$0xff]
        %v694 = vld [vmem:[#allocation4 + $0x30] sm:$0xff]
        %v695 = vld [vmem:[#allocation4 + $0x38] sm:$0xff]
        %697 = vset.pattern.permute.xlu0 0
        %698 = vperm.xlu0 %697, %v552
        %v699 = vpop.permute.xlu0 %698
        %702 = vset.pattern.permute.xlu0 0
        %703 = vperm.xlu0 %702, %v554
        %v704 = vpop.permute.xlu0 %703
        %707 = vset.pattern.permute.xlu0 0
        %708 = vperm.xlu0 %707, %v556
        %v709 = vpop.permute.xlu0 %708
        %712 = vset.pattern.permute.xlu0 0
        %713 = vperm.xlu0 %712, %v558
        %v714 = vpop.permute.xlu0 %713
        %717 = vset.pattern.permute.xlu0 0
        %718 = vperm.xlu0 %717, %v560
        %v719 = vpop.permute.xlu0 %718
        %722 = vset.pattern.permute.xlu0 0
        %723 = vperm.xlu0 %722, %v562
        %v724 = vpop.permute.xlu0 %723
        %727 = vset.pattern.permute.xlu0 0
        %728 = vperm.xlu0 %727, %v564
        %v729 = vpop.permute.xlu0 %728
        %732 = vset.pattern.permute.xlu0 0
        %733 = vperm.xlu0 %732, %v566
        %v734 = vpop.permute.xlu0 %733
        %v736 = vmul.f32 %v699, %v688
        %v737 = vmul.f32 %v704, %v689
        %v738 = vmul.f32 %v709, %v690
        %v739 = vmul.f32 %v714, %v691
        %v740 = vmul.f32 %v719, %v692
        %v741 = vmul.f32 %v724, %v693
        %v742 = vmul.f32 %v729, %v694
        %v743 = vmul.f32 %v734, %v695
        %v744 = vpack.c.bf16 %v632, %v631
        %v745 = vpack.c.bf16 %v634, %v633
        %v746 = vpack.c.bf16 %v636, %v635
        %v747 = vpack.c.bf16 %v638, %v637
        %v748 = vld [vmem:[%s336] sm:$0xf]
        %v749 = vld [vmem:[%s336 + $0x4] sm:$0xf]
        %v750 = vld [vmem:[%s336 + $0x8] sm:$0xf]
        %v751 = vld [vmem:[%s336 + $0xc] sm:$0xf]
        %v752 = vld [vmem:[%s336 + $0x10] sm:$0xf]
        %v753 = vld [vmem:[%s336 + $0x14] sm:$0xf]
        %v754 = vld [vmem:[%s336 + $0x18] sm:$0xf]
        %v755 = vld [vmem:[%s336 + $0x1c] sm:$0xf]
        %v756 = vld [vmem:[%s336 + $0x20] sm:$0xf]
        %v757 = vld [vmem:[%s336 + $0x24] sm:$0xf]
        %v758 = vld [vmem:[%s336 + $0x28] sm:$0xf]
        %v759 = vld [vmem:[%s336 + $0x2c] sm:$0xf]
        %v760 = vld [vmem:[%s336 + $0x30] sm:$0xf]
        %v761 = vld [vmem:[%s336 + $0x34] sm:$0xf]
        %v762 = vld [vmem:[%s336 + $0x38] sm:$0xf]
        %v763 = vld [vmem:[%s336 + $0x3c] sm:$0xf]
        %v780 = vunpack.c.l.b16 %v748
        %v781 = vunpack.c.l.b16 %v749
        %v782 = vunpack.c.l.b16 %v750
        %v783 = vunpack.c.l.b16 %v751
        %v784 = vunpack.c.l.b16 %v752
        %v785 = vunpack.c.l.b16 %v753
        %v786 = vunpack.c.l.b16 %v754
        %v787 = vunpack.c.l.b16 %v755
        %v788 = vunpack.c.l.b16 %v756
        %v789 = vunpack.c.l.b16 %v757
        %v790 = vunpack.c.l.b16 %v758
        %v791 = vunpack.c.l.b16 %v759
        %v792 = vunpack.c.l.b16 %v760
        %v793 = vunpack.c.l.b16 %v761
        %v794 = vunpack.c.l.b16 %v762
        %v795 = vunpack.c.l.b16 %v763
        %v796 = vpack.c.b16 %v781, %v780
        %v797 = vpack.c.b16 %v783, %v782
        %v798 = vpack.c.b16 %v785, %v784
        %v799 = vpack.c.b16 %v787, %v786
        %v800 = vpack.c.b16 %v789, %v788
        %v801 = vpack.c.b16 %v791, %v790
        %v802 = vpack.c.b16 %v793, %v792
        %v803 = vpack.c.b16 %v795, %v794
        %812 = vmatprep.subr.bf16.mxu0 0
        %813 = vmatpush1.bf16.msra.mxu0 %v796
        %814 = vmatprep.subr.bf16.mxu0 0
        %815 = vmatpush1.bf16.msra.mxu0 %v797
        %816 = vmatprep.subr.bf16.mxu0 0
        %817 = vmatpush1.bf16.msra.mxu0 %v798
        %818 = vmatprep.subr.bf16.mxu0 0
        %819 = vmatpush1.bf16.msra.mxu0 %v799
        %820 = vmatprep.subr.bf16.mxu0 0
        %821 = vmatpush1.bf16.msra.mxu0 %v800
        %822 = vmatprep.subr.bf16.mxu0 0
        %823 = vmatpush1.bf16.msra.mxu0 %v801
        %824 = vmatprep.subr.bf16.mxu0 0
        %825 = vmatpush1.bf16.msra.mxu0 %v802
        %826 = vmatprep.subr.bf16.mxu0 0
        %827 = vmatpush1.bf16.msra.mxu0 %v803
        %828 = vmatprep.subr.bf16.mxu0 0
        %829 = vmatpush1.bf16.msra.mxu0 0
        %830 = vmatprep.subr.bf16.mxu0 0
        %831 = vmatpush1.bf16.msra.mxu0 0
        %832 = vmatprep.subr.bf16.mxu0 0
        %833 = vmatpush1.bf16.msra.mxu0 0
        %834 = vmatprep.subr.bf16.mxu0 0
        %835 = vmatpush1.bf16.msra.mxu0 0
        %836 = vmatprep.subr.bf16.mxu0 0
        %837 = vmatpush1.bf16.msra.mxu0 0
        %838 = vmatprep.subr.bf16.mxu0 0
        %839 = vmatpush1.bf16.msra.mxu0 0
        %840 = vmatprep.subr.bf16.mxu0 0
        %841 = vmatpush1.bf16.msra.mxu0 0
        %842 = vmatprep.subr.bf16.mxu0 0
        %843 = vmatpush1.bf16.msra.mxu0 0
        %844 = vmatprep.mubr.bf16.mxu0 0
        %845 = vmatmul.mubr.bf16.gmra.mrb[0].mxu0 %v744
        %v846 = vpop.f32.mrb[0].mxu0
        %v847 = vadd.f32 0.0, %v846
        %v848 = vpop.f32.mrb[0].mxu0
        %v849 = vpop.f32.mrb[0].mxu0
        %v850 = vadd.f32 0.0, %v849
        %v851 = vpop.f32.mrb[0].mxu0
        %852 = vmatprep.mubr.bf16.mxu0 0
        %853 = vmatmul.mubr.bf16.gmra.mrb[0].mxu0 %v745
        %v854 = vpop.f32.mrb[0].mxu0
        %v855 = vadd.f32 0.0, %v854
        %v856 = vpop.f32.mrb[0].mxu0
        %v857 = vpop.f32.mrb[0].mxu0
        %v858 = vadd.f32 0.0, %v857
        %v859 = vpop.f32.mrb[0].mxu0
        %860 = vmatprep.mubr.bf16.mxu0 0
        %861 = vmatmul.mubr.bf16.gmra.mrb[0].mxu0 %v746
        %v862 = vpop.f32.mrb[0].mxu0
        %v863 = vadd.f32 0.0, %v862
        %v864 = vpop.f32.mrb[0].mxu0
        %v865 = vpop.f32.mrb[0].mxu0
        %v866 = vadd.f32 0.0, %v865
        %v867 = vpop.f32.mrb[0].mxu0
        %868 = vmatprep.mubr.bf16.mxu0 0
        %869 = vmatmul.mubr.bf16.gmra.mrb[0].mxu0 %v747
        %v870 = vpop.f32.mrb[0].mxu0
        %v871 = vadd.f32 0.0, %v870
        %v872 = vpop.f32.mrb[0].mxu0
        %v873 = vpop.f32.mrb[0].mxu0
        %v874 = vadd.f32 0.0, %v873
        %v875 = vpop.f32.mrb[0].mxu0
        %876 = vdwg.mxu0
        %v877 = vadd.f32 %v736, %v847
        %v878 = vadd.f32 %v737, %v850
        %v879 = vadd.f32 %v738, %v855
        %v880 = vadd.f32 %v739, %v858
        %v881 = vadd.f32 %v740, %v863
        %v882 = vadd.f32 %v741, %v866
        %v883 = vadd.f32 %v742, %v871
        %v884 = vadd.f32 %v743, %v874
        %885 = vst [vmem:[#allocation4] sm:$0xff] %v877
        %886 = vst [vmem:[#allocation4 + $0x8] sm:$0xff] %v878
        %887 = vst [vmem:[#allocation4 + $0x10] sm:$0xff] %v879
        %888 = vst [vmem:[#allocation4 + $0x18] sm:$0xff] %v880
        %889 = vst [vmem:[#allocation4 + $0x20] sm:$0xff] %v881
        %890 = vst [vmem:[#allocation4 + $0x28] sm:$0xff] %v882
        %891 = vst [vmem:[#allocation4 + $0x30] sm:$0xff] %v883
        %892 = vst [vmem:[#allocation4 + $0x38] sm:$0xff] %v884
        %893 = vst.msk [vmem:[#allocation2] sm:$0xff] %vm679, %v535
        %894 = vst.msk [vmem:[#allocation2 + $0x8] sm:$0xff] %vm679, %v536
        %895 = vst.msk [vmem:[#allocation2 + $0x10] sm:$0xff] %vm679, %v537
        %896 = vst.msk [vmem:[#allocation2 + $0x18] sm:$0xff] %vm679, %v538
        %897 = vst.msk [vmem:[#allocation2 + $0x20] sm:$0xff] %vm679, %v539
        %898 = vst.msk [vmem:[#allocation2 + $0x28] sm:$0xff] %vm679, %v540
        %899 = vst.msk [vmem:[#allocation2 + $0x30] sm:$0xff] %vm679, %v541
        %900 = vst.msk [vmem:[#allocation2 + $0x38] sm:$0xff] %vm679, %v542
        %p901 = scmp.eq.s32.totalorder %s20, 1
        // Predicated region
        $region82: #{gat_hgnnplus_forward.9} parent=72 // pred_check
          %p902 = pneg %p901
        $region83: #{gat_hgnnplus_forward.9} parent=72 // pred_check_branch
          %904 = sbr.rel (%p902) target = $region85
        $region84: #{gat_hgnnplus_forward.9} parent=72 // pred_region
          %v905 = vld [vmem:[#allocation3] sm:$0xff]
          %v906 = vld [vmem:[#allocation3 + $0x8] sm:$0xff]
          %v907 = vld [vmem:[#allocation3 + $0x10] sm:$0xff]
          %v908 = vld [vmem:[#allocation3 + $0x18] sm:$0xff]
          %v909 = vld [vmem:[#allocation3 + $0x20] sm:$0xff]
          %v910 = vld [vmem:[#allocation3 + $0x28] sm:$0xff]
          %v911 = vld [vmem:[#allocation3 + $0x30] sm:$0xff]
          %v912 = vld [vmem:[#allocation3 + $0x38] sm:$0xff]
          %vm913 = vcmp.gt.f32.partialorder %v905, 0.0
          %vm914 = vcmp.gt.f32.partialorder %v906, 0.0
          %vm915 = vcmp.gt.f32.partialorder %v907, 0.0
          %vm916 = vcmp.gt.f32.partialorder %v908, 0.0
          %vm917 = vcmp.gt.f32.partialorder %v909, 0.0
          %vm918 = vcmp.gt.f32.partialorder %v910, 0.0
          %vm919 = vcmp.gt.f32.partialorder %v911, 0.0
          %vm920 = vcmp.gt.f32.partialorder %v912, 0.0
          %v921 = vrcp.pop %v905
          %v922 = vrcp.pop %v906
          %v923 = vrcp.pop %v907
          %v924 = vrcp.pop %v908
          %v925 = vrcp.pop %v909
          %v926 = vrcp.pop %v910
          %v927 = vrcp.pop %v911
          %v928 = vrcp.pop %v912
          %v929 = vsel %vm913, %v921, 0.0
          %v930 = vsel %vm914, %v922, 0.0
          %v931 = vsel %vm915, %v923, 0.0
          %v932 = vsel %vm916, %v924, 0.0
          %v933 = vsel %vm917, %v925, 0.0
          %v934 = vsel %vm918, %v926, 0.0
          %v935 = vsel %vm919, %v927, 0.0
          %v936 = vsel %vm920, %v928, 0.0
          %v937 = vld [vmem:[#allocation4] sm:$0xff]
          %v938 = vld [vmem:[#allocation4 + $0x8] sm:$0xff]
          %v939 = vld [vmem:[#allocation4 + $0x10] sm:$0xff]
          %v940 = vld [vmem:[#allocation4 + $0x18] sm:$0xff]
          %v941 = vld [vmem:[#allocation4 + $0x20] sm:$0xff]
          %v942 = vld [vmem:[#allocation4 + $0x28] sm:$0xff]
          %v943 = vld [vmem:[#allocation4 + $0x30] sm:$0xff]
          %v944 = vld [vmem:[#allocation4 + $0x38] sm:$0xff]
          %946 = vset.pattern.permute.xlu0 0
          %947 = vperm.xlu0 %946, %v929
          %v948 = vpop.permute.xlu0 %947
          %951 = vset.pattern.permute.xlu0 0
          %952 = vperm.xlu0 %951, %v930
          %v953 = vpop.permute.xlu0 %952
          %956 = vset.pattern.permute.xlu0 0
          %957 = vperm.xlu0 %956, %v931
          %v958 = vpop.permute.xlu0 %957
          %961 = vset.pattern.permute.xlu0 0
          %962 = vperm.xlu0 %961, %v932
          %v963 = vpop.permute.xlu0 %962
          %966 = vset.pattern.permute.xlu0 0
          %967 = vperm.xlu0 %966, %v933
          %v968 = vpop.permute.xlu0 %967
          %971 = vset.pattern.permute.xlu0 0
          %972 = vperm.xlu0 %971, %v934
          %v973 = vpop.permute.xlu0 %972
          %976 = vset.pattern.permute.xlu0 0
          %977 = vperm.xlu0 %976, %v935
          %v978 = vpop.permute.xlu0 %977
          %981 = vset.pattern.permute.xlu0 0
          %982 = vperm.xlu0 %981, %v936
          %v983 = vpop.permute.xlu0 %982
          %v985 = vmul.f32 %v937, %v948
          %v986 = vmul.f32 %v938, %v953
          %v987 = vmul.f32 %v939, %v958
          %v988 = vmul.f32 %v940, %v963
          %v989 = vmul.f32 %v941, %v968
          %v990 = vmul.f32 %v942, %v973
          %v991 = vmul.f32 %v943, %v978
          %v992 = vmul.f32 %v944, %v983
          %993 = vst [vmem:[%s342] sm:$0xff] %v985
          %994 = vst [vmem:[%s342 + $0x8] sm:$0xff] %v986
          %995 = vst [vmem:[%s342 + $0x10] sm:$0xff] %v987
          %996 = vst [vmem:[%s342 + $0x18] sm:$0xff] %v988
          %997 = vst [vmem:[%s342 + $0x20] sm:$0xff] %v989
          %998 = vst [vmem:[%s342 + $0x28] sm:$0xff] %v990
          %999 = vst [vmem:[%s342 + $0x30] sm:$0xff] %v991
          %1000 = vst [vmem:[%s342 + $0x38] sm:$0xff] %v992
        $region85: #{gat_hgnnplus_forward.9} parent=72 // pred_fallthru
          _
        %s1001 = smul.u32 8, %s19
        %p1002 = scmp.lt.s32.totalorder %s1001, 31
        %s1003 = scalar_select %p1002, %s1001, 31
        %s1004 = smul.addr %s1003, 8
        %s1005 = scalar_lea.vmem %s4, %s1004
        // Predicated region
        $region86: #{gat_hgnnplus_forward.9} parent=72 // pred_check
          %p1006 = pneg %p151
        $region87: #{gat_hgnnplus_forward.9} parent=72 // pred_check_branch
          %1008 = sbr.rel (%p1006) target = $region89
        $region88: #{gat_hgnnplus_forward.9} parent=72 // pred_region
          %s1009 = smul.u32 8, %s19
        $region89: #{gat_hgnnplus_forward.9} parent=72 // pred_fallthru
          _
      $region73: #{gat_hgnnplus_forward.9} parent=5 // pred_fallthru
        _
      %p1010 = scmp.le.s32.totalorder 2, %s10
      // Predicated region
      $region90: #{gat_hgnnplus_forward.9} parent=5 // pred_check
        %p1011 = pneg %p1010
      $region91: #{gat_hgnnplus_forward.9} parent=5 // pred_check_branch
        %1013 = sbr.rel (%p1011) target = $region93
      $region92: #{gat_hgnnplus_forward.9} parent=5 // pred_region
        %s1014 = ssub.s32 %s10, 2
        // Predicated region
        $region94: #{gat_hgnnplus_forward.9} parent=92 // pred_check
          %p1015 = pneg %p157
        $region95: #{gat_hgnnplus_forward.9} parent=92 // pred_check_branch
          %1017 = sbr.rel (%p1015) target = $region97
        $region96: #{gat_hgnnplus_forward.9} parent=92 // pred_region
          %s1018 = smul.u32 8, %s21
          %p1019 = scmp.lt.s32.totalorder %s1018, 31
          %s1020 = scalar_select %p1019, %s1018, 31
          %s1021 = smul.addr %s1020, 8
          %s1022 = scalar_lea.vmem %s4, %s1021
        $region97: #{gat_hgnnplus_forward.9} parent=92 // pred_fallthru
          _
      $region93: #{gat_hgnnplus_forward.9} parent=5 // pred_fallthru
        _
    $region6: #{gat_hgnnplus_forward.9} parent=1 // loop_footer
      %s14 = sadd.s32 1, %s10
    $region7: #{gat_hgnnplus_forward.9} parent=1 // loop_footer_branch
      %9 = sbr.rel target = $region3
    $region8: #{gat_hgnnplus_forward.9} parent=1 // loop_exit
      _

// kernel: gat_hgnnplus_forward.15
$region0: #{gat_hgnnplus_forward.15}
  #allocation0 [shape = 'u32[]', space=smem, size = 0x4, offset = 0x4, fixed_abs, tag = 'smem constant byte address 0x4 - core index']
  #allocation1 [shape = 'u32[144,128]{1,0:T(1,128)}', space=vmem, size = 0x12000, scoped, tag = 'internal scratch']
  #allocation2 [shape = 'f32[64,128]{1,0:T(8,128)}', space=vmem, size = 0x8000, scoped, tag = 'scratch operand']
  %s0 = inlined_call_operand.vmem [shape: bf16[256,128], index: 0, kind: input, shape index: {}]
  %s1 = inlined_call_operand.vmem [shape: bf16[128,128], index: 1, kind: input, shape index: {}]
  %s2 = inlined_call_operand.vmem [shape: f32[256,1], index: 2, kind: input, shape index: {}]
  %s3 = inlined_call_operand.vmem [shape: f32[256,128], index: 3, kind: input, shape index: {}]
  %s4 = inlined_call_operand.vmem [shape: bf16[256,128], index: 4, kind: output, shape index: {}]
  %s5 = sld [smem:[#allocation0]]
  $region57: #{gat_hgnnplus_forward.15} parent=0
    _
  %s7 = ssub.s32 1, %s5
  %s8 = scalar_select 0, %s7, %s5
  loop: start=0, step=1, limit=6
  $region2: #{gat_hgnnplus_forward.15} parent=0 // loop_pre_header
    _
  $region3: #{gat_hgnnplus_forward.15} parent=0 // loop_header
    %s10 = sphi 0, %s14
    %p11 = scmp.ge.s32.totalorder %s10, 6
    %s17 = sphi 0, %s29
    %s18 = sphi 0, %s25
    %s19 = sphi 0, %s17
    %s20 = sphi 0, %s18
    %s21 = sphi 0, %s19
    %s22 = sphi 0, %s20
    %s34 = sphi 0, %s36
    %s37 = sphi 0, %s34
    %s38 = sphi 0, %s37
    %s54 = sphi 0, %s38
    %s60 = sphi 0, %s62
    %s63 = sphi 0, %s60
    %s64 = sphi 0, %s63
    %s80 = sphi 0, %s64
    %s86 = sphi 0, %s88
    %s89 = sphi 0, %s86
    %s90 = sphi 0, %s89
    %s106 = sphi 0, %s90
    %s112 = sphi 0, %s114
    %s115 = sphi 0, %s112
    %s116 = sphi 0, %s115
    %s132 = sphi 0, %s116
    %s138 = sphi 0, %s140
    %s141 = sphi 0, %s138
    %s142 = sphi 0, %s141
    %s158 = sphi 0, %s142
  $region4: #{gat_hgnnplus_forward.15} parent=0 // loop_header_branch
    %13 = sbr.rel (%p11) target = $region8
  $region5: #{gat_hgnnplus_forward.15} parent=0 // loop_body
    %s15 = ssub.s32 %s10, 1
    %s16 = ssub.s32 %s10, 2
    %s23 = sadd.s32 1, %s18
    %p24 = scmp.ge.s32.totalorder %s23, 1
    %s25 = scalar_select %p24, 0, %s23
    %s26 = sadd.s32 1, %s17
    %s27 = scalar_select %p24, %s26, %s17
    %p28 = scmp.ge.s32.totalorder %s27, 4
    %s29 = scalar_select %p28, 0, %s27
    %s30 = ssub.s32 %s17, %s29
    %s31 = ssub.s32 %s18, %s25
    %s32 = sor.u32 %s30, %s31
    %p33 = scmp.eq.s32.totalorder %s32, 0
    %s35 = sadd.s32 %s34, 1
    %s36 = scalar_select %p33, %s34, %s35
    %p39 = pneg %p33
    %p40 = scmp.eq.s32.totalorder %s10, 3
    %p41 = por %p39, %p40
    %p42 = scmp.ne.s32.totalorder %s34, %s37
    %p43 = scmp.eq.s32.totalorder %s10, 0
    %p44 = por %p42, %p43
    %p45 = scmp.ne.s32.totalorder %s34, %s37
    %p46 = scmp.eq.s32.totalorder %s15, 3
    %p47 = por %p45, %p46
    %p48 = scmp.ne.s32.totalorder %s37, %s38
    %p49 = scmp.eq.s32.totalorder %s15, 0
    %p50 = por %p48, %p49
    %p51 = scmp.ne.s32.totalorder %s37, %s38
    %p52 = scmp.eq.s32.totalorder %s16, 3
    %p53 = por %p51, %p52
    %p55 = scmp.ne.s32.totalorder %s38, %s54
    %p56 = scmp.eq.s32.totalorder %s16, 0
    %p57 = por %p55, %p56
    %s58 = ssub.s32 %s18, %s25
    %p59 = scmp.eq.s32.totalorder %s58, 0
    %s61 = sadd.s32 %s60, 1
    %s62 = scalar_select %p59, %s60, %s61
    %p65 = pneg %p59
    %p66 = scmp.eq.s32.totalorder %s10, 3
    %p67 = por %p65, %p66
    %p68 = scmp.ne.s32.totalorder %s60, %s63
    %p69 = scmp.eq.s32.totalorder %s10, 0
    %p70 = por %p68, %p69
    %p71 = scmp.ne.s32.totalorder %s60, %s63
    %p72 = scmp.eq.s32.totalorder %s15, 3
    %p73 = por %p71, %p72
    %p74 = scmp.ne.s32.totalorder %s63, %s64
    %p75 = scmp.eq.s32.totalorder %s15, 0
    %p76 = por %p74, %p75
    %p77 = scmp.ne.s32.totalorder %s63, %s64
    %p78 = scmp.eq.s32.totalorder %s16, 3
    %p79 = por %p77, %p78
    %p81 = scmp.ne.s32.totalorder %s64, %s80
    %p82 = scmp.eq.s32.totalorder %s16, 0
    %p83 = por %p81, %p82
    %s84 = ssub.s32 %s17, %s29
    %p85 = scmp.eq.s32.totalorder %s84, 0
    %s87 = sadd.s32 %s86, 1
    %s88 = scalar_select %p85, %s86, %s87
    %p91 = pneg %p85
    %p92 = scmp.eq.s32.totalorder %s10, 3
    %p93 = por %p91, %p92
    %p94 = scmp.ne.s32.totalorder %s86, %s89
    %p95 = scmp.eq.s32.totalorder %s10, 0
    %p96 = por %p94, %p95
    %p97 = scmp.ne.s32.totalorder %s86, %s89
    %p98 = scmp.eq.s32.totalorder %s15, 3
    %p99 = por %p97, %p98
    %p100 = scmp.ne.s32.totalorder %s89, %s90
    %p101 = scmp.eq.s32.totalorder %s15, 0
    %p102 = por %p100, %p101
    %p103 = scmp.ne.s32.totalorder %s89, %s90
    %p104 = scmp.eq.s32.totalorder %s16, 3
    %p105 = por %p103, %p104
    %p107 = scmp.ne.s32.totalorder %s90, %s106
    %p108 = scmp.eq.s32.totalorder %s16, 0
    %p109 = por %p107, %p108
    %s110 = ssub.s32 %s17, %s29
    %p111 = scmp.eq.s32.totalorder %s110, 0
    %s113 = sadd.s32 %s112, 1
    %s114 = scalar_select %p111, %s112, %s113
    %p117 = pneg %p111
    %p118 = scmp.eq.s32.totalorder %s10, 3
    %p119 = por %p117, %p118
    %p120 = scmp.ne.s32.totalorder %s112, %s115
    %p121 = scmp.eq.s32.totalorder %s10, 0
    %p122 = por %p120, %p121
    %p123 = scmp.ne.s32.totalorder %s112, %s115
    %p124 = scmp.eq.s32.totalorder %s15, 3
    %p125 = por %p123, %p124
    %p126 = scmp.ne.s32.totalorder %s115, %s116
    %p127 = scmp.eq.s32.totalorder %s15, 0
    %p128 = por %p126, %p127
    %p129 = scmp.ne.s32.totalorder %s115, %s116
    %p130 = scmp.eq.s32.totalorder %s16, 3
    %p131 = por %p129, %p130
    %p133 = scmp.ne.s32.totalorder %s116, %s132
    %p134 = scmp.eq.s32.totalorder %s16, 0
    %p135 = por %p133, %p134
    %s136 = ssub.s32 %s17, %s29
    %p137 = scmp.eq.s32.totalorder %s136, 0
    %s139 = sadd.s32 %s138, 1
    %s140 = scalar_select %p137, %s138, %s139
    %p143 = pneg %p137
    %p144 = scmp.eq.s32.totalorder %s10, 3
    %p145 = por %p143, %p144
    %p146 = scmp.ne.s32.totalorder %s138, %s141
    %p147 = scmp.eq.s32.totalorder %s10, 0
    %p148 = por %p146, %p147
    %p149 = scmp.ne.s32.totalorder %s138, %s141
    %p150 = scmp.eq.s32.totalorder %s15, 3
    %p151 = por %p149, %p150
    %p152 = scmp.ne.s32.totalorder %s141, %s142
    %p153 = scmp.eq.s32.totalorder %s15, 0
    %p154 = por %p152, %p153
    %p155 = scmp.ne.s32.totalorder %s141, %s142
    %p156 = scmp.eq.s32.totalorder %s16, 3
    %p157 = por %p155, %p156
    %p159 = scmp.ne.s32.totalorder %s142, %s158
    %p160 = scmp.eq.s32.totalorder %s16, 0
    %p161 = por %p159, %p160
    %p162 = scmp.le.s32.totalorder 1, %s10
    %p163 = scmp.lt.s32.totalorder %s10, 5
    %p164 = pnand %p162, %p163
    %p165 = pneg %p164
    // Predicated region
    $region9: #{gat_hgnnplus_forward.15} parent=5 // pred_check
      _
    $region10: #{gat_hgnnplus_forward.15} parent=5 // pred_check_branch
      %167 = sbr.rel (%p164) target = $region12
    $region11: #{gat_hgnnplus_forward.15} parent=5 // pred_region
      %s168 = ssub.s32 %s10, 1
      // Predicated region
      $region13: #{gat_hgnnplus_forward.15} parent=11 // pred_check
        %p169 = pneg %p76
      $region14: #{gat_hgnnplus_forward.15} parent=11 // pred_check_branch
        %171 = sbr.rel (%p169) target = $region16
      $region15: #{gat_hgnnplus_forward.15} parent=11 // pred_region
        %s172 = smul.u32 16, %s20
        %p173 = scmp.lt.s32.totalorder %s172, 15
        %s174 = scalar_select %p173, %s172, 15
        %s175 = smul.addr %s174, 4
        %s176 = scalar_lea.vmem %s1, %s175
        %s177 = smul.u32 16, %s20
      $region16: #{gat_hgnnplus_forward.15} parent=11 // pred_fallthru
        _
    $region12: #{gat_hgnnplus_forward.15} parent=5 // pred_fallthru
      _
    %p178 = scmp.lt.s32.totalorder %s10, 4
    // Predicated region
    $region17: #{gat_hgnnplus_forward.15} parent=5 // pred_check
      %p179 = pneg %p178
    $region18: #{gat_hgnnplus_forward.15} parent=5 // pred_check_branch
      %181 = sbr.rel (%p179) target = $region20
    $region19: #{gat_hgnnplus_forward.15} parent=5 // pred_region
      // Predicated region
      $region21: #{gat_hgnnplus_forward.15} parent=19 // pred_check
        %p182 = pneg %p44
      $region22: #{gat_hgnnplus_forward.15} parent=19 // pred_check_branch
        %184 = sbr.rel (%p182) target = $region24
      $region23: #{gat_hgnnplus_forward.15} parent=19 // pred_region
        %s185 = smul.u32 8, %s17
        %p186 = scmp.lt.s32.totalorder %s185, 31
        %s187 = scalar_select %p186, %s185, 31
        %p188 = scmp.lt.s32.totalorder %s18, 0
        %s189 = scalar_select %p188, %s18, 0
        %s190 = sadd.s32 %s189, %s187
        %s191 = smul.addr %s190, 4
        %s192 = scalar_lea.vmem %s0, %s191
        %s193 = smul.u32 8, %s17
      $region24: #{gat_hgnnplus_forward.15} parent=19 // pred_fallthru
        _
      // Predicated region
      $region25: #{gat_hgnnplus_forward.15} parent=19 // pred_check
        %p194 = pneg %p96
      $region26: #{gat_hgnnplus_forward.15} parent=19 // pred_check_branch
        %196 = sbr.rel (%p194) target = $region28
      $region27: #{gat_hgnnplus_forward.15} parent=19 // pred_region
        %s197 = smul.u32 8, %s17
        %p198 = scmp.lt.s32.totalorder %s197, 31
        %s199 = scalar_select %p198, %s197, 31
        %s200 = smul.addr %s199, 8
        %s201 = scalar_lea.vmem %s2, %s200
        %s202 = smul.u32 8, %s17
      $region28: #{gat_hgnnplus_forward.15} parent=19 // pred_fallthru
        _
      // Predicated region
      $region29: #{gat_hgnnplus_forward.15} parent=19 // pred_check
        %p203 = pneg %p122
      $region30: #{gat_hgnnplus_forward.15} parent=19 // pred_check_branch
        %205 = sbr.rel (%p203) target = $region32
      $region31: #{gat_hgnnplus_forward.15} parent=19 // pred_region
        %s206 = smul.u32 8, %s17
        %p207 = scmp.lt.s32.totalorder %s206, 31
        %s208 = scalar_select %p207, %s206, 31
        %s209 = smul.addr %s208, 8
        %s210 = scalar_lea.vmem %s3, %s209
        %s211 = smul.u32 8, %s17
      $region32: #{gat_hgnnplus_forward.15} parent=19 // pred_fallthru
        _
    $region20: #{gat_hgnnplus_forward.15} parent=5 // pred_fallthru
      _
    %p212 = scmp.le.s32.totalorder 1, %s10
    %p213 = scmp.lt.s32.totalorder %s10, 5
    %p214 = pnand %p212, %p213
    %p215 = pneg %p214
    // Predicated region
    $region33: #{gat_hgnnplus_forward.15} parent=5 // pred_check
      _
    $region34: #{gat_hgnnplus_forward.15} parent=5 // pred_check_branch
      %217 = sbr.rel (%p214) target = $region36
    $region35: #{gat_hgnnplus_forward.15} parent=5 // pred_region
      %s218 = ssub.s32 %s10, 1
      %s219 = smul.u32 8, %s19
      %p220 = scmp.lt.s32.totalorder %s219, 31
      %s221 = scalar_select %p220, %s219, 31
      %p222 = scmp.lt.s32.totalorder %s20, 0
      %s223 = scalar_select %p222, %s20, 0
      %s224 = sadd.s32 %s223, %s221
      %s225 = smul.addr %s224, 4
      %s226 = scalar_lea.vmem %s0, %s225
      %p227 = pneg %p50
      %p228 = pneg %p47
      %s229 = smul.u32 16, %s20
      %p230 = scmp.lt.s32.totalorder %s229, 15
      %s231 = scalar_select %p230, %s229, 15
      %s232 = smul.addr %s231, 4
      %s233 = scalar_lea.vmem %s1, %s232
      %p234 = pneg %p76
      %p235 = pneg %p73
      %s236 = smul.u32 8, %s19
      %p237 = scmp.lt.s32.totalorder %s236, 31
      %s238 = scalar_select %p237, %s236, 31
      %s239 = smul.addr %s238, 8
      %s240 = scalar_lea.vmem %s2, %s239
      %p241 = pneg %p102
      %p242 = pneg %p99
      %s243 = smul.u32 8, %s19
      %p244 = scmp.lt.s32.totalorder %s243, 31
      %s245 = scalar_select %p244, %s243, 31
      %s246 = smul.addr %s245, 8
      %s247 = scalar_lea.vmem %s3, %s246
      %p248 = pneg %p128
      %p249 = pneg %p125
      %p250 = pneg %p154
      %p251 = pneg %p151
      %s252 = smul.u32 8, %s19
      %p253 = scmp.lt.s32.totalorder %s252, 31
      %s254 = scalar_select %p253, %s252, 31
      %s255 = smul.addr %s254, 4
      %s256 = scalar_lea.vmem %s4, %s255
      %s257 = smul.u32 8, %s19
      %p258 = scmp.lt.s32.totalorder %s257, 31
      %s259 = scalar_select %p258, %s257, 31
      %p260 = scmp.lt.s32.totalorder %s20, 0
      %s261 = scalar_select %p260, %s20, 0
      %s262 = sadd.s32 %s261, %s259
      %s263 = smul.addr %s262, 4
      %s264 = scalar_lea.vmem %s0, %s263
      %s265 = smul.u32 8, %s19
      %s266 = smul.u32 16, %s20
      %p267 = scmp.lt.s32.totalorder %s266, 15
      %s268 = scalar_select %p267, %s266, 15
      %s269 = smul.addr %s268, 4
      %s270 = scalar_lea.vmem %s1, %s269
      %s271 = smul.u32 16, %s20
      %s272 = smul.u32 8, %s19
      %p273 = scmp.lt.s32.totalorder %s272, 31
      %s274 = scalar_select %p273, %s272, 31
      %s275 = smul.addr %s274, 8
      %s276 = scalar_lea.vmem %s2, %s275
      %s277 = smul.u32 8, %s19
      %s278 = smul.u32 8, %s19
      %p279 = scmp.lt.s32.totalorder %s278, 31
      %s280 = scalar_select %p279, %s278, 31
      %s281 = smul.addr %s280, 8
      %s282 = scalar_lea.vmem %s3, %s281
      %s283 = smul.u32 8, %s19
      %s284 = smul.u32 8, %s19
      %p285 = scmp.lt.s32.totalorder %s284, 31
      %s286 = scalar_select %p285, %s284, 31
      %s287 = smul.addr %s286, 4
      %s288 = scalar_lea.vmem %s4, %s287
      %s289 = smul.u32 8, %s19
      %p291 = scmp.eq.s32.totalorder %s20, 0
      // Predicated region
      $region37: #{gat_hgnnplus_forward.15} parent=35 // pred_check
        %p292 = pneg %p291
      $region38: #{gat_hgnnplus_forward.15} parent=35 // pred_check_branch
        %294 = sbr.rel (%p292) target = $region40
      $region39: #{gat_hgnnplus_forward.15} parent=35 // pred_region
        %295 = vst [vmem:[#allocation2] sm:$0xff] 0.0
        %296 = vst [vmem:[#allocation2 + $0x8] sm:$0xff] 0.0
        %297 = vst [vmem:[#allocation2 + $0x10] sm:$0xff] 0.0
        %298 = vst [vmem:[#allocation2 + $0x18] sm:$0xff] 0.0
        %299 = vst [vmem:[#allocation2 + $0x20] sm:$0xff] 0.0
        %300 = vst [vmem:[#allocation2 + $0x28] sm:$0xff] 0.0
        %301 = vst [vmem:[#allocation2 + $0x30] sm:$0xff] 0.0
        %302 = vst [vmem:[#allocation2 + $0x38] sm:$0xff] 0.0
      $region40: #{gat_hgnnplus_forward.15} parent=35 // pred_fallthru
        _
      %v303 = vld [vmem:[#allocation2] sm:$0xff]
      %v304 = vld [vmem:[#allocation2 + $0x8] sm:$0xff]
      %v305 = vld [vmem:[#allocation2 + $0x10] sm:$0xff]
      %v306 = vld [vmem:[#allocation2 + $0x18] sm:$0xff]
      %v307 = vld [vmem:[#allocation2 + $0x20] sm:$0xff]
      %v308 = vld [vmem:[#allocation2 + $0x28] sm:$0xff]
      %v309 = vld [vmem:[#allocation2 + $0x30] sm:$0xff]
      %v310 = vld [vmem:[#allocation2 + $0x38] sm:$0xff]
      %v311 = vld [vmem:[%s264] sm:$0xf]
      %v312 = vld [vmem:[%s264 + $0x4] sm:$0xf]
      %v313 = vld [vmem:[%s264 + $0x8] sm:$0xf]
      %v314 = vld [vmem:[%s264 + $0xc] sm:$0xf]
      %v315 = vld [vmem:[%s264 + $0x10] sm:$0xf]
      %v316 = vld [vmem:[%s264 + $0x14] sm:$0xf]
      %v317 = vld [vmem:[%s264 + $0x18] sm:$0xf]
      %v318 = vld [vmem:[%s264 + $0x1c] sm:$0xf]
      %v319 = vld [vmem:[%s270] sm:$0xf]
      %v320 = vld [vmem:[%s270 + $0x4] sm:$0xf]
      %v321 = vld [vmem:[%s270 + $0x8] sm:$0xf]
      %v322 = vld [vmem:[%s270 + $0xc] sm:$0xf]
      %v323 = vld [vmem:[%s270 + $0x10] sm:$0xf]
      %v324 = vld [vmem:[%s270 + $0x14] sm:$0xf]
      %v325 = vld [vmem:[%s270 + $0x18] sm:$0xf]
      %v326 = vld [vmem:[%s270 + $0x1c] sm:$0xf]
      %v327 = vld [vmem:[%s270 + $0x20] sm:$0xf]
      %v328 = vld [vmem:[%s270 + $0x24] sm:$0xf]
      %v329 = vld [vmem:[%s270 + $0x28] sm:$0xf]
      %v330 = vld [vmem:[%s270 + $0x2c] sm:$0xf]
      %v331 = vld [vmem:[%s270 + $0x30] sm:$0xf]
      %v332 = vld [vmem:[%s270 + $0x34] sm:$0xf]
      %v333 = vld [vmem:[%s270 + $0x38] sm:$0xf]
      %v334 = vld [vmem:[%s270 + $0x3c] sm:$0xf]
      %v343 = vunpack.c.l.b16 %v311
      %v344 = vunpack.c.l.b16 %v312
      %v345 = vunpack.c.l.b16 %v313
      %v346 = vunpack.c.l.b16 %v314
      %v347 = vunpack.c.l.b16 %v315
      %v348 = vunpack.c.l.b16 %v316
      %v349 = vunpack.c.l.b16 %v317
      %v350 = vunpack.c.l.b16 %v318
      %v351 = vpack.c.b16 %v344, %v343
      %v352 = vpack.c.b16 %v346, %v345
      %v353 = vpack.c.b16 %v348, %v347
      %v354 = vpack.c.b16 %v350, %v349
      %v375 = vunpack.c.l.b16 %v319
      %v376 = vunpack.c.l.b16 %v320
      %v377 = vunpack.c.l.b16 %v321
      %v378 = vunpack.c.l.b16 %v322
      %v379 = vunpack.c.l.b16 %v323
      %v380 = vunpack.c.l.b16 %v324
      %v381 = vunpack.c.l.b16 %v325
      %v382 = vunpack.c.l.b16 %v326
      %v383 = vunpack.c.l.b16 %v327
      %v384 = vunpack.c.l.b16 %v328
      %v385 = vunpack.c.l.b16 %v329
      %v386 = vunpack.c.l.b16 %v330
      %v387 = vunpack.c.l.b16 %v331
      %v388 = vunpack.c.l.b16 %v332
      %v389 = vunpack.c.l.b16 %v333
      %v390 = vunpack.c.l.b16 %v334
      %v391 = vpack.c.b16 %v376, %v375
      %v392 = vpack.c.b16 %v378, %v377
      %v393 = vpack.c.b16 %v380, %v379
      %v394 = vpack.c.b16 %v382, %v381
      %v395 = vpack.c.b16 %v384, %v383
      %v396 = vpack.c.b16 %v386, %v385
      %v397 = vpack.c.b16 %v388, %v387
      %v398 = vpack.c.b16 %v390, %v389
      %407 = vmatprep.subr.bf16.mxu0 0
      %408 = vmatpush1.bf16.msra.mxu0 %v391
      %409 = vmatprep.subr.bf16.mxu0 0
      %410 = vmatpush1.bf16.msra.mxu0 %v392
      %411 = vmatprep.subr.bf16.mxu0 0
      %412 = vmatpush1.bf16.msra.mxu0 %v393
      %413 = vmatprep.subr.bf16.mxu0 0
      %414 = vmatpush1.bf16.msra.mxu0 %v394
      %415 = vmatprep.subr.bf16.mxu0 0
      %416 = vmatpush1.bf16.msra.mxu0 %v395
      %417 = vmatprep.subr.bf16.mxu0 0
      %418 = vmatpush1.bf16.msra.mxu0 %v396
      %419 = vmatprep.subr.bf16.mxu0 0
      %420 = vmatpush1.bf16.msra.mxu0 %v397
      %421 = vmatprep.subr.bf16.mxu0 0
      %422 = vmatpush1.bf16.msra.mxu0 %v398
      %423 = vmatprep.subr.bf16.mxu0 0
      %424 = vmatpush1.bf16.msra.mxu0 0
      %425 = vmatprep.subr.bf16.mxu0 0
      %426 = vmatpush1.bf16.msra.mxu0 0
      %427 = vmatprep.subr.bf16.mxu0 0
      %428 = vmatpush1.bf16.msra.mxu0 0
      %429 = vmatprep.subr.bf16.mxu0 0
      %430 = vmatpush1.bf16.msra.mxu0 0
      %431 = vmatprep.subr.bf16.mxu0 0
      %432 = vmatpush1.bf16.msra.mxu0 0
      %433 = vmatprep.subr.bf16.mxu0 0
      %434 = vmatpush1.bf16.msra.mxu0 0
      %435 = vmatprep.subr.bf16.mxu0 0
      %436 = vmatpush1.bf16.msra.mxu0 0
      %437 = vmatprep.subr.bf16.mxu0 0
      %438 = vmatpush1.bf16.msra.mxu0 0
      %439 = vmatprep.mubr.bf16.mxu0 0
      %440 = vmatmul.mubr.bf16.gmra.mrb[0].mxu0 %v351
      %v441 = vpop.f32.mrb[0].mxu0
      %v442 = vadd.f32 0.0, %v441
      %v443 = vpop.f32.mrb[0].mxu0
      %v444 = vpop.f32.mrb[0].mxu0
      %v445 = vadd.f32 0.0, %v444
      %v446 = vpop.f32.mrb[0].mxu0
      %447 = vmatprep.mubr.bf16.mxu0 0
      %448 = vmatmul.mubr.bf16.gmra.mrb[0].mxu0 %v352
      %v449 = vpop.f32.mrb[0].mxu0
      %v450 = vadd.f32 0.0, %v449
      %v451 = vpop.f32.mrb[0].mxu0
      %v452 = vpop.f32.mrb[0].mxu0
      %v453 = vadd.f32 0.0, %v452
      %v454 = vpop.f32.mrb[0].mxu0
      %455 = vmatprep.mubr.bf16.mxu0 0
      %456 = vmatmul.mubr.bf16.gmra.mrb[0].mxu0 %v353
      %v457 = vpop.f32.mrb[0].mxu0
      %v458 = vadd.f32 0.0, %v457
      %v459 = vpop.f32.mrb[0].mxu0
      %v460 = vpop.f32.mrb[0].mxu0
      %v461 = vadd.f32 0.0, %v460
      %v462 = vpop.f32.mrb[0].mxu0
      %463 = vmatprep.mubr.bf16.mxu0 0
      %464 = vmatmul.mubr.bf16.gmra.mrb[0].mxu0 %v354
      %v465 = vpop.f32.mrb[0].mxu0
      %v466 = vadd.f32 0.0, %v465
      %v467 = vpop.f32.mrb[0].mxu0
      %v468 = vpop.f32.mrb[0].mxu0
      %v469 = vadd.f32 0.0, %v468
      %v470 = vpop.f32.mrb[0].mxu0
      %471 = vdwg.mxu0
      %v472 = vadd.f32 %v303, %v442
      %v473 = vadd.f32 %v304, %v445
      %v474 = vadd.f32 %v305, %v450
      %v475 = vadd.f32 %v306, %v453
      %v476 = vadd.f32 %v307, %v458
      %v477 = vadd.f32 %v308, %v461
      %v478 = vadd.f32 %v309, %v466
      %v479 = vadd.f32 %v310, %v469
      %480 = vst [vmem:[#allocation2] sm:$0xff] %v472
      %481 = vst [vmem:[#allocation2 + $0x8] sm:$0xff] %v473
      %482 = vst [vmem:[#allocation2 + $0x10] sm:$0xff] %v474
      %483 = vst [vmem:[#allocation2 + $0x18] sm:$0xff] %v475
      %484 = vst [vmem:[#allocation2 + $0x20] sm:$0xff] %v476
      %485 = vst [vmem:[#allocation2 + $0x28] sm:$0xff] %v477
      %486 = vst [vmem:[#allocation2 + $0x30] sm:$0xff] %v478
      %487 = vst [vmem:[#allocation2 + $0x38] sm:$0xff] %v479
      // Predicated region
      $region41: #{gat_hgnnplus_forward.15} parent=35 // pred_check
        %p488 = pneg %p291
      $region42: #{gat_hgnnplus_forward.15} parent=35 // pred_check_branch
        %490 = sbr.rel (%p488) target = $region44
      $region43: #{gat_hgnnplus_forward.15} parent=35 // pred_region
        %v491 = vld [vmem:[#allocation2] sm:$0xff]
        %v492 = vld [vmem:[#allocation2 + $0x8] sm:$0xff]
        %v493 = vld [vmem:[#allocation2 + $0x10] sm:$0xff]
        %v494 = vld [vmem:[#allocation2 + $0x18] sm:$0xff]
        %v495 = vld [vmem:[#allocation2 + $0x20] sm:$0xff]
        %v496 = vld [vmem:[#allocation2 + $0x28] sm:$0xff]
        %v497 = vld [vmem:[#allocation2 + $0x30] sm:$0xff]
        %v498 = vld [vmem:[#allocation2 + $0x38] sm:$0xff]
        %v499 = vld [vmem:[%s276] sm:$0xff]
        %v500 = vld [vmem:[%s276 + $0x8] sm:$0xff]
        %v501 = vld [vmem:[%s276 + $0x10] sm:$0xff]
        %v502 = vld [vmem:[%s276 + $0x18] sm:$0xff]
        %v503 = vld [vmem:[%s276 + $0x20] sm:$0xff]
        %v504 = vld [vmem:[%s276 + $0x28] sm:$0xff]
        %v505 = vld [vmem:[%s276 + $0x30] sm:$0xff]
        %v506 = vld [vmem:[%s276 + $0x38] sm:$0xff]
        %508 = vset.pattern.permute.xlu0 0
        %509 = vperm.xlu0 %508, %v499
        %v510 = vpop.permute.xlu0 %509
        %513 = vset.pattern.permute.xlu0 0
        %514 = vperm.xlu0 %513, %v500
        %v515 = vpop.permute.xlu0 %514
        %518 = vset.pattern.permute.xlu0 0
        %519 = vperm.xlu0 %518, %v501
        %v520 = vpop.permute.xlu0 %519
        %523 = vset.pattern.permute.xlu0 0
        %524 = vperm.xlu0 %523, %v502
        %v525 = vpop.permute.xlu0 %524
        %528 = vset.pattern.permute.xlu0 0
        %529 = vperm.xlu0 %528, %v503
        %v530 = vpop.permute.xlu0 %529
        %533 = vset.pattern.permute.xlu0 0
        %534 = vperm.xlu0 %533, %v504
        %v535 = vpop.permute.xlu0 %534
        %538 = vset.pattern.permute.xlu0 0
        %539 = vperm.xlu0 %538, %v505
        %v540 = vpop.permute.xlu0 %539
        %543 = vset.pattern.permute.xlu0 0
        %544 = vperm.xlu0 %543, %v506
        %v545 = vpop.permute.xlu0 %544
        %v547 = vmul.f32 %v491, %v510
        %v548 = vmul.f32 %v492, %v515
        %v549 = vmul.f32 %v493, %v520
        %v550 = vmul.f32 %v494, %v525
        %v551 = vmul.f32 %v495, %v530
        %v552 = vmul.f32 %v496, %v535
        %v553 = vmul.f32 %v497, %v540
        %v554 = vmul.f32 %v498, %v545
        %v555 = vld [vmem:[%s282] sm:$0xff]
        %v556 = vld [vmem:[%s282 + $0x8] sm:$0xff]
        %v557 = vld [vmem:[%s282 + $0x10] sm:$0xff]
        %v558 = vld [vmem:[%s282 + $0x18] sm:$0xff]
        %v559 = vld [vmem:[%s282 + $0x20] sm:$0xff]
        %v560 = vld [vmem:[%s282 + $0x28] sm:$0xff]
        %v561 = vld [vmem:[%s282 + $0x30] sm:$0xff]
        %v562 = vld [vmem:[%s282 + $0x38] sm:$0xff]
        %v563 = vadd.f32 %v547, %v555
        %v564 = vadd.f32 %v548, %v556
        %v565 = vadd.f32 %v549, %v557
        %v566 = vadd.f32 %v550, %v558
        %v567 = vadd.f32 %v551, %v559
        %v568 = vadd.f32 %v552, %v560
        %v569 = vadd.f32 %v553, %v561
        %v570 = vadd.f32 %v554, %v562
        %v571 = vmul.f32 %v563, 0.5
        %v572 = vmul.f32 %v564, 0.5
        %v573 = vmul.f32 %v565, 0.5
        %v574 = vmul.f32 %v566, 0.5
        %v575 = vmul.f32 %v567, 0.5
        %v576 = vmul.f32 %v568, 0.5
        %v577 = vmul.f32 %v569, 0.5
        %v578 = vmul.f32 %v570, 0.5
        %vm579 = vcmp.gt.f32.partialorder %v571, 0.0
        %vm580 = vcmp.gt.f32.partialorder %v572, 0.0
        %vm581 = vcmp.gt.f32.partialorder %v573, 0.0
        %vm582 = vcmp.gt.f32.partialorder %v574, 0.0
        %vm583 = vcmp.gt.f32.partialorder %v575, 0.0
        %vm584 = vcmp.gt.f32.partialorder %v576, 0.0
        %vm585 = vcmp.gt.f32.partialorder %v577, 0.0
        %vm586 = vcmp.gt.f32.partialorder %v578, 0.0
        %v587 = vmul.f32 %v571, 1.442695
        %v588 = vpow.pop %v587
        %v589 = vmul.f32 %v572, 1.442695
        %v590 = vpow.pop %v589
        %v591 = vmul.f32 %v573, 1.442695
        %v592 = vpow.pop %v591
        %v593 = vmul.f32 %v574, 1.442695
        %v594 = vpow.pop %v593
        %v595 = vmul.f32 %v575, 1.442695
        %v596 = vpow.pop %v595
        %v597 = vmul.f32 %v576, 1.442695
        %v598 = vpow.pop %v597
        %v599 = vmul.f32 %v577, 1.442695
        %v600 = vpow.pop %v599
        %v601 = vmul.f32 %v578, 1.442695
        %v602 = vpow.pop %v601
        %v603 = vsub.f32 %v588, 1.0
        %v604 = vsub.f32 %v590, 1.0
        %v605 = vsub.f32 %v592, 1.0
        %v606 = vsub.f32 %v594, 1.0
        %v607 = vsub.f32 %v596, 1.0
        %v608 = vsub.f32 %v598, 1.0
        %v609 = vsub.f32 %v600, 1.0
        %v610 = vsub.f32 %v602, 1.0
        %v611 = vsel %vm579, %v571, %v603
        %v612 = vsel %vm580, %v572, %v604
        %v613 = vsel %vm581, %v573, %v605
        %v614 = vsel %vm582, %v574, %v606
        %v615 = vsel %vm583, %v575, %v607
        %v616 = vsel %vm584, %v576, %v608
        %v617 = vsel %vm585, %v577, %v609
        %v618 = vsel %vm586, %v578, %v610
        %v619 = vpack.c.bf16 %v612, %v611
        %v620 = vpack.c.bf16 %v614, %v613
        %v621 = vpack.c.bf16 %v616, %v615
        %v622 = vpack.c.bf16 %v618, %v617
        %v627 = vunpack.c.l.b16 %v619
        %v628 = vunpack.c.h.b16 %v619
        %v629 = vunpack.c.l.b16 %v620
        %v630 = vunpack.c.h.b16 %v620
        %v631 = vunpack.c.l.b16 %v621
        %v632 = vunpack.c.h.b16 %v621
        %v633 = vunpack.c.l.b16 %v622
        %v634 = vunpack.c.h.b16 %v622
        %v635 = vpack.c.b16 %v627, %v627
        %v636 = vpack.c.b16 %v628, %v628
        %v637 = vpack.c.b16 %v629, %v629
        %v638 = vpack.c.b16 %v630, %v630
        %v639 = vpack.c.b16 %v631, %v631
        %v640 = vpack.c.b16 %v632, %v632
        %v641 = vpack.c.b16 %v633, %v633
        %v642 = vpack.c.b16 %v634, %v634
        %651 = vst [vmem:[%s288] sm:$0xf] %v635
        %652 = vst [vmem:[%s288 + $0x4] sm:$0xf] %v636
        %653 = vst [vmem:[%s288 + $0x8] sm:$0xf] %v637
        %654 = vst [vmem:[%s288 + $0xc] sm:$0xf] %v638
        %655 = vst [vmem:[%s288 + $0x10] sm:$0xf] %v639
        %656 = vst [vmem:[%s288 + $0x14] sm:$0xf] %v640
        %657 = vst [vmem:[%s288 + $0x18] sm:$0xf] %v641
        %658 = vst [vmem:[%s288 + $0x1c] sm:$0xf] %v642
      $region44: #{gat_hgnnplus_forward.15} parent=35 // pred_fallthru
        _
      %s659 = smul.u32 8, %s19
      %p660 = scmp.lt.s32.totalorder %s659, 31
      %s661 = scalar_select %p660, %s659, 31
      %s662 = smul.addr %s661, 4
      %s663 = scalar_lea.vmem %s4, %s662
      // Predicated region
      $region45: #{gat_hgnnplus_forward.15} parent=35 // pred_check
        %p664 = pneg %p151
      $region46: #{gat_hgnnplus_forward.15} parent=35 // pred_check_branch
        %666 = sbr.rel (%p664) target = $region48
      $region47: #{gat_hgnnplus_forward.15} parent=35 // pred_region
        %s667 = smul.u32 8, %s19
      $region48: #{gat_hgnnplus_forward.15} parent=35 // pred_fallthru
        _
    $region36: #{gat_hgnnplus_forward.15} parent=5 // pred_fallthru
      _
    %p668 = scmp.le.s32.totalorder 2, %s10
    // Predicated region
    $region49: #{gat_hgnnplus_forward.15} parent=5 // pred_check
      %p669 = pneg %p668
    $region50: #{gat_hgnnplus_forward.15} parent=5 // pred_check_branch
      %671 = sbr.rel (%p669) target = $region52
    $region51: #{gat_hgnnplus_forward.15} parent=5 // pred_region
      %s672 = ssub.s32 %s10, 2
      // Predicated region
      $region53: #{gat_hgnnplus_forward.15} parent=51 // pred_check
        %p673 = pneg %p157
      $region54: #{gat_hgnnplus_forward.15} parent=51 // pred_check_branch
        %675 = sbr.rel (%p673) target = $region56
      $region55: #{gat_hgnnplus_forward.15} parent=51 // pred_region
        %s676 = smul.u32 8, %s21
        %p677 = scmp.lt.s32.totalorder %s676, 31
        %s678 = scalar_select %p677, %s676, 31
        %s679 = smul.addr %s678, 4
        %s680 = scalar_lea.vmem %s4, %s679
      $region56: #{gat_hgnnplus_forward.15} parent=51 // pred_fallthru
        _
    $region52: #{gat_hgnnplus_forward.15} parent=5 // pred_fallthru
      _
  $region6: #{gat_hgnnplus_forward.15} parent=0 // loop_footer
    %s14 = sadd.s32 1, %s10
  $region7: #{gat_hgnnplus_forward.15} parent=0 // loop_footer_branch
    %9 = sbr.rel target = $region3
  $region8: #{gat_hgnnplus_forward.15} parent=0 // loop_exit
    _

</llo_original>
